<compile_context>
chip_gen: v7x
topology: tpu7x:2x2x1
jax: 0.10.0
libtpu: 0.0.40
codegen_flags: <defaults>
</compile_context>

<pallas_src>
import jax
import jax.numpy as jnp
from jax import lax
from jax.experimental import pallas as pl
from jax.experimental.pallas import tpu as pltpu


def _round_up(x, m):
    return (x + m - 1) // m * m


def _pick_row_tile(h, max_th=32):
    """Largest divisor of H that is <= max_th (bigger tiles => less halo waste)."""
    best = 1
    for t in range(1, min(h, max_th) + 1):
        if h % t == 0:
            best = t
    return best


def _vmem_limit_bytes(s_flat, cpi, ct, m):
    """Tile working set (double-buffered) + headroom, clipped to device VMEM."""
    need = (2 * s_flat * cpi * 2        # input slab, bf16, double-buffered
            + 2 * 9 * cpi * ct * 2      # fused weight tile, bf16
            + 2 * ct * 4                # bias tile, f32
            + 2 * m * ct * 2            # output tile, bf16, double-buffered
            + m * ct * 4)               # f32 accumulator
    limit = max(2 * need, 32 * 1024 * 1024)
    try:
        # Physical VMEM: 64 MiB on v7x, 128 MiB on v5e/v6e.  Leave headroom
        # for Mosaic internal scratch.
        cap = int(pltpu.get_tpu_info().vmem_capacity_bytes)
        limit = min(limit, cap - (16 << 20))
    except Exception:
        limit = min(limit, 48 << 20)    # safe under v7x's 64 MiB
    return int(max(limit, need + (4 << 20)))


def _make_repvgg_kernel(pitch):
    """pitch = W + 2 (row stride, in elements, of the flattened padded slab)."""

    def kernel(x_ref, w_ref, b_ref, o_ref):
        # x_ref: (1, 1, Sflat, Cpi)  bf16  flattened, spatially padded input slab
        # w_ref: (3, 3, Cpi,  CT)    bf16  fused ("deploy") 3x3 weight tile
        # b_ref: (1, CT)             f32   fused bias tile
        # o_ref: (1, 1, M, CT)       bf16  M = TH*(W+2) flat output (2 junk cols/row)
        m = o_ref.shape[2]
        ct = o_ref.shape[3]

        # Start from the broadcast bias: removes a separate m x ct bias-add pass.
        acc = jnp.broadcast_to(b_ref[...], (m, ct))
        for dy in range(3):
            for dx in range(3):
                off = dy * pitch + dx          # static sublane offset
                tap = x_ref[0, 0, off:off + m, :]
                acc = acc + jnp.dot(tap, w_ref[dy, dx],
                                    preferred_element_type=jnp.float32)
        o_ref[...] = jnp.maximum(acc, 0.0).astype(o_ref.dtype).reshape(o_ref.shape)

    return kernel


def fuse_branches(branch_params):
    """RepVGG 'deploy' re-parameterization (exact in eval mode).

    branch_params: (w3_hwio, b3, w1_hwio, b1, sid, bid) with HWIO weights.
    Returns fused (3,3,Cin,Cout) weight and (Cout,) bias, both f32.
    """
    w3, b3, w1, b1, sid, bid = branch_params
    cin, cout = w3.shape[2], w3.shape[3]
    center = w1[0, 0]
    bias = b3 + b1
    if sid is not None:
        assert cin == cout, "identity branch requires Cin == Cout"
        center = center + jnp.diag(sid)
        bias = bias + bid
    w = w3.at[1, 1].add(center)
    return w, bias


def repvgg_block_forward(x_nchw, branch_params, *, th=None, ct_out=256):
    """x_nchw: (N, C, H, W) f32.  Returns (N, Cout, H, W) f32.

    ct_out: Cout tile width (256 fills the v6e/v7x MXU N; 128 also fine on v5e).
    TODO(synk): when chaining RepVGG blocks, keep activations NHWC bf16 between
    blocks (skip the final crop/cast/transpose) and fold the NCHW<->NHWC layout
    change into the model boundary; the NCHW f32 output here matches the module.
    """
    w_fused, b_fused = fuse_branches(branch_params)        # (3,3,Cin,Cout), (Cout,)
    n, cin, h, w = x_nchw.shape
    cout = w_fused.shape[3]

    if th is None:
        th = _pick_row_tile(h)
    assert h % th == 0, "row tile must divide H"
    nh = h // th
    wp = w + 2                                # padded width == row pitch
    # NOTE: Cin < 128 is zero-padded, so the MXU contraction is mostly zeros for
    # early, narrow stages.  TODO(synk): pack the 9 taps into the contraction
    # dim (im2col-style K = 9*Cin) to densify K for small-channel layers.
    cpi = _round_up(cin, 128)                 # lane-dense input channels
    cpo = _round_up(cout, 128)                # lane-dense output channels
    ct = min(ct_out, cpo)                     # Cout tile
    if cpo % ct != 0:
        ct = 128
    nco = cpo // ct
    m = th * wp                               # per-step matmul M / flat out rows
    s_raw = (th + 2) * wp
    # The furthest tap (dy=2, dx=2) reads rows [2*wp+2, 2*wp+2+m) = up to
    # s_raw + 2; s_flat must cover that and the pad region [s_raw, s_flat) is
    # zero-filled, so the overrun only feeds the cropped junk columns.
    s_flat = _round_up(s_raw + 2, 8)
    assert s_flat >= 2 * wp + 2 + m, "flattened slab too short for the last tap"

    # ---- glue: layout, halo tiles, channel padding, reparam fold ----
    xb = jnp.transpose(x_nchw, (0, 2, 3, 1)).astype(jnp.bfloat16)      # NHWC bf16
    # Zero width-halo is load-bearing: the junk columns wrap into the next
    # row's left halo, which must be zero for the kept columns to stay exact.
    xb = jnp.pad(xb, ((0, 0), (1, 1), (1, 1), (0, cpi - cin)))         # halo + lanes
    # Overlapping row tiles (2-row halo), flattened row-major per tile.
    # TODO(synk): for very large H replace this glue halo duplication with
    # memory_space=pl.ANY + manual make_async_copy of the halo'd slab.
    xt = jnp.stack([xb[:, i * th:i * th + th + 2] for i in range(nh)], axis=1)
    xt = xt.reshape(n, nh, s_raw, cpi)
    xt = jnp.pad(xt, ((0, 0), (0, 0), (0, s_flat - s_raw), (0, 0)))

    wk = jnp.zeros((3, 3, cpi, cpo), jnp.float32)
    wk = wk.at[:, :, :cin, :cout].set(w_fused).astype(jnp.bfloat16)
    bk = jnp.zeros((1, cpo), jnp.float32).at[0, :cout].set(b_fused)

    out_flat = pl.pallas_call(
        _make_repvgg_kernel(wp),
        out_shape=jax.ShapeDtypeStruct((n, nh, m, cpo), jnp.bfloat16),
        grid_spec=pltpu.PrefetchScalarGridSpec(
            num_scalar_prefetch=0,
            # Cout-tile axis OUTERMOST: the weight/bias block index changes only
            # when k changes, so they are DMA'd nco times total, not every step.
            grid=(nco, n, nh),
            in_specs=[
                pl.BlockSpec((1, 1, s_flat, cpi), lambda k, i, j: (i, j, 0, 0)),
                pl.BlockSpec((3, 3, cpi, ct), lambda k, i, j: (0, 0, 0, k)),
                pl.BlockSpec((1, ct), lambda k, i, j: (0, k)),
            ],
            out_specs=pl.BlockSpec((1, 1, m, ct), lambda k, i, j: (i, j, 0, k)),
        ),
        compiler_params=pltpu.CompilerParams(
            # All axes independent -> megacore-friendly on v7x (total parallel
            # extent nco*n*nh >= 2 for any batched / multi-row-tile call).
            dimension_semantics=("parallel", "parallel", "parallel"),
            vmem_limit_bytes=_vmem_limit_bytes(s_flat, cpi, ct, m)),
    )(xt, wk, bk)

    # Crop junk columns / padded channels, back to NCHW f32 (module interface).
    out = out_flat.reshape(n, nh, th, wp, cpo)[:, :, :, :w, :cout]
    out = out.reshape(n, h, w, cout).astype(jnp.float32)
    return jnp.transpose(out, (0, 3, 1, 2))


def make_params(key, in_channels, out_channels, eps=1e-5):
    """Deterministic synthetic params, PyTorch-style, then per-branch BN-folded."""
    ks = jax.random.split(key, 12)

    w3_oihw = 0.1 * jax.random.normal(ks[0], (out_channels, in_channels, 3, 3),
                                      jnp.float32)
    w1_oihw = 0.1 * jax.random.normal(ks[1], (out_channels, in_channels, 1, 1),
                                      jnp.float32)

    def bn(k0, k1, k2, k3, c):
        gamma = 1.0 + 0.1 * jax.random.normal(k0, (c,), jnp.float32)
        beta = 0.1 * jax.random.normal(k1, (c,), jnp.float32)
        mean = 0.1 * jax.random.normal(k2, (c,), jnp.float32)
        var = jax.random.uniform(k3, (c,), jnp.float32, 0.5, 1.5)
        return gamma, beta, mean, var

    g3, be3, m3, v3 = bn(ks[2], ks[3], ks[4], ks[5], out_channels)
    g1, be1, m1, v1 = bn(ks[6], ks[7], ks[8], ks[9], out_channels)
    gi, bei, mi, vi = bn(ks[10], ks[11], ks[0], ks[1], in_channels)

    s3 = g3 / jnp.sqrt(v3 + eps)
    w3f = w3_oihw * s3[:, None, None, None]
    b3f = be3 - m3 * s3

    s1 = g1 / jnp.sqrt(v1 + eps)
    w1f = w1_oihw * s1[:, None, None, None]
    b1f = be1 - m1 * s1

    sid = gi / jnp.sqrt(vi + eps)
    bid = bei - mi * sid

    w3_hwio = jnp.transpose(w3f, (2, 3, 1, 0))
    w1_hwio = jnp.transpose(w1f, (2, 3, 1, 0))

    kernel_params = (w3_hwio, b3f, w1_hwio, b1f, sid, bid)   # HWIO for the kernel
    ref_params = (w3f, b3f, w1f, b1f, sid, bid)              # OIHW for the reference
    return kernel_params, ref_params


def reference_forward(x_nchw, ref_params):
    """Plain-JAX f32 reference of the original three-branch eval-mode block."""
    w3f, b3f, w1f, b1f, sid, bid = ref_params
    dn = ('NCHW', 'OIHW', 'NCHW')
    hi = lax.Precision.HIGHEST
    y3 = lax.conv_general_dilated(x_nchw, w3f, (1, 1), ((1, 1), (1, 1)),
                                  dimension_numbers=dn, precision=hi)
    y3 = y3 + b3f[None, :, None, None]
    y1 = lax.conv_general_dilated(x_nchw, w1f, (1, 1), ((0, 0), (0, 0)),
                                  dimension_numbers=dn, precision=hi)
    y1 = y1 + b1f[None, :, None, None]
    yid = x_nchw * sid[None, :, None, None] + bid[None, :, None, None]
    return jnp.maximum(y3 + y1 + yid, 0.0)


def reference_fused_bf16(x_nchw, branch_params):
    """Fused conv with bf16-rounded operands, f32 math: tight check of the kernel."""
    w_fused, b_fused = fuse_branches(branch_params)
    x = jnp.transpose(x_nchw, (0, 2, 3, 1)).astype(jnp.bfloat16).astype(jnp.float32)
    wf = w_fused.astype(jnp.bfloat16).astype(jnp.float32)
    y = lax.conv_general_dilated(x, wf, (1, 1), ((1, 1), (1, 1)),
                                 dimension_numbers=('NHWC', 'HWIO', 'NHWC'),
                                 precision=lax.Precision.HIGHEST)
    y = jnp.maximum(y + b_fused[None, None, None, :], 0.0)
    return jnp.transpose(y, (0, 3, 1, 2))


if __name__ == "__main__":
    key = jax.random.PRNGKey(0)
    kx, kp = jax.random.split(key)

    N, C, H, W = 2, 4, 16, 16   # in_channels == out_channels, stride=1, pad=1
    x = jax.random.normal(kx, (N, C, H, W), jnp.float32)

    kernel_params, ref_params = make_params(kp, C, C)

    out = jax.block_until_ready(repvgg_block_forward(x, kernel_params))
    assert out.shape == (N, C, H, W)

    # Tight check: same math with bf16-rounded operands.  The kernel's output is
    # bf16, so allow up to ~1 bf16 ulp of the largest activation.
    ref_tight = reference_fused_bf16(x, kernel_params)
    tol_tight = float(2.0 ** -7 * jnp.max(jnp.abs(ref_tight))) + 2e-3
    err_tight = float(jnp.max(jnp.abs(out - ref_tight)))
    assert err_tight < tol_tight, f"tight check failed: {err_tight} >= {tol_tight}"

    # Module-semantics check against the f32 three-branch reference
    # (bf16 operand + bf16 output tolerance).
    ref = reference_forward(x, ref_params)
    tol_full = 3e-2 + float(2.0 ** -7 * jnp.max(jnp.abs(ref)))
    err = float(jnp.max(jnp.abs(out - ref)))
    assert err < tol_full, f"f32 reference check failed: {err} >= {tol_full}"

    print("KERNEL_OK")
</pallas_src>

<mosaic_0001>
module attributes {stable_mosaic.version = 11 : i64} {
  func.func @kernel(%arg0: i32, %arg1: i32, %arg2: i32, %arg3: memref<1x1x328x128xbf16, #tpu.memory_space<vmem>>, %arg4: memref<3x3x128x128xbf16, #tpu.memory_space<vmem>>, %arg5: memref<1x128xf32, #tpu.memory_space<vmem>>, %arg6: memref<1x1x288x128xbf16, #tpu.memory_space<vmem>>) attributes {dimension_semantics = [#tpu.dimension_semantics<parallel>, #tpu.dimension_semantics<parallel>, #tpu.dimension_semantics<parallel>], iteration_bounds = array<i64: 1, 2, 1>, scalar_prefetch = 0 : i64, scratch_operands = 0 : i64, tpu.core_type = #tpu.core_type<tc>, window_params = [{transform_indices = @transform_0, window_bounds = array<i64: 1, 1, 328, 128>}, {transform_indices = @transform_1, window_bounds = array<i64: 3, 3, 128, 128>}, {transform_indices = @transform_2, window_bounds = array<i64: 1, 128>}, {transform_indices = @transform_3, window_bounds = array<i64: 1, 1, 288, 128>}]} {
    %c0 = arith.constant 0 : index
    %c0_0 = arith.constant 0 : index
    %0 = vector.load %arg5[%c0, %c0_0] : memref<1x128xf32, #tpu.memory_space<vmem>>, vector<1x128xf32>
    %1 = vector.shape_cast %0 : vector<1x128xf32> to vector<1x128xf32>
    %2 = vector.broadcast %1 : vector<1x128xf32> to vector<288x128xf32>
    %c0_1 = arith.constant 0 : index
    %c0_2 = arith.constant 0 : index
    %c0_3 = arith.constant 0 : index
    %c0_4 = arith.constant 0 : index
    %3 = vector.load %arg3[%c0_1, %c0_2, %c0_3, %c0_4] : memref<1x1x328x128xbf16, #tpu.memory_space<vmem>>, vector<1x1x288x128xbf16>
    %4 = vector.shape_cast %3 : vector<1x1x288x128xbf16> to vector<288x128xbf16>
    %c0_5 = arith.constant 0 : index
    %c0_6 = arith.constant 0 : index
    %c0_7 = arith.constant 0 : index
    %c0_8 = arith.constant 0 : index
    %5 = vector.load %arg4[%c0_5, %c0_6, %c0_7, %c0_8] : memref<3x3x128x128xbf16, #tpu.memory_space<vmem>>, vector<1x1x128x128xbf16>
    %6 = vector.shape_cast %5 : vector<1x1x128x128xbf16> to vector<128x128xbf16>
    %cst = arith.constant dense<0.000000e+00> : vector<288x128xf32>
    %7 = tpu.matmul %4, %6, %cst {dimension_numbers = #tpu.dot_dimension_numbers<[1], [0], [0], [1], [0, 0, 1, 1], [], []>} : vector<288x128xbf16>, vector<128x128xbf16>, vector<288x128xf32> -> vector<288x128xf32>
    %8 = arith.addf %2, %7 : vector<288x128xf32>
    %c0_9 = arith.constant 0 : index
    %c0_10 = arith.constant 0 : index
    %c1 = arith.constant 1 : index
    %c0_11 = arith.constant 0 : index
    %9 = vector.load %arg3[%c0_9, %c0_10, %c1, %c0_11] : memref<1x1x328x128xbf16, #tpu.memory_space<vmem>>, vector<1x1x288x128xbf16>
    %10 = vector.shape_cast %9 : vector<1x1x288x128xbf16> to vector<288x128xbf16>
    %c0_12 = arith.constant 0 : index
    %c1_13 = arith.constant 1 : index
    %c0_14 = arith.constant 0 : index
    %c0_15 = arith.constant 0 : index
    %11 = vector.load %arg4[%c0_12, %c1_13, %c0_14, %c0_15] : memref<3x3x128x128xbf16, #tpu.memory_space<vmem>>, vector<1x1x128x128xbf16>
    %12 = vector.shape_cast %11 : vector<1x1x128x128xbf16> to vector<128x128xbf16>
    %cst_16 = arith.constant dense<0.000000e+00> : vector<288x128xf32>
    %13 = tpu.matmul %10, %12, %cst_16 {dimension_numbers = #tpu.dot_dimension_numbers<[1], [0], [0], [1], [0, 0, 1, 1], [], []>} : vector<288x128xbf16>, vector<128x128xbf16>, vector<288x128xf32> -> vector<288x128xf32>
    %14 = arith.addf %8, %13 : vector<288x128xf32>
    %c0_17 = arith.constant 0 : index
    %c0_18 = arith.constant 0 : index
    %c2 = arith.constant 2 : index
    %c0_19 = arith.constant 0 : index
    %15 = vector.load %arg3[%c0_17, %c0_18, %c2, %c0_19] : memref<1x1x328x128xbf16, #tpu.memory_space<vmem>>, vector<1x1x288x128xbf16>
    %16 = vector.shape_cast %15 : vector<1x1x288x128xbf16> to vector<288x128xbf16>
    %c0_20 = arith.constant 0 : index
    %c2_21 = arith.constant 2 : index
    %c0_22 = arith.constant 0 : index
    %c0_23 = arith.constant 0 : index
    %17 = vector.load %arg4[%c0_20, %c2_21, %c0_22, %c0_23] : memref<3x3x128x128xbf16, #tpu.memory_space<vmem>>, vector<1x1x128x128xbf16>
    %18 = vector.shape_cast %17 : vector<1x1x128x128xbf16> to vector<128x128xbf16>
    %cst_24 = arith.constant dense<0.000000e+00> : vector<288x128xf32>
    %19 = tpu.matmul %16, %18, %cst_24 {dimension_numbers = #tpu.dot_dimension_numbers<[1], [0], [0], [1], [0, 0, 1, 1], [], []>} : vector<288x128xbf16>, vector<128x128xbf16>, vector<288x128xf32> -> vector<288x128xf32>
    %20 = arith.addf %14, %19 : vector<288x128xf32>
    %c0_25 = arith.constant 0 : index
    %c0_26 = arith.constant 0 : index
    %c18 = arith.constant 18 : index
    %c0_27 = arith.constant 0 : index
    %21 = vector.load %arg3[%c0_25, %c0_26, %c18, %c0_27] : memref<1x1x328x128xbf16, #tpu.memory_space<vmem>>, vector<1x1x288x128xbf16>
    %22 = vector.shape_cast %21 : vector<1x1x288x128xbf16> to vector<288x128xbf16>
    %c1_28 = arith.constant 1 : index
    %c0_29 = arith.constant 0 : index
    %c0_30 = arith.constant 0 : index
    %c0_31 = arith.constant 0 : index
    %23 = vector.load %arg4[%c1_28, %c0_29, %c0_30, %c0_31] : memref<3x3x128x128xbf16, #tpu.memory_space<vmem>>, vector<1x1x128x128xbf16>
    %24 = vector.shape_cast %23 : vector<1x1x128x128xbf16> to vector<128x128xbf16>
    %cst_32 = arith.constant dense<0.000000e+00> : vector<288x128xf32>
    %25 = tpu.matmul %22, %24, %cst_32 {dimension_numbers = #tpu.dot_dimension_numbers<[1], [0], [0], [1], [0, 0, 1, 1], [], []>} : vector<288x128xbf16>, vector<128x128xbf16>, vector<288x128xf32> -> vector<288x128xf32>
    %26 = arith.addf %20, %25 : vector<288x128xf32>
    %c0_33 = arith.constant 0 : index
    %c0_34 = arith.constant 0 : index
    %c19 = arith.constant 19 : index
    %c0_35 = arith.constant 0 : index
    %27 = vector.load %arg3[%c0_33, %c0_34, %c19, %c0_35] : memref<1x1x328x128xbf16, #tpu.memory_space<vmem>>, vector<1x1x288x128xbf16>
    %28 = vector.shape_cast %27 : vector<1x1x288x128xbf16> to vector<288x128xbf16>
    %c1_36 = arith.constant 1 : index
    %c1_37 = arith.constant 1 : index
    %c0_38 = arith.constant 0 : index
    %c0_39 = arith.constant 0 : index
    %29 = vector.load %arg4[%c1_36, %c1_37, %c0_38, %c0_39] : memref<3x3x128x128xbf16, #tpu.memory_space<vmem>>, vector<1x1x128x128xbf16>
    %30 = vector.shape_cast %29 : vector<1x1x128x128xbf16> to vector<128x128xbf16>
    %cst_40 = arith.constant dense<0.000000e+00> : vector<288x128xf32>
    %31 = tpu.matmul %28, %30, %cst_40 {dimension_numbers = #tpu.dot_dimension_numbers<[1], [0], [0], [1], [0, 0, 1, 1], [], []>} : vector<288x128xbf16>, vector<128x128xbf16>, vector<288x128xf32> -> vector<288x128xf32>
    %32 = arith.addf %26, %31 : vector<288x128xf32>
    %c0_41 = arith.constant 0 : index
    %c0_42 = arith.constant 0 : index
    %c20 = arith.constant 20 : index
    %c0_43 = arith.constant 0 : index
    %33 = vector.load %arg3[%c0_41, %c0_42, %c20, %c0_43] : memref<1x1x328x128xbf16, #tpu.memory_space<vmem>>, vector<1x1x288x128xbf16>
    %34 = vector.shape_cast %33 : vector<1x1x288x128xbf16> to vector<288x128xbf16>
    %c1_44 = arith.constant 1 : index
    %c2_45 = arith.constant 2 : index
    %c0_46 = arith.constant 0 : index
    %c0_47 = arith.constant 0 : index
    %35 = vector.load %arg4[%c1_44, %c2_45, %c0_46, %c0_47] : memref<3x3x128x128xbf16, #tpu.memory_space<vmem>>, vector<1x1x128x128xbf16>
    %36 = vector.shape_cast %35 : vector<1x1x128x128xbf16> to vector<128x128xbf16>
    %cst_48 = arith.constant dense<0.000000e+00> : vector<288x128xf32>
    %37 = tpu.matmul %34, %36, %cst_48 {dimension_numbers = #tpu.dot_dimension_numbers<[1], [0], [0], [1], [0, 0, 1, 1], [], []>} : vector<288x128xbf16>, vector<128x128xbf16>, vector<288x128xf32> -> vector<288x128xf32>
    %38 = arith.addf %32, %37 : vector<288x128xf32>
    %c0_49 = arith.constant 0 : index
    %c0_50 = arith.constant 0 : index
    %c36 = arith.constant 36 : index
    %c0_51 = arith.constant 0 : index
    %39 = vector.load %arg3[%c0_49, %c0_50, %c36, %c0_51] : memref<1x1x328x128xbf16, #tpu.memory_space<vmem>>, vector<1x1x288x128xbf16>
    %40 = vector.shape_cast %39 : vector<1x1x288x128xbf16> to vector<288x128xbf16>
    %c2_52 = arith.constant 2 : index
    %c0_53 = arith.constant 0 : index
    %c0_54 = arith.constant 0 : index
    %c0_55 = arith.constant 0 : index
    %41 = vector.load %arg4[%c2_52, %c0_53, %c0_54, %c0_55] : memref<3x3x128x128xbf16, #tpu.memory_space<vmem>>, vector<1x1x128x128xbf16>
    %42 = vector.shape_cast %41 : vector<1x1x128x128xbf16> to vector<128x128xbf16>
    %cst_56 = arith.constant dense<0.000000e+00> : vector<288x128xf32>
    %43 = tpu.matmul %40, %42, %cst_56 {dimension_numbers = #tpu.dot_dimension_numbers<[1], [0], [0], [1], [0, 0, 1, 1], [], []>} : vector<288x128xbf16>, vector<128x128xbf16>, vector<288x128xf32> -> vector<288x128xf32>
    %44 = arith.addf %38, %43 : vector<288x128xf32>
    %c0_57 = arith.constant 0 : index
    %c0_58 = arith.constant 0 : index
    %c37 = arith.constant 37 : index
    %c0_59 = arith.constant 0 : index
    %45 = vector.load %arg3[%c0_57, %c0_58, %c37, %c0_59] : memref<1x1x328x128xbf16, #tpu.memory_space<vmem>>, vector<1x1x288x128xbf16>
    %46 = vector.shape_cast %45 : vector<1x1x288x128xbf16> to vector<288x128xbf16>
    %c2_60 = arith.constant 2 : index
    %c1_61 = arith.constant 1 : index
    %c0_62 = arith.constant 0 : index
    %c0_63 = arith.constant 0 : index
    %47 = vector.load %arg4[%c2_60, %c1_61, %c0_62, %c0_63] : memref<3x3x128x128xbf16, #tpu.memory_space<vmem>>, vector<1x1x128x128xbf16>
    %48 = vector.shape_cast %47 : vector<1x1x128x128xbf16> to vector<128x128xbf16>
    %cst_64 = arith.constant dense<0.000000e+00> : vector<288x128xf32>
    %49 = tpu.matmul %46, %48, %cst_64 {dimension_numbers = #tpu.dot_dimension_numbers<[1], [0], [0], [1], [0, 0, 1, 1], [], []>} : vector<288x128xbf16>, vector<128x128xbf16>, vector<288x128xf32> -> vector<288x128xf32>
    %50 = arith.addf %44, %49 : vector<288x128xf32>
    %c0_65 = arith.constant 0 : index
    %c0_66 = arith.constant 0 : index
    %c38 = arith.constant 38 : index
    %c0_67 = arith.constant 0 : index
    %51 = vector.load %arg3[%c0_65, %c0_66, %c38, %c0_67] : memref<1x1x328x128xbf16, #tpu.memory_space<vmem>>, vector<1x1x288x128xbf16>
    %52 = vector.shape_cast %51 : vector<1x1x288x128xbf16> to vector<288x128xbf16>
    %c2_68 = arith.constant 2 : index
    %c2_69 = arith.constant 2 : index
    %c0_70 = arith.constant 0 : index
    %c0_71 = arith.constant 0 : index
    %53 = vector.load %arg4[%c2_68, %c2_69, %c0_70, %c0_71] : memref<3x3x128x128xbf16, #tpu.memory_space<vmem>>, vector<1x1x128x128xbf16>
    %54 = vector.shape_cast %53 : vector<1x1x128x128xbf16> to vector<128x128xbf16>
    %cst_72 = arith.constant dense<0.000000e+00> : vector<288x128xf32>
    %55 = tpu.matmul %52, %54, %cst_72 {dimension_numbers = #tpu.dot_dimension_numbers<[1], [0], [0], [1], [0, 0, 1, 1], [], []>} : vector<288x128xbf16>, vector<128x128xbf16>, vector<288x128xf32> -> vector<288x128xf32>
    %56 = arith.addf %50, %55 : vector<288x128xf32>
    %cst_73 = arith.constant 0.000000e+00 : f32
    %57 = vector.broadcast %cst_73 : f32 to vector<288x128xf32>
    %58 = arith.maximumf %56, %57 : vector<288x128xf32>
    %59 = arith.truncf %58 : vector<288x128xf32> to vector<288x128xbf16>
    %60 = vector.shape_cast %59 : vector<288x128xbf16> to vector<1x1x288x128xbf16>
    %c0_74 = arith.constant 0 : index
    %c0_75 = arith.constant 0 : index
    %c0_76 = arith.constant 0 : index
    %c0_77 = arith.constant 0 : index
    %61 = vector.load %arg6[%c0_74, %c0_75, %c0_76, %c0_77] : memref<1x1x288x128xbf16, #tpu.memory_space<vmem>>, vector<1x1x288x128xbf16>
    tpu.vector_store %arg6[%c0_74, %c0_75, %c0_76, %c0_77], %60 {strides = array<i32>} : memref<1x1x288x128xbf16, #tpu.memory_space<vmem>>, vector<1x1x288x128xbf16>,
    return
  }
  func.func @transform_0(%arg0: i32, %arg1: i32, %arg2: i32) -> (i32, i32, i32, i32) {
    %c0_i32 = arith.constant 0 : i32
    %c0_i32_0 = arith.constant 0 : i32
    %c0_i32_1 = arith.constant 0 : i32
    return %arg1, %arg2, %c0_i32, %c0_i32_0 : i32, i32, i32, i32
  }
  func.func @transform_1(%arg0: i32, %arg1: i32, %arg2: i32) -> (i32, i32, i32, i32) {
    %c0_i32 = arith.constant 0 : i32
    %c0_i32_0 = arith.constant 0 : i32
    %c0_i32_1 = arith.constant 0 : i32
    %c0_i32_2 = arith.constant 0 : i32
    return %c0_i32, %c0_i32_0, %c0_i32_1, %arg0 : i32, i32, i32, i32
  }
  func.func @transform_2(%arg0: i32, %arg1: i32, %arg2: i32) -> (i32, i32) {
    %c0_i32 = arith.constant 0 : i32
    %c0_i32_0 = arith.constant 0 : i32
    return %c0_i32, %arg0 : i32, i32
  }
  func.func @transform_3(%arg0: i32, %arg1: i32, %arg2: i32) -> (i32, i32, i32, i32) {
    %c0_i32 = arith.constant 0 : i32
    %c0_i32_0 = arith.constant 0 : i32
    return %arg1, %arg2, %c0_i32, %arg0 : i32, i32, i32, i32
  }
}

</mosaic_0001>

<llo_original>
// kernel: tpu_custom_call.1
$region0: #{tpu_custom_call.1}
  #allocation0 [shape = 'u32[]', space=smem, size = 0x4, offset = 0x4, fixed_abs, tag = 'smem constant byte address 0x4 - core index']
  #allocation1 [shape = 'u32[144,128]{1,0:T(1,128)}', space=vmem, size = 0x12000, scoped, tag = 'internal scratch']
  %s0 = inlined_call_operand.hbm [shape: bf16[2,1,328,128], index: 0, kind: input, shape index: {}]
  %s1 = inlined_call_operand.hbm [shape: bf16[3,3,128,128], index: 1, kind: input, shape index: {}]
  %s2 = inlined_call_operand.vmem [shape: f32[1,128], index: 2, kind: input, shape index: {}]
  %s3 = inlined_call_operand.hbm [shape: bf16[2,1,288,128], index: 3, kind: output, shape index: {}]
  %s4 = sld [smem:[#allocation0]]
  $region53: #{tpu_custom_call.1} parent=0
    _
  %s6 = ssub.s32 1, %s4
  %s7 = scalar_select 0, %s6, %s4
  $region1: #{tpu_custom_call.1} parent=0
    #allocation2 [shape = 'u8[167936]{0}', space=vmem, size = 0x29000, scoped, tag = 'input window, operand 0']
    #allocation3 [shape = 's32[2]{0}', space=sflag, size = 0x8, scoped, tag = 'scoped memory for tpu_custom_call.1']
    #allocation4 [shape = 's32[2]{0}', space=sflag, size = 0x8, scoped, tag = 'scoped memory for tpu_custom_call.1']
    #allocation5 [shape = 'u8[294912]{0}', space=vmem, size = 0x48000, scoped, tag = 'input window, operand 1, single buffered']
    #allocation6 [shape = 's32[1]{0}', space=sflag, size = 0x4, scoped, tag = 'scoped memory for tpu_custom_call.1']
    #allocation7 [shape = 'u8[147456]{0}', space=vmem, size = 0x24000, scoped, tag = 'output window, operand 0']
    %8 = vsyncpa [#allocation3], 0
    %s9 = scalar_lea.sflag [#allocation3], 1
    %10 = vsyncpa %s9, 0
    %11 = vsyncpa [#allocation6], 0
    %12 = vsyncpa [#allocation4], 0
    %s13 = scalar_lea.sflag [#allocation4], 1
    %14 = vsyncpa %s13, 0
    loop: start=0, step=1, limit=4
    $region2: #{tpu_custom_call.1} parent=1 // loop_pre_header
      _
    $region3: #{tpu_custom_call.1} parent=1 // loop_header
      %s16 = sphi 0, %s20
      %p17 = scmp.ge.s32.totalorder %s16, 4
      %s23 = sphi 0, %s42
      %s24 = sphi 0, %s38
      %s25 = sphi 0, %s34
      %s26 = sphi 0, %s23
      %s27 = sphi 0, %s24
      %s28 = sphi 0, %s25
      %s29 = sphi 0, %s26
      %s30 = sphi 0, %s27
      %s31 = sphi 0, %s28
      %s47 = sphi 0, %s49
      %s50 = sphi 0, %s47
      %s51 = sphi 0, %s50
      %s67 = sphi 0, %s51
      %s73 = sphi 0, %s75
      %s76 = sphi 0, %s73
      %s77 = sphi 0, %s76
      %s93 = sphi 0, %s77
      %s99 = sphi 0, %s101
      %s102 = sphi 0, %s99
      %s103 = sphi 0, %s102
      %s119 = sphi 0, %s103
      %s129 = sphi 0, %s131
      %s132 = sphi 0, %s129
      %s133 = sphi 0, %s132
      %s149 = sphi 0, %s133
    $region4: #{tpu_custom_call.1} parent=1 // loop_header_branch
      %19 = sbr.rel (%p17) target = $region8
    $region5: #{tpu_custom_call.1} parent=1 // loop_body
      %s21 = ssub.s32 %s16, 1
      %s22 = ssub.s32 %s16, 2
      %s32 = sadd.s32 1, %s25
      %p33 = scmp.ge.s32.totalorder %s32, 1
      %s34 = scalar_select %p33, 0, %s32
      %s35 = sadd.s32 1, %s24
      %s36 = scalar_select %p33, %s35, %s24
      %p37 = scmp.ge.s32.totalorder %s36, 2
      %s38 = scalar_select %p37, 0, %s36
      %s39 = sadd.s32 1, %s23
      %s40 = scalar_select %p37, %s39, %s23
      %p41 = scmp.ge.s32.totalorder %s40, 1
      %s42 = scalar_select %p41, 0, %s40
      %s43 = ssub.s32 %s24, %s38
      %s44 = ssub.s32 %s25, %s34
      %s45 = sor.u32 %s43, %s44
      %p46 = scmp.eq.s32.totalorder %s45, 0
      %s48 = sadd.s32 %s47, 1
      %s49 = scalar_select %p46, %s47, %s48
      %p52 = pneg %p46
      %p53 = scmp.eq.s32.totalorder %s16, 1
      %p54 = por %p52, %p53
      %p55 = scmp.ne.s32.totalorder %s47, %s50
      %p56 = scmp.eq.s32.totalorder %s16, 0
      %p57 = por %p55, %p56
      %p58 = scmp.ne.s32.totalorder %s47, %s50
      %p59 = scmp.eq.s32.totalorder %s21, 1
      %p60 = por %p58, %p59
      %p61 = scmp.ne.s32.totalorder %s50, %s51
      %p62 = scmp.eq.s32.totalorder %s21, 0
      %p63 = por %p61, %p62
      %p64 = scmp.ne.s32.totalorder %s50, %s51
      %p65 = scmp.eq.s32.totalorder %s22, 1
      %p66 = por %p64, %p65
      %p68 = scmp.ne.s32.totalorder %s51, %s67
      %p69 = scmp.eq.s32.totalorder %s22, 0
      %p70 = por %p68, %p69
      %s71 = ssub.s32 %s23, %s42
      %p72 = scmp.eq.s32.totalorder %s71, 0
      %s74 = sadd.s32 %s73, 1
      %s75 = scalar_select %p72, %s73, %s74
      %p78 = pneg %p72
      %p79 = scmp.eq.s32.totalorder %s16, 1
      %p80 = por %p78, %p79
      %p81 = scmp.ne.s32.totalorder %s73, %s76
      %p82 = scmp.eq.s32.totalorder %s16, 0
      %p83 = por %p81, %p82
      %p84 = scmp.ne.s32.totalorder %s73, %s76
      %p85 = scmp.eq.s32.totalorder %s21, 1
      %p86 = por %p84, %p85
      %p87 = scmp.ne.s32.totalorder %s76, %s77
      %p88 = scmp.eq.s32.totalorder %s21, 0
      %p89 = por %p87, %p88
      %p90 = scmp.ne.s32.totalorder %s76, %s77
      %p91 = scmp.eq.s32.totalorder %s22, 1
      %p92 = por %p90, %p91
      %p94 = scmp.ne.s32.totalorder %s77, %s93
      %p95 = scmp.eq.s32.totalorder %s22, 0
      %p96 = por %p94, %p95
      %s97 = ssub.s32 %s23, %s42
      %p98 = scmp.eq.s32.totalorder %s97, 0
      %s100 = sadd.s32 %s99, 1
      %s101 = scalar_select %p98, %s99, %s100
      %p104 = pneg %p98
      %p105 = scmp.eq.s32.totalorder %s16, 1
      %p106 = por %p104, %p105
      %p107 = scmp.ne.s32.totalorder %s99, %s102
      %p108 = scmp.eq.s32.totalorder %s16, 0
      %p109 = por %p107, %p108
      %p110 = scmp.ne.s32.totalorder %s99, %s102
      %p111 = scmp.eq.s32.totalorder %s21, 1
      %p112 = por %p110, %p111
      %p113 = scmp.ne.s32.totalorder %s102, %s103
      %p114 = scmp.eq.s32.totalorder %s21, 0
      %p115 = por %p113, %p114
      %p116 = scmp.ne.s32.totalorder %s102, %s103
      %p117 = scmp.eq.s32.totalorder %s22, 1
      %p118 = por %p116, %p117
      %p120 = scmp.ne.s32.totalorder %s103, %s119
      %p121 = scmp.eq.s32.totalorder %s22, 0
      %p122 = por %p120, %p121
      %s123 = ssub.s32 %s24, %s38
      %s124 = ssub.s32 %s25, %s34
      %s125 = sor.u32 %s123, %s124
      %s126 = ssub.s32 %s23, %s42
      %s127 = sor.u32 %s125, %s126
      %p128 = scmp.eq.s32.totalorder %s127, 0
      %s130 = sadd.s32 %s129, 1
      %s131 = scalar_select %p128, %s129, %s130
      %p134 = pneg %p128
      %p135 = scmp.eq.s32.totalorder %s16, 1
      %p136 = por %p134, %p135
      %p137 = scmp.ne.s32.totalorder %s129, %s132
      %p138 = scmp.eq.s32.totalorder %s16, 0
      %p139 = por %p137, %p138
      %p140 = scmp.ne.s32.totalorder %s129, %s132
      %p141 = scmp.eq.s32.totalorder %s21, 1
      %p142 = por %p140, %p141
      %p143 = scmp.ne.s32.totalorder %s132, %s133
      %p144 = scmp.eq.s32.totalorder %s21, 0
      %p145 = por %p143, %p144
      %p146 = scmp.ne.s32.totalorder %s132, %s133
      %p147 = scmp.eq.s32.totalorder %s22, 1
      %p148 = por %p146, %p147
      %p150 = scmp.ne.s32.totalorder %s133, %s149
      %p151 = scmp.eq.s32.totalorder %s22, 0
      %p152 = por %p150, %p151
      %p153 = scmp.le.s32.totalorder 1, %s16
      %p154 = scmp.lt.s32.totalorder %s16, 3
      %p155 = pnand %p153, %p154
      %p156 = pneg %p155
      // Predicated region
      $region9: #{tpu_custom_call.1} parent=5 // pred_check
        _
      $region10: #{tpu_custom_call.1} parent=5 // pred_check_branch
        %158 = sbr.rel (%p155) target = $region12
      $region11: #{tpu_custom_call.1} parent=5 // pred_region
        %s159 = ssub.s32 %s16, 1
        // Predicated region
        $region13: #{tpu_custom_call.1} parent=11 // pred_check
          %p160 = pneg %p89
        $region14: #{tpu_custom_call.1} parent=11 // pred_check_branch
          %162 = sbr.rel (%p160) target = $region16
        $region15: #{tpu_custom_call.1} parent=11 // pred_region
          %s164 = ssub.s32 9216, 9216
          %165 = vsyncadd [#allocation6], %s164
          %s166 = smul.addr %s26, 64
          %s167 = scalar_lea.hbm %s1, %s166
          %s168 = sshll.u32 [#allocation5], 4
          %s169 = int_to_ptr.vmem [resolvable:$true] %s168
          %174 = dma.hbm_to_vmem [thread:$0]  %s167, 9216, %s169, [#allocation6], 64, 64, 4
        $region16: #{tpu_custom_call.1} parent=11 // pred_fallthru
          _
        // Predicated region
        $region17: #{tpu_custom_call.1} parent=11 // pred_check
          %p175 = pneg %p115
        $region18: #{tpu_custom_call.1} parent=11 // pred_check_branch
          %177 = sbr.rel (%p175) target = $region20
        $region19: #{tpu_custom_call.1} parent=11 // pred_region
          %p178 = scmp.lt.s32.totalorder %s26, 0
          %s179 = scalar_select %p178, %s26, 0
          %s180 = scalar_lea.vmem %s2, %s179
        $region20: #{tpu_custom_call.1} parent=11 // pred_fallthru
          _
      $region12: #{tpu_custom_call.1} parent=5 // pred_fallthru
        _
      %p181 = scmp.lt.s32.totalorder %s16, 2
      // Predicated region
      $region21: #{tpu_custom_call.1} parent=5 // pred_check
        %p182 = pneg %p181
      $region22: #{tpu_custom_call.1} parent=5 // pred_check_branch
        %184 = sbr.rel (%p182) target = $region24
      $region23: #{tpu_custom_call.1} parent=5 // pred_region
        // Predicated region
        $region25: #{tpu_custom_call.1} parent=23 // pred_check
          %p185 = pneg %p57
        $region26: #{tpu_custom_call.1} parent=23 // pred_check_branch
          %187 = sbr.rel (%p185) target = $region28
        $region27: #{tpu_custom_call.1} parent=23 // pred_region
          %s188 = sand.u32 %s47, 1
          %s189 = scalar_lea.sflag [#allocation3], %s188
          %s190 = sand.u32 %s47, 1
          %s191 = smul.addr %s190, 164
          %s192 = scalar_lea.vmem [#allocation2], %s191
          %s194 = ssub.s32 2624, 2624
          %195 = vsyncadd %s189, %s194
          %s196 = smul.addr %s25, 41
          %s197 = smul.addr %s24, 41
          %s198 = sadd.s32 %s196, %s197
          %s199 = smul.addr %s198, 64
          %s200 = scalar_lea.hbm %s0, %s199
          %s201 = sshll.u32 %s192, 4
          %s202 = int_to_ptr.vmem [resolvable:$true] %s201
          %207 = dma.hbm_to_vmem [thread:$0]  %s200, 2624, %s202, %s189, 64, 64, 4
        $region28: #{tpu_custom_call.1} parent=23 // pred_fallthru
          _
      $region24: #{tpu_custom_call.1} parent=5 // pred_fallthru
        _
      %p208 = scmp.le.s32.totalorder 1, %s16
      %p209 = scmp.lt.s32.totalorder %s16, 3
      %p210 = pnand %p208, %p209
      %p211 = pneg %p210
      // Predicated region
      $region29: #{tpu_custom_call.1} parent=5 // pred_check
        _
      $region30: #{tpu_custom_call.1} parent=5 // pred_check_branch
        %213 = sbr.rel (%p210) target = $region32
      $region31: #{tpu_custom_call.1} parent=5 // pred_region
        %s214 = ssub.s32 %s16, 1
        %s215 = sand.u32 %s50, 1
        %s216 = scalar_lea.sflag [#allocation3], %s215
        %s217 = sand.u32 %s50, 1
        %s218 = smul.addr %s217, 164
        %s219 = scalar_lea.vmem [#allocation2], %s218
        // Predicated region
        $region33: #{tpu_custom_call.1} parent=31 // pred_check
          %p220 = pneg %p63
        $region34: #{tpu_custom_call.1} parent=31 // pred_check_branch
          %222 = sbr.rel (%p220) target = $region36
        $region35: #{tpu_custom_call.1} parent=31 // pred_region
          %223 = dma.done %s216, 2624
        $region36: #{tpu_custom_call.1} parent=31 // pred_fallthru
          _
        // Predicated region
        $region37: #{tpu_custom_call.1} parent=31 // pred_check
          %p224 = pneg %p89
        $region38: #{tpu_custom_call.1} parent=31 // pred_check_branch
          %226 = sbr.rel (%p224) target = $region40
        $region39: #{tpu_custom_call.1} parent=31 // pred_region
          %227 = dma.done [#allocation6], 9216
        $region40: #{tpu_custom_call.1} parent=31 // pred_fallthru
          _
        %s228 = sand.u32 %s50, 1
        %s229 = scalar_lea.sflag [#allocation3], %s228
        %s230 = sand.u32 %s50, 1
        %s231 = smul.addr %s230, 164
        %s232 = scalar_lea.vmem [#allocation2], %s231
        %p233 = pneg %p63
        %p234 = pneg %p60
        %p235 = pneg %p89
        %p236 = pneg %p86
        %p237 = scmp.lt.s32.totalorder %s26, 0
        %s238 = scalar_select %p237, %s26, 0
        %s239 = scalar_lea.vmem %s2, %s238
        %p240 = pneg %p115
        %p241 = pneg %p112
        %p242 = pneg %p145
        %p243 = pneg %p142
        %s244 = sand.u32 %s132, 1
        %s245 = scalar_lea.sflag [#allocation4], %s244
        %s246 = sand.u32 %s132, 1
        %s247 = smul.addr %s246, 144
        %s248 = scalar_lea.vmem [#allocation7], %s247
        %p249 = scmp.lt.s32.totalorder %s26, 0
        %s250 = scalar_select %p249, %s26, 0
        %s251 = scalar_lea.vmem %s2, %s250
        %v253 = vld [vmem:[%s251] sm:$0x1]
        %v255 = vlaneseq
        %v256 = vshrl.u32 %v255, 7
        %v257 = vsub.s32 0, %v256
        %v258 = vrot.slane %v253, %v257
        %v260 = vld [vmem:[%s219] sm:$0xf]
        %v261 = vld [vmem:[%s219 + $0x4] sm:$0xf]
        %v262 = vld [vmem:[%s219 + $0x8] sm:$0xf]
        %v263 = vld [vmem:[%s219 + $0xc] sm:$0xf]
        %v264 = vld [vmem:[%s219 + $0x10] sm:$0xf]
        %v265 = vld [vmem:[%s219 + $0x14] sm:$0xf]
        %v266 = vld [vmem:[%s219 + $0x18] sm:$0xf]
        %v267 = vld [vmem:[%s219 + $0x1c] sm:$0xf]
        %v268 = vld [vmem:[%s219 + $0x20] sm:$0xf]
        %v269 = vld [vmem:[%s219 + $0x24] sm:$0xf]
        %v270 = vld [vmem:[%s219 + $0x28] sm:$0xf]
        %v271 = vld [vmem:[%s219 + $0x2c] sm:$0xf]
        %v272 = vld [vmem:[%s219 + $0x30] sm:$0xf]
        %v273 = vld [vmem:[%s219 + $0x34] sm:$0xf]
        %v274 = vld [vmem:[%s219 + $0x38] sm:$0xf]
        %v275 = vld [vmem:[%s219 + $0x3c] sm:$0xf]
        %v276 = vld [vmem:[%s219 + $0x40] sm:$0xf]
        %v277 = vld [vmem:[%s219 + $0x44] sm:$0xf]
        %v278 = vld [vmem:[%s219 + $0x48] sm:$0xf]
        %v279 = vld [vmem:[%s219 + $0x4c] sm:$0xf]
        %v280 = vld [vmem:[%s219 + $0x50] sm:$0xf]
        %v281 = vld [vmem:[%s219 + $0x54] sm:$0xf]
        %v282 = vld [vmem:[%s219 + $0x58] sm:$0xf]
        %v283 = vld [vmem:[%s219 + $0x5c] sm:$0xf]
        %v284 = vld [vmem:[%s219 + $0x60] sm:$0xf]
        %v285 = vld [vmem:[%s219 + $0x64] sm:$0xf]
        %v286 = vld [vmem:[%s219 + $0x68] sm:$0xf]
        %v287 = vld [vmem:[%s219 + $0x6c] sm:$0xf]
        %v288 = vld [vmem:[%s219 + $0x70] sm:$0xf]
        %v289 = vld [vmem:[%s219 + $0x74] sm:$0xf]
        %v290 = vld [vmem:[%s219 + $0x78] sm:$0xf]
        %v291 = vld [vmem:[%s219 + $0x7c] sm:$0xf]
        %v292 = vld [vmem:[%s219 + $0x80] sm:$0xf]
        %v293 = vld [vmem:[%s219 + $0x84] sm:$0xf]
        %v294 = vld [vmem:[%s219 + $0x88] sm:$0xf]
        %v295 = vld [vmem:[%s219 + $0x8c] sm:$0xf]
        %v296 = vld [vmem:[#allocation5] sm:$0xf]
        %v297 = vld [vmem:[#allocation5 + $0x4] sm:$0xf]
        %v298 = vld [vmem:[#allocation5 + $0x8] sm:$0xf]
        %v299 = vld [vmem:[#allocation5 + $0xc] sm:$0xf]
        %v300 = vld [vmem:[#allocation5 + $0x10] sm:$0xf]
        %v301 = vld [vmem:[#allocation5 + $0x14] sm:$0xf]
        %v302 = vld [vmem:[#allocation5 + $0x18] sm:$0xf]
        %v303 = vld [vmem:[#allocation5 + $0x1c] sm:$0xf]
        %v304 = vld [vmem:[#allocation5 + $0x20] sm:$0xf]
        %v305 = vld [vmem:[#allocation5 + $0x24] sm:$0xf]
        %v306 = vld [vmem:[#allocation5 + $0x28] sm:$0xf]
        %v307 = vld [vmem:[#allocation5 + $0x2c] sm:$0xf]
        %v308 = vld [vmem:[#allocation5 + $0x30] sm:$0xf]
        %v309 = vld [vmem:[#allocation5 + $0x34] sm:$0xf]
        %v310 = vld [vmem:[#allocation5 + $0x38] sm:$0xf]
        %v311 = vld [vmem:[#allocation5 + $0x3c] sm:$0xf]
        %v348 = vunpack.c.l.b16 %v260
        %v349 = vunpack.c.l.b16 %v261
        %v350 = vunpack.c.l.b16 %v262
        %v351 = vunpack.c.l.b16 %v263
        %v352 = vunpack.c.l.b16 %v264
        %v353 = vunpack.c.l.b16 %v265
        %v354 = vunpack.c.l.b16 %v266
        %v355 = vunpack.c.l.b16 %v267
        %v356 = vunpack.c.l.b16 %v268
        %v357 = vunpack.c.l.b16 %v269
        %v358 = vunpack.c.l.b16 %v270
        %v359 = vunpack.c.l.b16 %v271
        %v360 = vunpack.c.l.b16 %v272
        %v361 = vunpack.c.l.b16 %v273
        %v362 = vunpack.c.l.b16 %v274
        %v363 = vunpack.c.l.b16 %v275
        %v364 = vunpack.c.l.b16 %v276
        %v365 = vunpack.c.l.b16 %v277
        %v366 = vunpack.c.l.b16 %v278
        %v367 = vunpack.c.l.b16 %v279
        %v368 = vunpack.c.l.b16 %v280
        %v369 = vunpack.c.l.b16 %v281
        %v370 = vunpack.c.l.b16 %v282
        %v371 = vunpack.c.l.b16 %v283
        %v372 = vunpack.c.l.b16 %v284
        %v373 = vunpack.c.l.b16 %v285
        %v374 = vunpack.c.l.b16 %v286
        %v375 = vunpack.c.l.b16 %v287
        %v376 = vunpack.c.l.b16 %v288
        %v377 = vunpack.c.l.b16 %v289
        %v378 = vunpack.c.l.b16 %v290
        %v379 = vunpack.c.l.b16 %v291
        %v380 = vunpack.c.l.b16 %v292
        %v381 = vunpack.c.l.b16 %v293
        %v382 = vunpack.c.l.b16 %v294
        %v383 = vunpack.c.l.b16 %v295
        %v384 = vpack.c.b16 %v349, %v348
        %v385 = vpack.c.b16 %v351, %v350
        %v386 = vpack.c.b16 %v353, %v352
        %v387 = vpack.c.b16 %v355, %v354
        %v388 = vpack.c.b16 %v357, %v356
        %v389 = vpack.c.b16 %v359, %v358
        %v390 = vpack.c.b16 %v361, %v360
        %v391 = vpack.c.b16 %v363, %v362
        %v392 = vpack.c.b16 %v365, %v364
        %v393 = vpack.c.b16 %v367, %v366
        %v394 = vpack.c.b16 %v369, %v368
        %v395 = vpack.c.b16 %v371, %v370
        %v396 = vpack.c.b16 %v373, %v372
        %v397 = vpack.c.b16 %v375, %v374
        %v398 = vpack.c.b16 %v377, %v376
        %v399 = vpack.c.b16 %v379, %v378
        %v400 = vpack.c.b16 %v381, %v380
        %v401 = vpack.c.b16 %v383, %v382
        %v436 = vunpack.c.l.b16 %v296
        %v437 = vunpack.c.l.b16 %v297
        %v438 = vunpack.c.l.b16 %v298
        %v439 = vunpack.c.l.b16 %v299
        %v440 = vunpack.c.l.b16 %v300
        %v441 = vunpack.c.l.b16 %v301
        %v442 = vunpack.c.l.b16 %v302
        %v443 = vunpack.c.l.b16 %v303
        %v444 = vunpack.c.l.b16 %v304
        %v445 = vunpack.c.l.b16 %v305
        %v446 = vunpack.c.l.b16 %v306
        %v447 = vunpack.c.l.b16 %v307
        %v448 = vunpack.c.l.b16 %v308
        %v449 = vunpack.c.l.b16 %v309
        %v450 = vunpack.c.l.b16 %v310
        %v451 = vunpack.c.l.b16 %v311
        %v452 = vpack.c.b16 %v437, %v436
        %v453 = vpack.c.b16 %v439, %v438
        %v454 = vpack.c.b16 %v441, %v440
        %v455 = vpack.c.b16 %v443, %v442
        %v456 = vpack.c.b16 %v445, %v444
        %v457 = vpack.c.b16 %v447, %v446
        %v458 = vpack.c.b16 %v449, %v448
        %v459 = vpack.c.b16 %v451, %v450
        %468 = vmatprep.subr.bf16.mxu0 0
        %469 = vmatpush1.bf16.msra.mxu0 %v452
        %470 = vmatprep.subr.bf16.mxu0 0
        %471 = vmatpush1.bf16.msra.mxu0 %v453
        %472 = vmatprep.subr.bf16.mxu0 0
        %473 = vmatpush1.bf16.msra.mxu0 %v454
        %474 = vmatprep.subr.bf16.mxu0 0
        %475 = vmatpush1.bf16.msra.mxu0 %v455
        %476 = vmatprep.subr.bf16.mxu0 0
        %477 = vmatpush1.bf16.msra.mxu0 %v456
        %478 = vmatprep.subr.bf16.mxu0 0
        %479 = vmatpush1.bf16.msra.mxu0 %v457
        %480 = vmatprep.subr.bf16.mxu0 0
        %481 = vmatpush1.bf16.msra.mxu0 %v458
        %482 = vmatprep.subr.bf16.mxu0 0
        %483 = vmatpush1.bf16.msra.mxu0 %v459
        %484 = vmatprep.subr.bf16.mxu0 0
        %485 = vmatpush1.bf16.msra.mxu0 0
        %486 = vmatprep.subr.bf16.mxu0 0
        %487 = vmatpush1.bf16.msra.mxu0 0
        %488 = vmatprep.subr.bf16.mxu0 0
        %489 = vmatpush1.bf16.msra.mxu0 0
        %490 = vmatprep.subr.bf16.mxu0 0
        %491 = vmatpush1.bf16.msra.mxu0 0
        %492 = vmatprep.subr.bf16.mxu0 0
        %493 = vmatpush1.bf16.msra.mxu0 0
        %494 = vmatprep.subr.bf16.mxu0 0
        %495 = vmatpush1.bf16.msra.mxu0 0
        %496 = vmatprep.subr.bf16.mxu0 0
        %497 = vmatpush1.bf16.msra.mxu0 0
        %498 = vmatprep.subr.bf16.mxu0 0
        %499 = vmatpush1.bf16.msra.mxu0 0
        %500 = vmatprep.mubr.bf16.mxu0 0
        %501 = vmatmul.mubr.bf16.gmra.mrb[0].mxu0 %v384
        %v502 = vpop.f32.mrb[0].mxu0
        %v503 = vadd.f32 0.0, %v502
        %v504 = vpop.f32.mrb[0].mxu0
        %v505 = vpop.f32.mrb[0].mxu0
        %v506 = vadd.f32 0.0, %v505
        %v507 = vpop.f32.mrb[0].mxu0
        %508 = vmatprep.mubr.bf16.mxu0 0
        %509 = vmatmul.mubr.bf16.gmra.mrb[0].mxu0 %v385
        %v510 = vpop.f32.mrb[0].mxu0
        %v511 = vadd.f32 0.0, %v510
        %v512 = vpop.f32.mrb[0].mxu0
        %v513 = vpop.f32.mrb[0].mxu0
        %v514 = vadd.f32 0.0, %v513
        %v515 = vpop.f32.mrb[0].mxu0
        %516 = vmatprep.mubr.bf16.mxu0 0
        %517 = vmatmul.mubr.bf16.gmra.mrb[0].mxu0 %v386
        %v518 = vpop.f32.mrb[0].mxu0
        %v519 = vadd.f32 0.0, %v518
        %v520 = vpop.f32.mrb[0].mxu0
        %v521 = vpop.f32.mrb[0].mxu0
        %v522 = vadd.f32 0.0, %v521
        %v523 = vpop.f32.mrb[0].mxu0
        %524 = vmatprep.mubr.bf16.mxu0 0
        %525 = vmatmul.mubr.bf16.gmra.mrb[0].mxu0 %v387
        %v526 = vpop.f32.mrb[0].mxu0
        %v527 = vadd.f32 0.0, %v526
        %v528 = vpop.f32.mrb[0].mxu0
        %v529 = vpop.f32.mrb[0].mxu0
        %v530 = vadd.f32 0.0, %v529
        %v531 = vpop.f32.mrb[0].mxu0
        %532 = vmatprep.mubr.bf16.mxu0 0
        %533 = vmatmul.mubr.bf16.gmra.mrb[0].mxu0 %v388
        %v534 = vpop.f32.mrb[0].mxu0
        %v535 = vadd.f32 0.0, %v534
        %v536 = vpop.f32.mrb[0].mxu0
        %v537 = vpop.f32.mrb[0].mxu0
        %v538 = vadd.f32 0.0, %v537
        %v539 = vpop.f32.mrb[0].mxu0
        %540 = vmatprep.mubr.bf16.mxu0 0
        %541 = vmatmul.mubr.bf16.gmra.mrb[0].mxu0 %v389
        %v542 = vpop.f32.mrb[0].mxu0
        %v543 = vadd.f32 0.0, %v542
        %v544 = vpop.f32.mrb[0].mxu0
        %v545 = vpop.f32.mrb[0].mxu0
        %v546 = vadd.f32 0.0, %v545
        %v547 = vpop.f32.mrb[0].mxu0
        %548 = vmatprep.mubr.bf16.mxu0 0
        %549 = vmatmul.mubr.bf16.gmra.mrb[0].mxu0 %v390
        %v550 = vpop.f32.mrb[0].mxu0
        %v551 = vadd.f32 0.0, %v550
        %v552 = vpop.f32.mrb[0].mxu0
        %v553 = vpop.f32.mrb[0].mxu0
        %v554 = vadd.f32 0.0, %v553
        %v555 = vpop.f32.mrb[0].mxu0
        %556 = vmatprep.mubr.bf16.mxu0 0
        %557 = vmatmul.mubr.bf16.gmra.mrb[0].mxu0 %v391
        %v558 = vpop.f32.mrb[0].mxu0
        %v559 = vadd.f32 0.0, %v558
        %v560 = vpop.f32.mrb[0].mxu0
        %v561 = vpop.f32.mrb[0].mxu0
        %v562 = vadd.f32 0.0, %v561
        %v563 = vpop.f32.mrb[0].mxu0
        %564 = vmatprep.mubr.bf16.mxu0 0
        %565 = vmatmul.mubr.bf16.gmra.mrb[0].mxu0 %v392
        %v566 = vpop.f32.mrb[0].mxu0
        %v567 = vadd.f32 0.0, %v566
        %v568 = vpop.f32.mrb[0].mxu0
        %v569 = vpop.f32.mrb[0].mxu0
        %v570 = vadd.f32 0.0, %v569
        %v571 = vpop.f32.mrb[0].mxu0
        %572 = vmatprep.mubr.bf16.mxu0 0
        %573 = vmatmul.mubr.bf16.gmra.mrb[0].mxu0 %v393
        %v574 = vpop.f32.mrb[0].mxu0
        %v575 = vadd.f32 0.0, %v574
        %v576 = vpop.f32.mrb[0].mxu0
        %v577 = vpop.f32.mrb[0].mxu0
        %v578 = vadd.f32 0.0, %v577
        %v579 = vpop.f32.mrb[0].mxu0
        %580 = vmatprep.mubr.bf16.mxu0 0
        %581 = vmatmul.mubr.bf16.gmra.mrb[0].mxu0 %v394
        %v582 = vpop.f32.mrb[0].mxu0
        %v583 = vadd.f32 0.0, %v582
        %v584 = vpop.f32.mrb[0].mxu0
        %v585 = vpop.f32.mrb[0].mxu0
        %v586 = vadd.f32 0.0, %v585
        %v587 = vpop.f32.mrb[0].mxu0
        %588 = vmatprep.mubr.bf16.mxu0 0
        %589 = vmatmul.mubr.bf16.gmra.mrb[0].mxu0 %v395
        %v590 = vpop.f32.mrb[0].mxu0
        %v591 = vadd.f32 0.0, %v590
        %v592 = vpop.f32.mrb[0].mxu0
        %v593 = vpop.f32.mrb[0].mxu0
        %v594 = vadd.f32 0.0, %v593
        %v595 = vpop.f32.mrb[0].mxu0
        %596 = vmatprep.mubr.bf16.mxu0 0
        %597 = vmatmul.mubr.bf16.gmra.mrb[0].mxu0 %v396
        %v598 = vpop.f32.mrb[0].mxu0
        %v599 = vadd.f32 0.0, %v598
        %v600 = vpop.f32.mrb[0].mxu0
        %v601 = vpop.f32.mrb[0].mxu0
        %v602 = vadd.f32 0.0, %v601
        %v603 = vpop.f32.mrb[0].mxu0
        %604 = vmatprep.mubr.bf16.mxu0 0
        %605 = vmatmul.mubr.bf16.gmra.mrb[0].mxu0 %v397
        %v606 = vpop.f32.mrb[0].mxu0
        %v607 = vadd.f32 0.0, %v606
        %v608 = vpop.f32.mrb[0].mxu0
        %v609 = vpop.f32.mrb[0].mxu0
        %v610 = vadd.f32 0.0, %v609
        %v611 = vpop.f32.mrb[0].mxu0
        %612 = vmatprep.mubr.bf16.mxu0 0
        %613 = vmatmul.mubr.bf16.gmra.mrb[0].mxu0 %v398
        %v614 = vpop.f32.mrb[0].mxu0
        %v615 = vadd.f32 0.0, %v614
        %v616 = vpop.f32.mrb[0].mxu0
        %v617 = vpop.f32.mrb[0].mxu0
        %v618 = vadd.f32 0.0, %v617
        %v619 = vpop.f32.mrb[0].mxu0
        %620 = vmatprep.mubr.bf16.mxu0 0
        %621 = vmatmul.mubr.bf16.gmra.mrb[0].mxu0 %v399
        %v622 = vpop.f32.mrb[0].mxu0
        %v623 = vadd.f32 0.0, %v622
        %v624 = vpop.f32.mrb[0].mxu0
        %v625 = vpop.f32.mrb[0].mxu0
        %v626 = vadd.f32 0.0, %v625
        %v627 = vpop.f32.mrb[0].mxu0
        %628 = vmatprep.mubr.bf16.mxu0 0
        %629 = vmatmul.mubr.bf16.gmra.mrb[0].mxu0 %v400
        %v630 = vpop.f32.mrb[0].mxu0
        %v631 = vadd.f32 0.0, %v630
        %v632 = vpop.f32.mrb[0].mxu0
        %v633 = vpop.f32.mrb[0].mxu0
        %v634 = vadd.f32 0.0, %v633
        %v635 = vpop.f32.mrb[0].mxu0
        %636 = vmatprep.mubr.bf16.mxu0 0
        %637 = vmatmul.mubr.bf16.gmra.mrb[0].mxu0 %v401
        %v638 = vpop.f32.mrb[0].mxu0
        %v639 = vadd.f32 0.0, %v638
        %v640 = vpop.f32.mrb[0].mxu0
        %v641 = vpop.f32.mrb[0].mxu0
        %v642 = vadd.f32 0.0, %v641
        %v643 = vpop.f32.mrb[0].mxu0
        %644 = vdwg.mxu0
        %v645 = vadd.f32 %v258, %v503
        %v646 = vadd.f32 %v258, %v506
        %v647 = vadd.f32 %v258, %v511
        %v648 = vadd.f32 %v258, %v514
        %v649 = vadd.f32 %v258, %v519
        %v650 = vadd.f32 %v258, %v522
        %v651 = vadd.f32 %v258, %v527
        %v652 = vadd.f32 %v258, %v530
        %v653 = vadd.f32 %v258, %v535
        %v654 = vadd.f32 %v258, %v538
        %v655 = vadd.f32 %v258, %v543
        %v656 = vadd.f32 %v258, %v546
        %v657 = vadd.f32 %v258, %v551
        %v658 = vadd.f32 %v258, %v554
        %v659 = vadd.f32 %v258, %v559
        %v660 = vadd.f32 %v258, %v562
        %v661 = vadd.f32 %v258, %v567
        %v662 = vadd.f32 %v258, %v570
        %v663 = vadd.f32 %v258, %v575
        %v664 = vadd.f32 %v258, %v578
        %v665 = vadd.f32 %v258, %v583
        %v666 = vadd.f32 %v258, %v586
        %v667 = vadd.f32 %v258, %v591
        %v668 = vadd.f32 %v258, %v594
        %v669 = vadd.f32 %v258, %v599
        %v670 = vadd.f32 %v258, %v602
        %v671 = vadd.f32 %v258, %v607
        %v672 = vadd.f32 %v258, %v610
        %v673 = vadd.f32 %v258, %v615
        %v674 = vadd.f32 %v258, %v618
        %v675 = vadd.f32 %v258, %v623
        %v676 = vadd.f32 %v258, %v626
        %v677 = vadd.f32 %v258, %v631
        %v678 = vadd.f32 %v258, %v634
        %v679 = vadd.f32 %v258, %v639
        %v680 = vadd.f32 %v258, %v642
        %v681 = vld [vmem:[%s219] sm:$0xf]
        %v682 = vld [vmem:[%s219 + $0x4] sm:$0xf]
        %v683 = vld [vmem:[%s219 + $0x8] sm:$0xf]
        %v684 = vld [vmem:[%s219 + $0xc] sm:$0xf]
        %v685 = vld [vmem:[%s219 + $0x10] sm:$0xf]
        %v686 = vld [vmem:[%s219 + $0x14] sm:$0xf]
        %v687 = vld [vmem:[%s219 + $0x18] sm:$0xf]
        %v688 = vld [vmem:[%s219 + $0x1c] sm:$0xf]
        %v689 = vld [vmem:[%s219 + $0x20] sm:$0xf]
        %v690 = vld [vmem:[%s219 + $0x24] sm:$0xf]
        %v691 = vld [vmem:[%s219 + $0x28] sm:$0xf]
        %v692 = vld [vmem:[%s219 + $0x2c] sm:$0xf]
        %v693 = vld [vmem:[%s219 + $0x30] sm:$0xf]
        %v694 = vld [vmem:[%s219 + $0x34] sm:$0xf]
        %v695 = vld [vmem:[%s219 + $0x38] sm:$0xf]
        %v696 = vld [vmem:[%s219 + $0x3c] sm:$0xf]
        %v697 = vld [vmem:[%s219 + $0x40] sm:$0xf]
        %v698 = vld [vmem:[%s219 + $0x44] sm:$0xf]
        %v699 = vld [vmem:[%s219 + $0x48] sm:$0xf]
        %v700 = vld [vmem:[%s219 + $0x4c] sm:$0xf]
        %v701 = vld [vmem:[%s219 + $0x50] sm:$0xf]
        %v702 = vld [vmem:[%s219 + $0x54] sm:$0xf]
        %v703 = vld [vmem:[%s219 + $0x58] sm:$0xf]
        %v704 = vld [vmem:[%s219 + $0x5c] sm:$0xf]
        %v705 = vld [vmem:[%s219 + $0x60] sm:$0xf]
        %v706 = vld [vmem:[%s219 + $0x64] sm:$0xf]
        %v707 = vld [vmem:[%s219 + $0x68] sm:$0xf]
        %v708 = vld [vmem:[%s219 + $0x6c] sm:$0xf]
        %v709 = vld [vmem:[%s219 + $0x70] sm:$0xf]
        %v710 = vld [vmem:[%s219 + $0x74] sm:$0xf]
        %v711 = vld [vmem:[%s219 + $0x78] sm:$0xf]
        %v712 = vld [vmem:[%s219 + $0x7c] sm:$0xf]
        %v713 = vld [vmem:[%s219 + $0x80] sm:$0xf]
        %v714 = vld [vmem:[%s219 + $0x84] sm:$0xf]
        %v715 = vld [vmem:[%s219 + $0x88] sm:$0xf]
        %v716 = vld [vmem:[%s219 + $0x8c] sm:$0xf]
        %v717 = vld [vmem:[%s219 + $0x90] sm:$0x1]
        %s718 = scalar_lea.vmem [#allocation5], 64
        %v719 = vld [vmem:[%s718] sm:$0xf]
        %v720 = vld [vmem:[%s718 + $0x4] sm:$0xf]
        %v721 = vld [vmem:[%s718 + $0x8] sm:$0xf]
        %v722 = vld [vmem:[%s718 + $0xc] sm:$0xf]
        %v723 = vld [vmem:[%s718 + $0x10] sm:$0xf]
        %v724 = vld [vmem:[%s718 + $0x14] sm:$0xf]
        %v725 = vld [vmem:[%s718 + $0x18] sm:$0xf]
        %v726 = vld [vmem:[%s718 + $0x1c] sm:$0xf]
        %v727 = vld [vmem:[%s718 + $0x20] sm:$0xf]
        %v728 = vld [vmem:[%s718 + $0x24] sm:$0xf]
        %v729 = vld [vmem:[%s718 + $0x28] sm:$0xf]
        %v730 = vld [vmem:[%s718 + $0x2c] sm:$0xf]
        %v731 = vld [vmem:[%s718 + $0x30] sm:$0xf]
        %v732 = vld [vmem:[%s718 + $0x34] sm:$0xf]
        %v733 = vld [vmem:[%s718 + $0x38] sm:$0xf]
        %v734 = vld [vmem:[%s718 + $0x3c] sm:$0xf]
        %v772 = vunpack.c.l.b16 %v681
        %v773 = vunpack.c.l.b16 %v682
        %v774 = vunpack.c.l.b16 %v683
        %v775 = vunpack.c.l.b16 %v684
        %v776 = vunpack.c.l.b16 %v685
        %v777 = vunpack.c.l.b16 %v686
        %v778 = vunpack.c.l.b16 %v687
        %v779 = vunpack.c.l.b16 %v688
        %v780 = vunpack.c.l.b16 %v689
        %v781 = vunpack.c.l.b16 %v690
        %v782 = vunpack.c.l.b16 %v691
        %v783 = vunpack.c.l.b16 %v692
        %v784 = vunpack.c.l.b16 %v693
        %v785 = vunpack.c.l.b16 %v694
        %v786 = vunpack.c.l.b16 %v695
        %v787 = vunpack.c.l.b16 %v696
        %v788 = vunpack.c.l.b16 %v697
        %v789 = vunpack.c.l.b16 %v698
        %v790 = vunpack.c.l.b16 %v699
        %v791 = vunpack.c.l.b16 %v700
        %v792 = vunpack.c.l.b16 %v701
        %v793 = vunpack.c.l.b16 %v702
        %v794 = vunpack.c.l.b16 %v703
        %v795 = vunpack.c.l.b16 %v704
        %v796 = vunpack.c.l.b16 %v705
        %v797 = vunpack.c.l.b16 %v706
        %v798 = vunpack.c.l.b16 %v707
        %v799 = vunpack.c.l.b16 %v708
        %v800 = vunpack.c.l.b16 %v709
        %v801 = vunpack.c.l.b16 %v710
        %v802 = vunpack.c.l.b16 %v711
        %v803 = vunpack.c.l.b16 %v712
        %v804 = vunpack.c.l.b16 %v713
        %v805 = vunpack.c.l.b16 %v714
        %v806 = vunpack.c.l.b16 %v715
        %v807 = vunpack.c.l.b16 %v716
        %v808 = vunpack.c.l.b16 %v717
        %v809 = vpack.c.b16 %v773, %v772
        %v810 = vpack.c.b16 %v775, %v774
        %v811 = vpack.c.b16 %v777, %v776
        %v812 = vpack.c.b16 %v779, %v778
        %v813 = vpack.c.b16 %v781, %v780
        %v814 = vpack.c.b16 %v783, %v782
        %v815 = vpack.c.b16 %v785, %v784
        %v816 = vpack.c.b16 %v787, %v786
        %v817 = vpack.c.b16 %v789, %v788
        %v818 = vpack.c.b16 %v791, %v790
        %v819 = vpack.c.b16 %v793, %v792
        %v820 = vpack.c.b16 %v795, %v794
        %v821 = vpack.c.b16 %v797, %v796
        %v822 = vpack.c.b16 %v799, %v798
        %v823 = vpack.c.b16 %v801, %v800
        %v824 = vpack.c.b16 %v803, %v802
        %v825 = vpack.c.b16 %v805, %v804
        %v826 = vpack.c.b16 %v807, %v806
        %v827 = vpack.c.b16 %v808, %v808
        %vm828 = vsmask.f32 7424
        %v830 = vshrl.u32 %v809, 16
        %v832 = vshll.u32 %v809, 16
        %v834 = vrot.slane %v832, 1
        %v835 = vor.u32 %v830, %v834
        %v837 = vshll.u32 %v810, 16
        %v839 = vrot.slane %v837, 1
        %v840 = vsel %vm828, %v835, %v839
        %v841 = vshrl.u32 %v810, 16
        %v843 = vor.u32 %v841, %v839
        %v845 = vshll.u32 %v811, 16
        %v847 = vrot.slane %v845, 1
        %v848 = vsel %vm828, %v843, %v847
        %v849 = vshrl.u32 %v811, 16
        %v851 = vor.u32 %v849, %v847
        %v853 = vshll.u32 %v812, 16
        %v855 = vrot.slane %v853, 1
        %v856 = vsel %vm828, %v851, %v855
        %v857 = vshrl.u32 %v812, 16
        %v859 = vor.u32 %v857, %v855
        %v861 = vshll.u32 %v813, 16
        %v863 = vrot.slane %v861, 1
        %v864 = vsel %vm828, %v859, %v863
        %v865 = vshrl.u32 %v813, 16
        %v867 = vor.u32 %v865, %v863
        %v869 = vshll.u32 %v814, 16
        %v871 = vrot.slane %v869, 1
        %v872 = vsel %vm828, %v867, %v871
        %v873 = vshrl.u32 %v814, 16
        %v875 = vor.u32 %v873, %v871
        %v877 = vshll.u32 %v815, 16
        %v879 = vrot.slane %v877, 1
        %v880 = vsel %vm828, %v875, %v879
        %v881 = vshrl.u32 %v815, 16
        %v883 = vor.u32 %v881, %v879
        %v885 = vshll.u32 %v816, 16
        %v887 = vrot.slane %v885, 1
        %v888 = vsel %vm828, %v883, %v887
        %v889 = vshrl.u32 %v816, 16
        %v891 = vor.u32 %v889, %v887
        %v893 = vshll.u32 %v817, 16
        %v895 = vrot.slane %v893, 1
        %v896 = vsel %vm828, %v891, %v895
        %v897 = vshrl.u32 %v817, 16
        %v899 = vor.u32 %v897, %v895
        %v901 = vshll.u32 %v818, 16
        %v903 = vrot.slane %v901, 1
        %v904 = vsel %vm828, %v899, %v903
        %v905 = vshrl.u32 %v818, 16
        %v907 = vor.u32 %v905, %v903
        %v909 = vshll.u32 %v819, 16
        %v911 = vrot.slane %v909, 1
        %v912 = vsel %vm828, %v907, %v911
        %v913 = vshrl.u32 %v819, 16
        %v915 = vor.u32 %v913, %v911
        %v917 = vshll.u32 %v820, 16
        %v919 = vrot.slane %v917, 1
        %v920 = vsel %vm828, %v915, %v919
        %v921 = vshrl.u32 %v820, 16
        %v923 = vor.u32 %v921, %v919
        %v925 = vshll.u32 %v821, 16
        %v927 = vrot.slane %v925, 1
        %v928 = vsel %vm828, %v923, %v927
        %v929 = vshrl.u32 %v821, 16
        %v931 = vor.u32 %v929, %v927
        %v933 = vshll.u32 %v822, 16
        %v935 = vrot.slane %v933, 1
        %v936 = vsel %vm828, %v931, %v935
        %v937 = vshrl.u32 %v822, 16
        %v939 = vor.u32 %v937, %v935
        %v941 = vshll.u32 %v823, 16
        %v943 = vrot.slane %v941, 1
        %v944 = vsel %vm828, %v939, %v943
        %v945 = vshrl.u32 %v823, 16
        %v947 = vor.u32 %v945, %v943
        %v949 = vshll.u32 %v824, 16
        %v951 = vrot.slane %v949, 1
        %v952 = vsel %vm828, %v947, %v951
        %v953 = vshrl.u32 %v824, 16
        %v955 = vor.u32 %v953, %v951
        %v957 = vshll.u32 %v825, 16
        %v959 = vrot.slane %v957, 1
        %v960 = vsel %vm828, %v955, %v959
        %v961 = vshrl.u32 %v825, 16
        %v963 = vor.u32 %v961, %v959
        %v965 = vshll.u32 %v826, 16
        %v967 = vrot.slane %v965, 1
        %v968 = vsel %vm828, %v963, %v967
        %v969 = vshrl.u32 %v826, 16
        %v971 = vor.u32 %v969, %v967
        %v973 = vshll.u32 %v827, 16
        %v975 = vrot.slane %v973, 1
        %v976 = vsel %vm828, %v971, %v975
        %v1011 = vunpack.c.l.b16 %v719
        %v1012 = vunpack.c.l.b16 %v720
        %v1013 = vunpack.c.l.b16 %v721
        %v1014 = vunpack.c.l.b16 %v722
        %v1015 = vunpack.c.l.b16 %v723
        %v1016 = vunpack.c.l.b16 %v724
        %v1017 = vunpack.c.l.b16 %v725
        %v1018 = vunpack.c.l.b16 %v726
        %v1019 = vunpack.c.l.b16 %v727
        %v1020 = vunpack.c.l.b16 %v728
        %v1021 = vunpack.c.l.b16 %v729
        %v1022 = vunpack.c.l.b16 %v730
        %v1023 = vunpack.c.l.b16 %v731
        %v1024 = vunpack.c.l.b16 %v732
        %v1025 = vunpack.c.l.b16 %v733
        %v1026 = vunpack.c.l.b16 %v734
        %v1027 = vpack.c.b16 %v1012, %v1011
        %v1028 = vpack.c.b16 %v1014, %v1013
        %v1029 = vpack.c.b16 %v1016, %v1015
        %v1030 = vpack.c.b16 %v1018, %v1017
        %v1031 = vpack.c.b16 %v1020, %v1019
        %v1032 = vpack.c.b16 %v1022, %v1021
        %v1033 = vpack.c.b16 %v1024, %v1023
        %v1034 = vpack.c.b16 %v1026, %v1025
        %1043 = vmatprep.subr.bf16.mxu0 0
        %1044 = vmatpush1.bf16.msra.mxu0 %v1027
        %1045 = vmatprep.subr.bf16.mxu0 0
        %1046 = vmatpush1.bf16.msra.mxu0 %v1028
        %1047 = vmatprep.subr.bf16.mxu0 0
        %1048 = vmatpush1.bf16.msra.mxu0 %v1029
        %1049 = vmatprep.subr.bf16.mxu0 0
        %1050 = vmatpush1.bf16.msra.mxu0 %v1030
        %1051 = vmatprep.subr.bf16.mxu0 0
        %1052 = vmatpush1.bf16.msra.mxu0 %v1031
        %1053 = vmatprep.subr.bf16.mxu0 0
        %1054 = vmatpush1.bf16.msra.mxu0 %v1032
        %1055 = vmatprep.subr.bf16.mxu0 0
        %1056 = vmatpush1.bf16.msra.mxu0 %v1033
        %1057 = vmatprep.subr.bf16.mxu0 0
        %1058 = vmatpush1.bf16.msra.mxu0 %v1034
        %1059 = vmatprep.subr.bf16.mxu0 0
        %1060 = vmatpush1.bf16.msra.mxu0 0
        %1061 = vmatprep.subr.bf16.mxu0 0
        %1062 = vmatpush1.bf16.msra.mxu0 0
        %1063 = vmatprep.subr.bf16.mxu0 0
        %1064 = vmatpush1.bf16.msra.mxu0 0
        %1065 = vmatprep.subr.bf16.mxu0 0
        %1066 = vmatpush1.bf16.msra.mxu0 0
        %1067 = vmatprep.subr.bf16.mxu0 0
        %1068 = vmatpush1.bf16.msra.mxu0 0
        %1069 = vmatprep.subr.bf16.mxu0 0
        %1070 = vmatpush1.bf16.msra.mxu0 0
        %1071 = vmatprep.subr.bf16.mxu0 0
        %1072 = vmatpush1.bf16.msra.mxu0 0
        %1073 = vmatprep.subr.bf16.mxu0 0
        %1074 = vmatpush1.bf16.msra.mxu0 0
        %1075 = vmatprep.mubr.bf16.mxu0 0
        %1076 = vmatmul.mubr.bf16.gmra.mrb[0].mxu0 %v840
        %v1077 = vpop.f32.mrb[0].mxu0
        %v1078 = vadd.f32 0.0, %v1077
        %v1079 = vpop.f32.mrb[0].mxu0
        %v1080 = vpop.f32.mrb[0].mxu0
        %v1081 = vadd.f32 0.0, %v1080
        %v1082 = vpop.f32.mrb[0].mxu0
        %1083 = vmatprep.mubr.bf16.mxu0 0
        %1084 = vmatmul.mubr.bf16.gmra.mrb[0].mxu0 %v848
        %v1085 = vpop.f32.mrb[0].mxu0
        %v1086 = vadd.f32 0.0, %v1085
        %v1087 = vpop.f32.mrb[0].mxu0
        %v1088 = vpop.f32.mrb[0].mxu0
        %v1089 = vadd.f32 0.0, %v1088
        %v1090 = vpop.f32.mrb[0].mxu0
        %1091 = vmatprep.mubr.bf16.mxu0 0
        %1092 = vmatmul.mubr.bf16.gmra.mrb[0].mxu0 %v856
        %v1093 = vpop.f32.mrb[0].mxu0
        %v1094 = vadd.f32 0.0, %v1093
        %v1095 = vpop.f32.mrb[0].mxu0
        %v1096 = vpop.f32.mrb[0].mxu0
        %v1097 = vadd.f32 0.0, %v1096
        %v1098 = vpop.f32.mrb[0].mxu0
        %1099 = vmatprep.mubr.bf16.mxu0 0
        %1100 = vmatmul.mubr.bf16.gmra.mrb[0].mxu0 %v864
        %v1101 = vpop.f32.mrb[0].mxu0
        %v1102 = vadd.f32 0.0, %v1101
        %v1103 = vpop.f32.mrb[0].mxu0
        %v1104 = vpop.f32.mrb[0].mxu0
        %v1105 = vadd.f32 0.0, %v1104
        %v1106 = vpop.f32.mrb[0].mxu0
        %1107 = vmatprep.mubr.bf16.mxu0 0
        %1108 = vmatmul.mubr.bf16.gmra.mrb[0].mxu0 %v872
        %v1109 = vpop.f32.mrb[0].mxu0
        %v1110 = vadd.f32 0.0, %v1109
        %v1111 = vpop.f32.mrb[0].mxu0
        %v1112 = vpop.f32.mrb[0].mxu0
        %v1113 = vadd.f32 0.0, %v1112
        %v1114 = vpop.f32.mrb[0].mxu0
        %1115 = vmatprep.mubr.bf16.mxu0 0
        %1116 = vmatmul.mubr.bf16.gmra.mrb[0].mxu0 %v880
        %v1117 = vpop.f32.mrb[0].mxu0
        %v1118 = vadd.f32 0.0, %v1117
        %v1119 = vpop.f32.mrb[0].mxu0
        %v1120 = vpop.f32.mrb[0].mxu0
        %v1121 = vadd.f32 0.0, %v1120
        %v1122 = vpop.f32.mrb[0].mxu0
        %1123 = vmatprep.mubr.bf16.mxu0 0
        %1124 = vmatmul.mubr.bf16.gmra.mrb[0].mxu0 %v888
        %v1125 = vpop.f32.mrb[0].mxu0
        %v1126 = vadd.f32 0.0, %v1125
        %v1127 = vpop.f32.mrb[0].mxu0
        %v1128 = vpop.f32.mrb[0].mxu0
        %v1129 = vadd.f32 0.0, %v1128
        %v1130 = vpop.f32.mrb[0].mxu0
        %1131 = vmatprep.mubr.bf16.mxu0 0
        %1132 = vmatmul.mubr.bf16.gmra.mrb[0].mxu0 %v896
        %v1133 = vpop.f32.mrb[0].mxu0
        %v1134 = vadd.f32 0.0, %v1133
        %v1135 = vpop.f32.mrb[0].mxu0
        %v1136 = vpop.f32.mrb[0].mxu0
        %v1137 = vadd.f32 0.0, %v1136
        %v1138 = vpop.f32.mrb[0].mxu0
        %1139 = vmatprep.mubr.bf16.mxu0 0
        %1140 = vmatmul.mubr.bf16.gmra.mrb[0].mxu0 %v904
        %v1141 = vpop.f32.mrb[0].mxu0
        %v1142 = vadd.f32 0.0, %v1141
        %v1143 = vpop.f32.mrb[0].mxu0
        %v1144 = vpop.f32.mrb[0].mxu0
        %v1145 = vadd.f32 0.0, %v1144
        %v1146 = vpop.f32.mrb[0].mxu0
        %1147 = vmatprep.mubr.bf16.mxu0 0
        %1148 = vmatmul.mubr.bf16.gmra.mrb[0].mxu0 %v912
        %v1149 = vpop.f32.mrb[0].mxu0
        %v1150 = vadd.f32 0.0, %v1149
        %v1151 = vpop.f32.mrb[0].mxu0
        %v1152 = vpop.f32.mrb[0].mxu0
        %v1153 = vadd.f32 0.0, %v1152
        %v1154 = vpop.f32.mrb[0].mxu0
        %1155 = vmatprep.mubr.bf16.mxu0 0
        %1156 = vmatmul.mubr.bf16.gmra.mrb[0].mxu0 %v920
        %v1157 = vpop.f32.mrb[0].mxu0
        %v1158 = vadd.f32 0.0, %v1157
        %v1159 = vpop.f32.mrb[0].mxu0
        %v1160 = vpop.f32.mrb[0].mxu0
        %v1161 = vadd.f32 0.0, %v1160
        %v1162 = vpop.f32.mrb[0].mxu0
        %1163 = vmatprep.mubr.bf16.mxu0 0
        %1164 = vmatmul.mubr.bf16.gmra.mrb[0].mxu0 %v928
        %v1165 = vpop.f32.mrb[0].mxu0
        %v1166 = vadd.f32 0.0, %v1165
        %v1167 = vpop.f32.mrb[0].mxu0
        %v1168 = vpop.f32.mrb[0].mxu0
        %v1169 = vadd.f32 0.0, %v1168
        %v1170 = vpop.f32.mrb[0].mxu0
        %1171 = vmatprep.mubr.bf16.mxu0 0
        %1172 = vmatmul.mubr.bf16.gmra.mrb[0].mxu0 %v936
        %v1173 = vpop.f32.mrb[0].mxu0
        %v1174 = vadd.f32 0.0, %v1173
        %v1175 = vpop.f32.mrb[0].mxu0
        %v1176 = vpop.f32.mrb[0].mxu0
        %v1177 = vadd.f32 0.0, %v1176
        %v1178 = vpop.f32.mrb[0].mxu0
        %1179 = vmatprep.mubr.bf16.mxu0 0
        %1180 = vmatmul.mubr.bf16.gmra.mrb[0].mxu0 %v944
        %v1181 = vpop.f32.mrb[0].mxu0
        %v1182 = vadd.f32 0.0, %v1181
        %v1183 = vpop.f32.mrb[0].mxu0
        %v1184 = vpop.f32.mrb[0].mxu0
        %v1185 = vadd.f32 0.0, %v1184
        %v1186 = vpop.f32.mrb[0].mxu0
        %1187 = vmatprep.mubr.bf16.mxu0 0
        %1188 = vmatmul.mubr.bf16.gmra.mrb[0].mxu0 %v952
        %v1189 = vpop.f32.mrb[0].mxu0
        %v1190 = vadd.f32 0.0, %v1189
        %v1191 = vpop.f32.mrb[0].mxu0
        %v1192 = vpop.f32.mrb[0].mxu0
        %v1193 = vadd.f32 0.0, %v1192
        %v1194 = vpop.f32.mrb[0].mxu0
        %1195 = vmatprep.mubr.bf16.mxu0 0
        %1196 = vmatmul.mubr.bf16.gmra.mrb[0].mxu0 %v960
        %v1197 = vpop.f32.mrb[0].mxu0
        %v1198 = vadd.f32 0.0, %v1197
        %v1199 = vpop.f32.mrb[0].mxu0
        %v1200 = vpop.f32.mrb[0].mxu0
        %v1201 = vadd.f32 0.0, %v1200
        %v1202 = vpop.f32.mrb[0].mxu0
        %1203 = vmatprep.mubr.bf16.mxu0 0
        %1204 = vmatmul.mubr.bf16.gmra.mrb[0].mxu0 %v968
        %v1205 = vpop.f32.mrb[0].mxu0
        %v1206 = vadd.f32 0.0, %v1205
        %v1207 = vpop.f32.mrb[0].mxu0
        %v1208 = vpop.f32.mrb[0].mxu0
        %v1209 = vadd.f32 0.0, %v1208
        %v1210 = vpop.f32.mrb[0].mxu0
        %1211 = vmatprep.mubr.bf16.mxu0 0
        %1212 = vmatmul.mubr.bf16.gmra.mrb[0].mxu0 %v976
        %v1213 = vpop.f32.mrb[0].mxu0
        %v1214 = vadd.f32 0.0, %v1213
        %v1215 = vpop.f32.mrb[0].mxu0
        %v1216 = vpop.f32.mrb[0].mxu0
        %v1217 = vadd.f32 0.0, %v1216
        %v1218 = vpop.f32.mrb[0].mxu0
        %1219 = vdwg.mxu0
        %v1220 = vadd.f32 %v645, %v1078
        %v1221 = vadd.f32 %v646, %v1081
        %v1222 = vadd.f32 %v647, %v1086
        %v1223 = vadd.f32 %v648, %v1089
        %v1224 = vadd.f32 %v649, %v1094
        %v1225 = vadd.f32 %v650, %v1097
        %v1226 = vadd.f32 %v651, %v1102
        %v1227 = vadd.f32 %v652, %v1105
        %v1228 = vadd.f32 %v653, %v1110
        %v1229 = vadd.f32 %v654, %v1113
        %v1230 = vadd.f32 %v655, %v1118
        %v1231 = vadd.f32 %v656, %v1121
        %v1232 = vadd.f32 %v657, %v1126
        %v1233 = vadd.f32 %v658, %v1129
        %v1234 = vadd.f32 %v659, %v1134
        %v1235 = vadd.f32 %v660, %v1137
        %v1236 = vadd.f32 %v661, %v1142
        %v1237 = vadd.f32 %v662, %v1145
        %v1238 = vadd.f32 %v663, %v1150
        %v1239 = vadd.f32 %v664, %v1153
        %v1240 = vadd.f32 %v665, %v1158
        %v1241 = vadd.f32 %v666, %v1161
        %v1242 = vadd.f32 %v667, %v1166
        %v1243 = vadd.f32 %v668, %v1169
        %v1244 = vadd.f32 %v669, %v1174
        %v1245 = vadd.f32 %v670, %v1177
        %v1246 = vadd.f32 %v671, %v1182
        %v1247 = vadd.f32 %v672, %v1185
        %v1248 = vadd.f32 %v673, %v1190
        %v1249 = vadd.f32 %v674, %v1193
        %v1250 = vadd.f32 %v675, %v1198
        %v1251 = vadd.f32 %v676, %v1201
        %v1252 = vadd.f32 %v677, %v1206
        %v1253 = vadd.f32 %v678, %v1209
        %v1254 = vadd.f32 %v679, %v1214
        %v1255 = vadd.f32 %v680, %v1217
        %v1256 = vld [vmem:[%s219] sm:$0xe]
        %s1257 = scalar_lea.vmem [#allocation5], 128
        %v1258 = vld [vmem:[%s1257] sm:$0xf]
        %v1259 = vld [vmem:[%s1257 + $0x4] sm:$0xf]
        %v1260 = vld [vmem:[%s1257 + $0x8] sm:$0xf]
        %v1261 = vld [vmem:[%s1257 + $0xc] sm:$0xf]
        %v1262 = vld [vmem:[%s1257 + $0x10] sm:$0xf]
        %v1263 = vld [vmem:[%s1257 + $0x14] sm:$0xf]
        %v1264 = vld [vmem:[%s1257 + $0x18] sm:$0xf]
        %v1265 = vld [vmem:[%s1257 + $0x1c] sm:$0xf]
        %v1266 = vld [vmem:[%s1257 + $0x20] sm:$0xf]
        %v1267 = vld [vmem:[%s1257 + $0x24] sm:$0xf]
        %v1268 = vld [vmem:[%s1257 + $0x28] sm:$0xf]
        %v1269 = vld [vmem:[%s1257 + $0x2c] sm:$0xf]
        %v1270 = vld [vmem:[%s1257 + $0x30] sm:$0xf]
        %v1271 = vld [vmem:[%s1257 + $0x34] sm:$0xf]
        %v1272 = vld [vmem:[%s1257 + $0x38] sm:$0xf]
        %v1273 = vld [vmem:[%s1257 + $0x3c] sm:$0xf]
        %v1275 = vunpack.c.l.b16 %v1256
        %v1276 = vpack.c.b16 %v773, %v1275
        %vm1277 = vcmask 1046528
        %v1278 = vrot.slane %v1276, 1
        %v1279 = vrot.slane %v810, 1
        %v1280 = vsel %vm1277, %v1278, %v1279
        %v1281 = vrot.slane %v811, 1
        %v1282 = vsel %vm1277, %v1279, %v1281
        %v1283 = vrot.slane %v812, 1
        %v1284 = vsel %vm1277, %v1281, %v1283
        %v1285 = vrot.slane %v813, 1
        %v1286 = vsel %vm1277, %v1283, %v1285
        %v1287 = vrot.slane %v814, 1
        %v1288 = vsel %vm1277, %v1285, %v1287
        %v1289 = vrot.slane %v815, 1
        %v1290 = vsel %vm1277, %v1287, %v1289
        %v1291 = vrot.slane %v816, 1
        %v1292 = vsel %vm1277, %v1289, %v1291
        %v1293 = vrot.slane %v817, 1
        %v1294 = vsel %vm1277, %v1291, %v1293
        %v1295 = vrot.slane %v818, 1
        %v1296 = vsel %vm1277, %v1293, %v1295
        %v1297 = vrot.slane %v819, 1
        %v1298 = vsel %vm1277, %v1295, %v1297
        %v1299 = vrot.slane %v820, 1
        %v1300 = vsel %vm1277, %v1297, %v1299
        %v1301 = vrot.slane %v821, 1
        %v1302 = vsel %vm1277, %v1299, %v1301
        %v1303 = vrot.slane %v822, 1
        %v1304 = vsel %vm1277, %v1301, %v1303
        %v1305 = vrot.slane %v823, 1
        %v1306 = vsel %vm1277, %v1303, %v1305
        %v1307 = vrot.slane %v824, 1
        %v1308 = vsel %vm1277, %v1305, %v1307
        %v1309 = vrot.slane %v825, 1
        %v1310 = vsel %vm1277, %v1307, %v1309
        %v1311 = vrot.slane %v826, 1
        %v1312 = vsel %vm1277, %v1309, %v1311
        %v1313 = vrot.slane %v827, 1
        %v1314 = vsel %vm1277, %v1311, %v1313
        %v1349 = vunpack.c.l.b16 %v1258
        %v1350 = vunpack.c.l.b16 %v1259
        %v1351 = vunpack.c.l.b16 %v1260
        %v1352 = vunpack.c.l.b16 %v1261
        %v1353 = vunpack.c.l.b16 %v1262
        %v1354 = vunpack.c.l.b16 %v1263
        %v1355 = vunpack.c.l.b16 %v1264
        %v1356 = vunpack.c.l.b16 %v1265
        %v1357 = vunpack.c.l.b16 %v1266
        %v1358 = vunpack.c.l.b16 %v1267
        %v1359 = vunpack.c.l.b16 %v1268
        %v1360 = vunpack.c.l.b16 %v1269
        %v1361 = vunpack.c.l.b16 %v1270
        %v1362 = vunpack.c.l.b16 %v1271
        %v1363 = vunpack.c.l.b16 %v1272
        %v1364 = vunpack.c.l.b16 %v1273
        %v1365 = vpack.c.b16 %v1350, %v1349
        %v1366 = vpack.c.b16 %v1352, %v1351
        %v1367 = vpack.c.b16 %v1354, %v1353
        %v1368 = vpack.c.b16 %v1356, %v1355
        %v1369 = vpack.c.b16 %v1358, %v1357
        %v1370 = vpack.c.b16 %v1360, %v1359
        %v1371 = vpack.c.b16 %v1362, %v1361
        %v1372 = vpack.c.b16 %v1364, %v1363
        %1381 = vmatprep.subr.bf16.mxu0 0
        %1382 = vmatpush1.bf16.msra.mxu0 %v1365
        %1383 = vmatprep.subr.bf16.mxu0 0
        %1384 = vmatpush1.bf16.msra.mxu0 %v1366
        %1385 = vmatprep.subr.bf16.mxu0 0
        %1386 = vmatpush1.bf16.msra.mxu0 %v1367
        %1387 = vmatprep.subr.bf16.mxu0 0
        %1388 = vmatpush1.bf16.msra.mxu0 %v1368
        %1389 = vmatprep.subr.bf16.mxu0 0
        %1390 = vmatpush1.bf16.msra.mxu0 %v1369
        %1391 = vmatprep.subr.bf16.mxu0 0
        %1392 = vmatpush1.bf16.msra.mxu0 %v1370
        %1393 = vmatprep.subr.bf16.mxu0 0
        %1394 = vmatpush1.bf16.msra.mxu0 %v1371
        %1395 = vmatprep.subr.bf16.mxu0 0
        %1396 = vmatpush1.bf16.msra.mxu0 %v1372
        %1397 = vmatprep.subr.bf16.mxu0 0
        %1398 = vmatpush1.bf16.msra.mxu0 0
        %1399 = vmatprep.subr.bf16.mxu0 0
        %1400 = vmatpush1.bf16.msra.mxu0 0
        %1401 = vmatprep.subr.bf16.mxu0 0
        %1402 = vmatpush1.bf16.msra.mxu0 0
        %1403 = vmatprep.subr.bf16.mxu0 0
        %1404 = vmatpush1.bf16.msra.mxu0 0
        %1405 = vmatprep.subr.bf16.mxu0 0
        %1406 = vmatpush1.bf16.msra.mxu0 0
        %1407 = vmatprep.subr.bf16.mxu0 0
        %1408 = vmatpush1.bf16.msra.mxu0 0
        %1409 = vmatprep.subr.bf16.mxu0 0
        %1410 = vmatpush1.bf16.msra.mxu0 0
        %1411 = vmatprep.subr.bf16.mxu0 0
        %1412 = vmatpush1.bf16.msra.mxu0 0
        %1413 = vmatprep.mubr.bf16.mxu0 0
        %1414 = vmatmul.mubr.bf16.gmra.mrb[0].mxu0 %v1280
        %v1415 = vpop.f32.mrb[0].mxu0
        %v1416 = vadd.f32 0.0, %v1415
        %v1417 = vpop.f32.mrb[0].mxu0
        %v1418 = vpop.f32.mrb[0].mxu0
        %v1419 = vadd.f32 0.0, %v1418
        %v1420 = vpop.f32.mrb[0].mxu0
        %1421 = vmatprep.mubr.bf16.mxu0 0
        %1422 = vmatmul.mubr.bf16.gmra.mrb[0].mxu0 %v1282
        %v1423 = vpop.f32.mrb[0].mxu0
        %v1424 = vadd.f32 0.0, %v1423
        %v1425 = vpop.f32.mrb[0].mxu0
        %v1426 = vpop.f32.mrb[0].mxu0
        %v1427 = vadd.f32 0.0, %v1426
        %v1428 = vpop.f32.mrb[0].mxu0
        %1429 = vmatprep.mubr.bf16.mxu0 0
        %1430 = vmatmul.mubr.bf16.gmra.mrb[0].mxu0 %v1284
        %v1431 = vpop.f32.mrb[0].mxu0
        %v1432 = vadd.f32 0.0, %v1431
        %v1433 = vpop.f32.mrb[0].mxu0
        %v1434 = vpop.f32.mrb[0].mxu0
        %v1435 = vadd.f32 0.0, %v1434
        %v1436 = vpop.f32.mrb[0].mxu0
        %1437 = vmatprep.mubr.bf16.mxu0 0
        %1438 = vmatmul.mubr.bf16.gmra.mrb[0].mxu0 %v1286
        %v1439 = vpop.f32.mrb[0].mxu0
        %v1440 = vadd.f32 0.0, %v1439
        %v1441 = vpop.f32.mrb[0].mxu0
        %v1442 = vpop.f32.mrb[0].mxu0
        %v1443 = vadd.f32 0.0, %v1442
        %v1444 = vpop.f32.mrb[0].mxu0
        %1445 = vmatprep.mubr.bf16.mxu0 0
        %1446 = vmatmul.mubr.bf16.gmra.mrb[0].mxu0 %v1288
        %v1447 = vpop.f32.mrb[0].mxu0
        %v1448 = vadd.f32 0.0, %v1447
        %v1449 = vpop.f32.mrb[0].mxu0
        %v1450 = vpop.f32.mrb[0].mxu0
        %v1451 = vadd.f32 0.0, %v1450
        %v1452 = vpop.f32.mrb[0].mxu0
        %1453 = vmatprep.mubr.bf16.mxu0 0
        %1454 = vmatmul.mubr.bf16.gmra.mrb[0].mxu0 %v1290
        %v1455 = vpop.f32.mrb[0].mxu0
        %v1456 = vadd.f32 0.0, %v1455
        %v1457 = vpop.f32.mrb[0].mxu0
        %v1458 = vpop.f32.mrb[0].mxu0
        %v1459 = vadd.f32 0.0, %v1458
        %v1460 = vpop.f32.mrb[0].mxu0
        %1461 = vmatprep.mubr.bf16.mxu0 0
        %1462 = vmatmul.mubr.bf16.gmra.mrb[0].mxu0 %v1292
        %v1463 = vpop.f32.mrb[0].mxu0
        %v1464 = vadd.f32 0.0, %v1463
        %v1465 = vpop.f32.mrb[0].mxu0
        %v1466 = vpop.f32.mrb[0].mxu0
        %v1467 = vadd.f32 0.0, %v1466
        %v1468 = vpop.f32.mrb[0].mxu0
        %1469 = vmatprep.mubr.bf16.mxu0 0
        %1470 = vmatmul.mubr.bf16.gmra.mrb[0].mxu0 %v1294
        %v1471 = vpop.f32.mrb[0].mxu0
        %v1472 = vadd.f32 0.0, %v1471
        %v1473 = vpop.f32.mrb[0].mxu0
        %v1474 = vpop.f32.mrb[0].mxu0
        %v1475 = vadd.f32 0.0, %v1474
        %v1476 = vpop.f32.mrb[0].mxu0
        %1477 = vmatprep.mubr.bf16.mxu0 0
        %1478 = vmatmul.mubr.bf16.gmra.mrb[0].mxu0 %v1296
        %v1479 = vpop.f32.mrb[0].mxu0
        %v1480 = vadd.f32 0.0, %v1479
        %v1481 = vpop.f32.mrb[0].mxu0
        %v1482 = vpop.f32.mrb[0].mxu0
        %v1483 = vadd.f32 0.0, %v1482
        %v1484 = vpop.f32.mrb[0].mxu0
        %1485 = vmatprep.mubr.bf16.mxu0 0
        %1486 = vmatmul.mubr.bf16.gmra.mrb[0].mxu0 %v1298
        %v1487 = vpop.f32.mrb[0].mxu0
        %v1488 = vadd.f32 0.0, %v1487
        %v1489 = vpop.f32.mrb[0].mxu0
        %v1490 = vpop.f32.mrb[0].mxu0
        %v1491 = vadd.f32 0.0, %v1490
        %v1492 = vpop.f32.mrb[0].mxu0
        %1493 = vmatprep.mubr.bf16.mxu0 0
        %1494 = vmatmul.mubr.bf16.gmra.mrb[0].mxu0 %v1300
        %v1495 = vpop.f32.mrb[0].mxu0
        %v1496 = vadd.f32 0.0, %v1495
        %v1497 = vpop.f32.mrb[0].mxu0
        %v1498 = vpop.f32.mrb[0].mxu0
        %v1499 = vadd.f32 0.0, %v1498
        %v1500 = vpop.f32.mrb[0].mxu0
        %1501 = vmatprep.mubr.bf16.mxu0 0
        %1502 = vmatmul.mubr.bf16.gmra.mrb[0].mxu0 %v1302
        %v1503 = vpop.f32.mrb[0].mxu0
        %v1504 = vadd.f32 0.0, %v1503
        %v1505 = vpop.f32.mrb[0].mxu0
        %v1506 = vpop.f32.mrb[0].mxu0
        %v1507 = vadd.f32 0.0, %v1506
        %v1508 = vpop.f32.mrb[0].mxu0
        %1509 = vmatprep.mubr.bf16.mxu0 0
        %1510 = vmatmul.mubr.bf16.gmra.mrb[0].mxu0 %v1304
        %v1511 = vpop.f32.mrb[0].mxu0
        %v1512 = vadd.f32 0.0, %v1511
        %v1513 = vpop.f32.mrb[0].mxu0
        %v1514 = vpop.f32.mrb[0].mxu0
        %v1515 = vadd.f32 0.0, %v1514
        %v1516 = vpop.f32.mrb[0].mxu0
        %1517 = vmatprep.mubr.bf16.mxu0 0
        %1518 = vmatmul.mubr.bf16.gmra.mrb[0].mxu0 %v1306
        %v1519 = vpop.f32.mrb[0].mxu0
        %v1520 = vadd.f32 0.0, %v1519
        %v1521 = vpop.f32.mrb[0].mxu0
        %v1522 = vpop.f32.mrb[0].mxu0
        %v1523 = vadd.f32 0.0, %v1522
        %v1524 = vpop.f32.mrb[0].mxu0
        %1525 = vmatprep.mubr.bf16.mxu0 0
        %1526 = vmatmul.mubr.bf16.gmra.mrb[0].mxu0 %v1308
        %v1527 = vpop.f32.mrb[0].mxu0
        %v1528 = vadd.f32 0.0, %v1527
        %v1529 = vpop.f32.mrb[0].mxu0
        %v1530 = vpop.f32.mrb[0].mxu0
        %v1531 = vadd.f32 0.0, %v1530
        %v1532 = vpop.f32.mrb[0].mxu0
        %1533 = vmatprep.mubr.bf16.mxu0 0
        %1534 = vmatmul.mubr.bf16.gmra.mrb[0].mxu0 %v1310
        %v1535 = vpop.f32.mrb[0].mxu0
        %v1536 = vadd.f32 0.0, %v1535
        %v1537 = vpop.f32.mrb[0].mxu0
        %v1538 = vpop.f32.mrb[0].mxu0
        %v1539 = vadd.f32 0.0, %v1538
        %v1540 = vpop.f32.mrb[0].mxu0
        %1541 = vmatprep.mubr.bf16.mxu0 0
        %1542 = vmatmul.mubr.bf16.gmra.mrb[0].mxu0 %v1312
        %v1543 = vpop.f32.mrb[0].mxu0
        %v1544 = vadd.f32 0.0, %v1543
        %v1545 = vpop.f32.mrb[0].mxu0
        %v1546 = vpop.f32.mrb[0].mxu0
        %v1547 = vadd.f32 0.0, %v1546
        %v1548 = vpop.f32.mrb[0].mxu0
        %1549 = vmatprep.mubr.bf16.mxu0 0
        %1550 = vmatmul.mubr.bf16.gmra.mrb[0].mxu0 %v1314
        %v1551 = vpop.f32.mrb[0].mxu0
        %v1552 = vadd.f32 0.0, %v1551
        %v1553 = vpop.f32.mrb[0].mxu0
        %v1554 = vpop.f32.mrb[0].mxu0
        %v1555 = vadd.f32 0.0, %v1554
        %v1556 = vpop.f32.mrb[0].mxu0
        %1557 = vdwg.mxu0
        %v1558 = vadd.f32 %v1220, %v1416
        %v1559 = vadd.f32 %v1221, %v1419
        %v1560 = vadd.f32 %v1222, %v1424
        %v1561 = vadd.f32 %v1223, %v1427
        %v1562 = vadd.f32 %v1224, %v1432
        %v1563 = vadd.f32 %v1225, %v1435
        %v1564 = vadd.f32 %v1226, %v1440
        %v1565 = vadd.f32 %v1227, %v1443
        %v1566 = vadd.f32 %v1228, %v1448
        %v1567 = vadd.f32 %v1229, %v1451
        %v1568 = vadd.f32 %v1230, %v1456
        %v1569 = vadd.f32 %v1231, %v1459
        %v1570 = vadd.f32 %v1232, %v1464
        %v1571 = vadd.f32 %v1233, %v1467
        %v1572 = vadd.f32 %v1234, %v1472
        %v1573 = vadd.f32 %v1235, %v1475
        %v1574 = vadd.f32 %v1236, %v1480
        %v1575 = vadd.f32 %v1237, %v1483
        %v1576 = vadd.f32 %v1238, %v1488
        %v1577 = vadd.f32 %v1239, %v1491
        %v1578 = vadd.f32 %v1240, %v1496
        %v1579 = vadd.f32 %v1241, %v1499
        %v1580 = vadd.f32 %v1242, %v1504
        %v1581 = vadd.f32 %v1243, %v1507
        %v1582 = vadd.f32 %v1244, %v1512
        %v1583 = vadd.f32 %v1245, %v1515
        %v1584 = vadd.f32 %v1246, %v1520
        %v1585 = vadd.f32 %v1247, %v1523
        %v1586 = vadd.f32 %v1248, %v1528
        %v1587 = vadd.f32 %v1249, %v1531
        %v1588 = vadd.f32 %v1250, %v1536
        %v1589 = vadd.f32 %v1251, %v1539
        %v1590 = vadd.f32 %v1252, %v1544
        %v1591 = vadd.f32 %v1253, %v1547
        %v1592 = vadd.f32 %v1254, %v1552
        %v1593 = vadd.f32 %v1255, %v1555
        %v1594 = vld [vmem:[%s219 + $0x8] sm:$0xe]
        %v1595 = vld [vmem:[%s219 + $0xc] sm:$0xf]
        %v1596 = vld [vmem:[%s219 + $0x10] sm:$0xf]
        %v1597 = vld [vmem:[%s219 + $0x14] sm:$0xf]
        %v1598 = vld [vmem:[%s219 + $0x18] sm:$0xf]
        %v1599 = vld [vmem:[%s219 + $0x1c] sm:$0xf]
        %v1600 = vld [vmem:[%s219 + $0x20] sm:$0xf]
        %v1601 = vld [vmem:[%s219 + $0x24] sm:$0xf]
        %v1602 = vld [vmem:[%s219 + $0x28] sm:$0xf]
        %v1603 = vld [vmem:[%s219 + $0x2c] sm:$0xf]
        %v1604 = vld [vmem:[%s219 + $0x30] sm:$0xf]
        %v1605 = vld [vmem:[%s219 + $0x34] sm:$0xf]
        %v1606 = vld [vmem:[%s219 + $0x38] sm:$0xf]
        %v1607 = vld [vmem:[%s219 + $0x3c] sm:$0xf]
        %v1608 = vld [vmem:[%s219 + $0x40] sm:$0xf]
        %v1609 = vld [vmem:[%s219 + $0x44] sm:$0xf]
        %v1610 = vld [vmem:[%s219 + $0x48] sm:$0xf]
        %v1611 = vld [vmem:[%s219 + $0x4c] sm:$0xf]
        %v1612 = vld [vmem:[%s219 + $0x50] sm:$0xf]
        %v1613 = vld [vmem:[%s219 + $0x54] sm:$0xf]
        %v1614 = vld [vmem:[%s219 + $0x58] sm:$0xf]
        %v1615 = vld [vmem:[%s219 + $0x5c] sm:$0xf]
        %v1616 = vld [vmem:[%s219 + $0x60] sm:$0xf]
        %v1617 = vld [vmem:[%s219 + $0x64] sm:$0xf]
        %v1618 = vld [vmem:[%s219 + $0x68] sm:$0xf]
        %v1619 = vld [vmem:[%s219 + $0x6c] sm:$0xf]
        %v1620 = vld [vmem:[%s219 + $0x70] sm:$0xf]
        %v1621 = vld [vmem:[%s219 + $0x74] sm:$0xf]
        %v1622 = vld [vmem:[%s219 + $0x78] sm:$0xf]
        %v1623 = vld [vmem:[%s219 + $0x7c] sm:$0xf]
        %v1624 = vld [vmem:[%s219 + $0x80] sm:$0xf]
        %v1625 = vld [vmem:[%s219 + $0x84] sm:$0xf]
        %v1626 = vld [vmem:[%s219 + $0x88] sm:$0xf]
        %v1627 = vld [vmem:[%s219 + $0x8c] sm:$0xf]
        %v1628 = vld [vmem:[%s219 + $0x90] sm:$0xf]
        %v1629 = vld [vmem:[%s219 + $0x94] sm:$0xf]
        %v1630 = vld [vmem:[%s219 + $0x98] sm:$0x1]
        %s1631 = scalar_lea.vmem [#allocation5], 192
        %v1632 = vld [vmem:[%s1631] sm:$0xf]
        %v1633 = vld [vmem:[%s1631 + $0x4] sm:$0xf]
        %v1634 = vld [vmem:[%s1631 + $0x8] sm:$0xf]
        %v1635 = vld [vmem:[%s1631 + $0xc] sm:$0xf]
        %v1636 = vld [vmem:[%s1631 + $0x10] sm:$0xf]
        %v1637 = vld [vmem:[%s1631 + $0x14] sm:$0xf]
        %v1638 = vld [vmem:[%s1631 + $0x18] sm:$0xf]
        %v1639 = vld [vmem:[%s1631 + $0x1c] sm:$0xf]
        %v1640 = vld [vmem:[%s1631 + $0x20] sm:$0xf]
        %v1641 = vld [vmem:[%s1631 + $0x24] sm:$0xf]
        %v1642 = vld [vmem:[%s1631 + $0x28] sm:$0xf]
        %v1643 = vld [vmem:[%s1631 + $0x2c] sm:$0xf]
        %v1644 = vld [vmem:[%s1631 + $0x30] sm:$0xf]
        %v1645 = vld [vmem:[%s1631 + $0x34] sm:$0xf]
        %v1646 = vld [vmem:[%s1631 + $0x38] sm:$0xf]
        %v1647 = vld [vmem:[%s1631 + $0x3c] sm:$0xf]
        %v1685 = vunpack.c.l.b16 %v1594
        %v1686 = vunpack.c.l.b16 %v1595
        %v1687 = vunpack.c.l.b16 %v1596
        %v1688 = vunpack.c.l.b16 %v1597
        %v1689 = vunpack.c.l.b16 %v1598
        %v1690 = vunpack.c.l.b16 %v1599
        %v1691 = vunpack.c.l.b16 %v1600
        %v1692 = vunpack.c.l.b16 %v1601
        %v1693 = vunpack.c.l.b16 %v1602
        %v1694 = vunpack.c.l.b16 %v1603
        %v1695 = vunpack.c.l.b16 %v1604
        %v1696 = vunpack.c.l.b16 %v1605
        %v1697 = vunpack.c.l.b16 %v1606
        %v1698 = vunpack.c.l.b16 %v1607
        %v1699 = vunpack.c.l.b16 %v1608
        %v1700 = vunpack.c.l.b16 %v1609
        %v1701 = vunpack.c.l.b16 %v1610
        %v1702 = vunpack.c.l.b16 %v1611
        %v1703 = vunpack.c.l.b16 %v1612
        %v1704 = vunpack.c.l.b16 %v1613
        %v1705 = vunpack.c.l.b16 %v1614
        %v1706 = vunpack.c.l.b16 %v1615
        %v1707 = vunpack.c.l.b16 %v1616
        %v1708 = vunpack.c.l.b16 %v1617
        %v1709 = vunpack.c.l.b16 %v1618
        %v1710 = vunpack.c.l.b16 %v1619
        %v1711 = vunpack.c.l.b16 %v1620
        %v1712 = vunpack.c.l.b16 %v1621
        %v1713 = vunpack.c.l.b16 %v1622
        %v1714 = vunpack.c.l.b16 %v1623
        %v1715 = vunpack.c.l.b16 %v1624
        %v1716 = vunpack.c.l.b16 %v1625
        %v1717 = vunpack.c.l.b16 %v1626
        %v1718 = vunpack.c.l.b16 %v1627
        %v1719 = vunpack.c.l.b16 %v1628
        %v1720 = vunpack.c.l.b16 %v1629
        %v1721 = vunpack.c.l.b16 %v1630
        %v1722 = vpack.c.b16 %v1686, %v1685
        %v1723 = vpack.c.b16 %v1688, %v1687
        %v1724 = vpack.c.b16 %v1690, %v1689
        %v1725 = vpack.c.b16 %v1692, %v1691
        %v1726 = vpack.c.b16 %v1694, %v1693
        %v1727 = vpack.c.b16 %v1696, %v1695
        %v1728 = vpack.c.b16 %v1698, %v1697
        %v1729 = vpack.c.b16 %v1700, %v1699
        %v1730 = vpack.c.b16 %v1702, %v1701
        %v1731 = vpack.c.b16 %v1704, %v1703
        %v1732 = vpack.c.b16 %v1706, %v1705
        %v1733 = vpack.c.b16 %v1708, %v1707
        %v1734 = vpack.c.b16 %v1710, %v1709
        %v1735 = vpack.c.b16 %v1712, %v1711
        %v1736 = vpack.c.b16 %v1714, %v1713
        %v1737 = vpack.c.b16 %v1716, %v1715
        %v1738 = vpack.c.b16 %v1718, %v1717
        %v1739 = vpack.c.b16 %v1720, %v1719
        %v1740 = vpack.c.b16 %v1721, %v1721
        %v1741 = vrot.slane %v1722, 1
        %v1742 = vrot.slane %v1723, 1
        %v1743 = vsel %vm1277, %v1741, %v1742
        %v1744 = vrot.slane %v1724, 1
        %v1745 = vsel %vm1277, %v1742, %v1744
        %v1746 = vrot.slane %v1725, 1
        %v1747 = vsel %vm1277, %v1744, %v1746
        %v1748 = vrot.slane %v1726, 1
        %v1749 = vsel %vm1277, %v1746, %v1748
        %v1750 = vrot.slane %v1727, 1
        %v1751 = vsel %vm1277, %v1748, %v1750
        %v1752 = vrot.slane %v1728, 1
        %v1753 = vsel %vm1277, %v1750, %v1752
        %v1754 = vrot.slane %v1729, 1
        %v1755 = vsel %vm1277, %v1752, %v1754
        %v1756 = vrot.slane %v1730, 1
        %v1757 = vsel %vm1277, %v1754, %v1756
        %v1758 = vrot.slane %v1731, 1
        %v1759 = vsel %vm1277, %v1756, %v1758
        %v1760 = vrot.slane %v1732, 1
        %v1761 = vsel %vm1277, %v1758, %v1760
        %v1762 = vrot.slane %v1733, 1
        %v1763 = vsel %vm1277, %v1760, %v1762
        %v1764 = vrot.slane %v1734, 1
        %v1765 = vsel %vm1277, %v1762, %v1764
        %v1766 = vrot.slane %v1735, 1
        %v1767 = vsel %vm1277, %v1764, %v1766
        %v1768 = vrot.slane %v1736, 1
        %v1769 = vsel %vm1277, %v1766, %v1768
        %v1770 = vrot.slane %v1737, 1
        %v1771 = vsel %vm1277, %v1768, %v1770
        %v1772 = vrot.slane %v1738, 1
        %v1773 = vsel %vm1277, %v1770, %v1772
        %v1774 = vrot.slane %v1739, 1
        %v1775 = vsel %vm1277, %v1772, %v1774
        %v1776 = vrot.slane %v1740, 1
        %v1777 = vsel %vm1277, %v1774, %v1776
        %v1812 = vunpack.c.l.b16 %v1632
        %v1813 = vunpack.c.l.b16 %v1633
        %v1814 = vunpack.c.l.b16 %v1634
        %v1815 = vunpack.c.l.b16 %v1635
        %v1816 = vunpack.c.l.b16 %v1636
        %v1817 = vunpack.c.l.b16 %v1637
        %v1818 = vunpack.c.l.b16 %v1638
        %v1819 = vunpack.c.l.b16 %v1639
        %v1820 = vunpack.c.l.b16 %v1640
        %v1821 = vunpack.c.l.b16 %v1641
        %v1822 = vunpack.c.l.b16 %v1642
        %v1823 = vunpack.c.l.b16 %v1643
        %v1824 = vunpack.c.l.b16 %v1644
        %v1825 = vunpack.c.l.b16 %v1645
        %v1826 = vunpack.c.l.b16 %v1646
        %v1827 = vunpack.c.l.b16 %v1647
        %v1828 = vpack.c.b16 %v1813, %v1812
        %v1829 = vpack.c.b16 %v1815, %v1814
        %v1830 = vpack.c.b16 %v1817, %v1816
        %v1831 = vpack.c.b16 %v1819, %v1818
        %v1832 = vpack.c.b16 %v1821, %v1820
        %v1833 = vpack.c.b16 %v1823, %v1822
        %v1834 = vpack.c.b16 %v1825, %v1824
        %v1835 = vpack.c.b16 %v1827, %v1826
        %1844 = vmatprep.subr.bf16.mxu0 0
        %1845 = vmatpush1.bf16.msra.mxu0 %v1828
        %1846 = vmatprep.subr.bf16.mxu0 0
        %1847 = vmatpush1.bf16.msra.mxu0 %v1829
        %1848 = vmatprep.subr.bf16.mxu0 0
        %1849 = vmatpush1.bf16.msra.mxu0 %v1830
        %1850 = vmatprep.subr.bf16.mxu0 0
        %1851 = vmatpush1.bf16.msra.mxu0 %v1831
        %1852 = vmatprep.subr.bf16.mxu0 0
        %1853 = vmatpush1.bf16.msra.mxu0 %v1832
        %1854 = vmatprep.subr.bf16.mxu0 0
        %1855 = vmatpush1.bf16.msra.mxu0 %v1833
        %1856 = vmatprep.subr.bf16.mxu0 0
        %1857 = vmatpush1.bf16.msra.mxu0 %v1834
        %1858 = vmatprep.subr.bf16.mxu0 0
        %1859 = vmatpush1.bf16.msra.mxu0 %v1835
        %1860 = vmatprep.subr.bf16.mxu0 0
        %1861 = vmatpush1.bf16.msra.mxu0 0
        %1862 = vmatprep.subr.bf16.mxu0 0
        %1863 = vmatpush1.bf16.msra.mxu0 0
        %1864 = vmatprep.subr.bf16.mxu0 0
        %1865 = vmatpush1.bf16.msra.mxu0 0
        %1866 = vmatprep.subr.bf16.mxu0 0
        %1867 = vmatpush1.bf16.msra.mxu0 0
        %1868 = vmatprep.subr.bf16.mxu0 0
        %1869 = vmatpush1.bf16.msra.mxu0 0
        %1870 = vmatprep.subr.bf16.mxu0 0
        %1871 = vmatpush1.bf16.msra.mxu0 0
        %1872 = vmatprep.subr.bf16.mxu0 0
        %1873 = vmatpush1.bf16.msra.mxu0 0
        %1874 = vmatprep.subr.bf16.mxu0 0
        %1875 = vmatpush1.bf16.msra.mxu0 0
        %1876 = vmatprep.mubr.bf16.mxu0 0
        %1877 = vmatmul.mubr.bf16.gmra.mrb[0].mxu0 %v1743
        %v1878 = vpop.f32.mrb[0].mxu0
        %v1879 = vadd.f32 0.0, %v1878
        %v1880 = vpop.f32.mrb[0].mxu0
        %v1881 = vpop.f32.mrb[0].mxu0
        %v1882 = vadd.f32 0.0, %v1881
        %v1883 = vpop.f32.mrb[0].mxu0
        %1884 = vmatprep.mubr.bf16.mxu0 0
        %1885 = vmatmul.mubr.bf16.gmra.mrb[0].mxu0 %v1745
        %v1886 = vpop.f32.mrb[0].mxu0
        %v1887 = vadd.f32 0.0, %v1886
        %v1888 = vpop.f32.mrb[0].mxu0
        %v1889 = vpop.f32.mrb[0].mxu0
        %v1890 = vadd.f32 0.0, %v1889
        %v1891 = vpop.f32.mrb[0].mxu0
        %1892 = vmatprep.mubr.bf16.mxu0 0
        %1893 = vmatmul.mubr.bf16.gmra.mrb[0].mxu0 %v1747
        %v1894 = vpop.f32.mrb[0].mxu0
        %v1895 = vadd.f32 0.0, %v1894
        %v1896 = vpop.f32.mrb[0].mxu0
        %v1897 = vpop.f32.mrb[0].mxu0
        %v1898 = vadd.f32 0.0, %v1897
        %v1899 = vpop.f32.mrb[0].mxu0
        %1900 = vmatprep.mubr.bf16.mxu0 0
        %1901 = vmatmul.mubr.bf16.gmra.mrb[0].mxu0 %v1749
        %v1902 = vpop.f32.mrb[0].mxu0
        %v1903 = vadd.f32 0.0, %v1902
        %v1904 = vpop.f32.mrb[0].mxu0
        %v1905 = vpop.f32.mrb[0].mxu0
        %v1906 = vadd.f32 0.0, %v1905
        %v1907 = vpop.f32.mrb[0].mxu0
        %1908 = vmatprep.mubr.bf16.mxu0 0
        %1909 = vmatmul.mubr.bf16.gmra.mrb[0].mxu0 %v1751
        %v1910 = vpop.f32.mrb[0].mxu0
        %v1911 = vadd.f32 0.0, %v1910
        %v1912 = vpop.f32.mrb[0].mxu0
        %v1913 = vpop.f32.mrb[0].mxu0
        %v1914 = vadd.f32 0.0, %v1913
        %v1915 = vpop.f32.mrb[0].mxu0
        %1916 = vmatprep.mubr.bf16.mxu0 0
        %1917 = vmatmul.mubr.bf16.gmra.mrb[0].mxu0 %v1753
        %v1918 = vpop.f32.mrb[0].mxu0
        %v1919 = vadd.f32 0.0, %v1918
        %v1920 = vpop.f32.mrb[0].mxu0
        %v1921 = vpop.f32.mrb[0].mxu0
        %v1922 = vadd.f32 0.0, %v1921
        %v1923 = vpop.f32.mrb[0].mxu0
        %1924 = vmatprep.mubr.bf16.mxu0 0
        %1925 = vmatmul.mubr.bf16.gmra.mrb[0].mxu0 %v1755
        %v1926 = vpop.f32.mrb[0].mxu0
        %v1927 = vadd.f32 0.0, %v1926
        %v1928 = vpop.f32.mrb[0].mxu0
        %v1929 = vpop.f32.mrb[0].mxu0
        %v1930 = vadd.f32 0.0, %v1929
        %v1931 = vpop.f32.mrb[0].mxu0
        %1932 = vmatprep.mubr.bf16.mxu0 0
        %1933 = vmatmul.mubr.bf16.gmra.mrb[0].mxu0 %v1757
        %v1934 = vpop.f32.mrb[0].mxu0
        %v1935 = vadd.f32 0.0, %v1934
        %v1936 = vpop.f32.mrb[0].mxu0
        %v1937 = vpop.f32.mrb[0].mxu0
        %v1938 = vadd.f32 0.0, %v1937
        %v1939 = vpop.f32.mrb[0].mxu0
        %1940 = vmatprep.mubr.bf16.mxu0 0
        %1941 = vmatmul.mubr.bf16.gmra.mrb[0].mxu0 %v1759
        %v1942 = vpop.f32.mrb[0].mxu0
        %v1943 = vadd.f32 0.0, %v1942
        %v1944 = vpop.f32.mrb[0].mxu0
        %v1945 = vpop.f32.mrb[0].mxu0
        %v1946 = vadd.f32 0.0, %v1945
        %v1947 = vpop.f32.mrb[0].mxu0
        %1948 = vmatprep.mubr.bf16.mxu0 0
        %1949 = vmatmul.mubr.bf16.gmra.mrb[0].mxu0 %v1761
        %v1950 = vpop.f32.mrb[0].mxu0
        %v1951 = vadd.f32 0.0, %v1950
        %v1952 = vpop.f32.mrb[0].mxu0
        %v1953 = vpop.f32.mrb[0].mxu0
        %v1954 = vadd.f32 0.0, %v1953
        %v1955 = vpop.f32.mrb[0].mxu0
        %1956 = vmatprep.mubr.bf16.mxu0 0
        %1957 = vmatmul.mubr.bf16.gmra.mrb[0].mxu0 %v1763
        %v1958 = vpop.f32.mrb[0].mxu0
        %v1959 = vadd.f32 0.0, %v1958
        %v1960 = vpop.f32.mrb[0].mxu0
        %v1961 = vpop.f32.mrb[0].mxu0
        %v1962 = vadd.f32 0.0, %v1961
        %v1963 = vpop.f32.mrb[0].mxu0
        %1964 = vmatprep.mubr.bf16.mxu0 0
        %1965 = vmatmul.mubr.bf16.gmra.mrb[0].mxu0 %v1765
        %v1966 = vpop.f32.mrb[0].mxu0
        %v1967 = vadd.f32 0.0, %v1966
        %v1968 = vpop.f32.mrb[0].mxu0
        %v1969 = vpop.f32.mrb[0].mxu0
        %v1970 = vadd.f32 0.0, %v1969
        %v1971 = vpop.f32.mrb[0].mxu0
        %1972 = vmatprep.mubr.bf16.mxu0 0
        %1973 = vmatmul.mubr.bf16.gmra.mrb[0].mxu0 %v1767
        %v1974 = vpop.f32.mrb[0].mxu0
        %v1975 = vadd.f32 0.0, %v1974
        %v1976 = vpop.f32.mrb[0].mxu0
        %v1977 = vpop.f32.mrb[0].mxu0
        %v1978 = vadd.f32 0.0, %v1977
        %v1979 = vpop.f32.mrb[0].mxu0
        %1980 = vmatprep.mubr.bf16.mxu0 0
        %1981 = vmatmul.mubr.bf16.gmra.mrb[0].mxu0 %v1769
        %v1982 = vpop.f32.mrb[0].mxu0
        %v1983 = vadd.f32 0.0, %v1982
        %v1984 = vpop.f32.mrb[0].mxu0
        %v1985 = vpop.f32.mrb[0].mxu0
        %v1986 = vadd.f32 0.0, %v1985
        %v1987 = vpop.f32.mrb[0].mxu0
        %1988 = vmatprep.mubr.bf16.mxu0 0
        %1989 = vmatmul.mubr.bf16.gmra.mrb[0].mxu0 %v1771
        %v1990 = vpop.f32.mrb[0].mxu0
        %v1991 = vadd.f32 0.0, %v1990
        %v1992 = vpop.f32.mrb[0].mxu0
        %v1993 = vpop.f32.mrb[0].mxu0
        %v1994 = vadd.f32 0.0, %v1993
        %v1995 = vpop.f32.mrb[0].mxu0
        %1996 = vmatprep.mubr.bf16.mxu0 0
        %1997 = vmatmul.mubr.bf16.gmra.mrb[0].mxu0 %v1773
        %v1998 = vpop.f32.mrb[0].mxu0
        %v1999 = vadd.f32 0.0, %v1998
        %v2000 = vpop.f32.mrb[0].mxu0
        %v2001 = vpop.f32.mrb[0].mxu0
        %v2002 = vadd.f32 0.0, %v2001
        %v2003 = vpop.f32.mrb[0].mxu0
        %2004 = vmatprep.mubr.bf16.mxu0 0
        %2005 = vmatmul.mubr.bf16.gmra.mrb[0].mxu0 %v1775
        %v2006 = vpop.f32.mrb[0].mxu0
        %v2007 = vadd.f32 0.0, %v2006
        %v2008 = vpop.f32.mrb[0].mxu0
        %v2009 = vpop.f32.mrb[0].mxu0
        %v2010 = vadd.f32 0.0, %v2009
        %v2011 = vpop.f32.mrb[0].mxu0
        %2012 = vmatprep.mubr.bf16.mxu0 0
        %2013 = vmatmul.mubr.bf16.gmra.mrb[0].mxu0 %v1777
        %v2014 = vpop.f32.mrb[0].mxu0
        %v2015 = vadd.f32 0.0, %v2014
        %v2016 = vpop.f32.mrb[0].mxu0
        %v2017 = vpop.f32.mrb[0].mxu0
        %v2018 = vadd.f32 0.0, %v2017
        %v2019 = vpop.f32.mrb[0].mxu0
        %2020 = vdwg.mxu0
        %v2021 = vadd.f32 %v1558, %v1879
        %v2022 = vadd.f32 %v1559, %v1882
        %v2023 = vadd.f32 %v1560, %v1887
        %v2024 = vadd.f32 %v1561, %v1890
        %v2025 = vadd.f32 %v1562, %v1895
        %v2026 = vadd.f32 %v1563, %v1898
        %v2027 = vadd.f32 %v1564, %v1903
        %v2028 = vadd.f32 %v1565, %v1906
        %v2029 = vadd.f32 %v1566, %v1911
        %v2030 = vadd.f32 %v1567, %v1914
        %v2031 = vadd.f32 %v1568, %v1919
        %v2032 = vadd.f32 %v1569, %v1922
        %v2033 = vadd.f32 %v1570, %v1927
        %v2034 = vadd.f32 %v1571, %v1930
        %v2035 = vadd.f32 %v1572, %v1935
        %v2036 = vadd.f32 %v1573, %v1938
        %v2037 = vadd.f32 %v1574, %v1943
        %v2038 = vadd.f32 %v1575, %v1946
        %v2039 = vadd.f32 %v1576, %v1951
        %v2040 = vadd.f32 %v1577, %v1954
        %v2041 = vadd.f32 %v1578, %v1959
        %v2042 = vadd.f32 %v1579, %v1962
        %v2043 = vadd.f32 %v1580, %v1967
        %v2044 = vadd.f32 %v1581, %v1970
        %v2045 = vadd.f32 %v1582, %v1975
        %v2046 = vadd.f32 %v1583, %v1978
        %v2047 = vadd.f32 %v1584, %v1983
        %v2048 = vadd.f32 %v1585, %v1986
        %v2049 = vadd.f32 %v1586, %v1991
        %v2050 = vadd.f32 %v1587, %v1994
        %v2051 = vadd.f32 %v1588, %v1999
        %v2052 = vadd.f32 %v1589, %v2002
        %v2053 = vadd.f32 %v1590, %v2007
        %v2054 = vadd.f32 %v1591, %v2010
        %v2055 = vadd.f32 %v1592, %v2015
        %v2056 = vadd.f32 %v1593, %v2018
        %v2057 = vld [vmem:[%s219 + $0x98] sm:$0x3]
        %s2058 = scalar_lea.vmem [#allocation5], 256
        %v2059 = vld [vmem:[%s2058] sm:$0xf]
        %v2060 = vld [vmem:[%s2058 + $0x4] sm:$0xf]
        %v2061 = vld [vmem:[%s2058 + $0x8] sm:$0xf]
        %v2062 = vld [vmem:[%s2058 + $0xc] sm:$0xf]
        %v2063 = vld [vmem:[%s2058 + $0x10] sm:$0xf]
        %v2064 = vld [vmem:[%s2058 + $0x14] sm:$0xf]
        %v2065 = vld [vmem:[%s2058 + $0x18] sm:$0xf]
        %v2066 = vld [vmem:[%s2058 + $0x1c] sm:$0xf]
        %v2067 = vld [vmem:[%s2058 + $0x20] sm:$0xf]
        %v2068 = vld [vmem:[%s2058 + $0x24] sm:$0xf]
        %v2069 = vld [vmem:[%s2058 + $0x28] sm:$0xf]
        %v2070 = vld [vmem:[%s2058 + $0x2c] sm:$0xf]
        %v2071 = vld [vmem:[%s2058 + $0x30] sm:$0xf]
        %v2072 = vld [vmem:[%s2058 + $0x34] sm:$0xf]
        %v2073 = vld [vmem:[%s2058 + $0x38] sm:$0xf]
        %v2074 = vld [vmem:[%s2058 + $0x3c] sm:$0xf]
        %v2076 = vunpack.c.l.b16 %v2057
        %v2077 = vpack.c.b16 %v2076, %v2076
        %vm2078 = vsmask.f32 6400
        %v2080 = vshrl.u32 %v1722, 16
        %v2082 = vrot.slane %v2080, 1
        %v2083 = vshll.u32 %v1722, 16
        %v2085 = vrot.slane %v2083, 2
        %v2086 = vor.u32 %v2082, %v2085
        %v2088 = vshrl.u32 %v1723, 16
        %v2090 = vrot.slane %v2088, 1
        %v2091 = vshll.u32 %v1723, 16
        %v2093 = vrot.slane %v2091, 2
        %v2094 = vor.u32 %v2090, %v2093
        %v2095 = vsel %vm2078, %v2086, %v2094
        %v2097 = vshrl.u32 %v1724, 16
        %v2099 = vrot.slane %v2097, 1
        %v2100 = vshll.u32 %v1724, 16
        %v2102 = vrot.slane %v2100, 2
        %v2103 = vor.u32 %v2099, %v2102
        %v2104 = vsel %vm2078, %v2094, %v2103
        %v2106 = vshrl.u32 %v1725, 16
        %v2108 = vrot.slane %v2106, 1
        %v2109 = vshll.u32 %v1725, 16
        %v2111 = vrot.slane %v2109, 2
        %v2112 = vor.u32 %v2108, %v2111
        %v2113 = vsel %vm2078, %v2103, %v2112
        %v2115 = vshrl.u32 %v1726, 16
        %v2117 = vrot.slane %v2115, 1
        %v2118 = vshll.u32 %v1726, 16
        %v2120 = vrot.slane %v2118, 2
        %v2121 = vor.u32 %v2117, %v2120
        %v2122 = vsel %vm2078, %v2112, %v2121
        %v2124 = vshrl.u32 %v1727, 16
        %v2126 = vrot.slane %v2124, 1
        %v2127 = vshll.u32 %v1727, 16
        %v2129 = vrot.slane %v2127, 2
        %v2130 = vor.u32 %v2126, %v2129
        %v2131 = vsel %vm2078, %v2121, %v2130
        %v2133 = vshrl.u32 %v1728, 16
        %v2135 = vrot.slane %v2133, 1
        %v2136 = vshll.u32 %v1728, 16
        %v2138 = vrot.slane %v2136, 2
        %v2139 = vor.u32 %v2135, %v2138
        %v2140 = vsel %vm2078, %v2130, %v2139
        %v2142 = vshrl.u32 %v1729, 16
        %v2144 = vrot.slane %v2142, 1
        %v2145 = vshll.u32 %v1729, 16
        %v2147 = vrot.slane %v2145, 2
        %v2148 = vor.u32 %v2144, %v2147
        %v2149 = vsel %vm2078, %v2139, %v2148
        %v2151 = vshrl.u32 %v1730, 16
        %v2153 = vrot.slane %v2151, 1
        %v2154 = vshll.u32 %v1730, 16
        %v2156 = vrot.slane %v2154, 2
        %v2157 = vor.u32 %v2153, %v2156
        %v2158 = vsel %vm2078, %v2148, %v2157
        %v2160 = vshrl.u32 %v1731, 16
        %v2162 = vrot.slane %v2160, 1
        %v2163 = vshll.u32 %v1731, 16
        %v2165 = vrot.slane %v2163, 2
        %v2166 = vor.u32 %v2162, %v2165
        %v2167 = vsel %vm2078, %v2157, %v2166
        %v2169 = vshrl.u32 %v1732, 16
        %v2171 = vrot.slane %v2169, 1
        %v2172 = vshll.u32 %v1732, 16
        %v2174 = vrot.slane %v2172, 2
        %v2175 = vor.u32 %v2171, %v2174
        %v2176 = vsel %vm2078, %v2166, %v2175
        %v2178 = vshrl.u32 %v1733, 16
        %v2180 = vrot.slane %v2178, 1
        %v2181 = vshll.u32 %v1733, 16
        %v2183 = vrot.slane %v2181, 2
        %v2184 = vor.u32 %v2180, %v2183
        %v2185 = vsel %vm2078, %v2175, %v2184
        %v2187 = vshrl.u32 %v1734, 16
        %v2189 = vrot.slane %v2187, 1
        %v2190 = vshll.u32 %v1734, 16
        %v2192 = vrot.slane %v2190, 2
        %v2193 = vor.u32 %v2189, %v2192
        %v2194 = vsel %vm2078, %v2184, %v2193
        %v2196 = vshrl.u32 %v1735, 16
        %v2198 = vrot.slane %v2196, 1
        %v2199 = vshll.u32 %v1735, 16
        %v2201 = vrot.slane %v2199, 2
        %v2202 = vor.u32 %v2198, %v2201
        %v2203 = vsel %vm2078, %v2193, %v2202
        %v2205 = vshrl.u32 %v1736, 16
        %v2207 = vrot.slane %v2205, 1
        %v2208 = vshll.u32 %v1736, 16
        %v2210 = vrot.slane %v2208, 2
        %v2211 = vor.u32 %v2207, %v2210
        %v2212 = vsel %vm2078, %v2202, %v2211
        %v2214 = vshrl.u32 %v1737, 16
        %v2216 = vrot.slane %v2214, 1
        %v2217 = vshll.u32 %v1737, 16
        %v2219 = vrot.slane %v2217, 2
        %v2220 = vor.u32 %v2216, %v2219
        %v2221 = vsel %vm2078, %v2211, %v2220
        %v2223 = vshrl.u32 %v1738, 16
        %v2225 = vrot.slane %v2223, 1
        %v2226 = vshll.u32 %v1738, 16
        %v2228 = vrot.slane %v2226, 2
        %v2229 = vor.u32 %v2225, %v2228
        %v2230 = vsel %vm2078, %v2220, %v2229
        %v2232 = vshrl.u32 %v1739, 16
        %v2234 = vrot.slane %v2232, 1
        %v2235 = vshll.u32 %v1739, 16
        %v2237 = vrot.slane %v2235, 2
        %v2238 = vor.u32 %v2234, %v2237
        %v2239 = vsel %vm2078, %v2229, %v2238
        %v2241 = vshrl.u32 %v2077, 16
        %v2243 = vrot.slane %v2241, 1
        %v2244 = vshll.u32 %v2077, 16
        %v2246 = vrot.slane %v2244, 2
        %v2247 = vor.u32 %v2243, %v2246
        %v2248 = vsel %vm2078, %v2238, %v2247
        %v2283 = vunpack.c.l.b16 %v2059
        %v2284 = vunpack.c.l.b16 %v2060
        %v2285 = vunpack.c.l.b16 %v2061
        %v2286 = vunpack.c.l.b16 %v2062
        %v2287 = vunpack.c.l.b16 %v2063
        %v2288 = vunpack.c.l.b16 %v2064
        %v2289 = vunpack.c.l.b16 %v2065
        %v2290 = vunpack.c.l.b16 %v2066
        %v2291 = vunpack.c.l.b16 %v2067
        %v2292 = vunpack.c.l.b16 %v2068
        %v2293 = vunpack.c.l.b16 %v2069
        %v2294 = vunpack.c.l.b16 %v2070
        %v2295 = vunpack.c.l.b16 %v2071
        %v2296 = vunpack.c.l.b16 %v2072
        %v2297 = vunpack.c.l.b16 %v2073
        %v2298 = vunpack.c.l.b16 %v2074
        %v2299 = vpack.c.b16 %v2284, %v2283
        %v2300 = vpack.c.b16 %v2286, %v2285
        %v2301 = vpack.c.b16 %v2288, %v2287
        %v2302 = vpack.c.b16 %v2290, %v2289
        %v2303 = vpack.c.b16 %v2292, %v2291
        %v2304 = vpack.c.b16 %v2294, %v2293
        %v2305 = vpack.c.b16 %v2296, %v2295
        %v2306 = vpack.c.b16 %v2298, %v2297
        %2315 = vmatprep.subr.bf16.mxu0 0
        %2316 = vmatpush1.bf16.msra.mxu0 %v2299
        %2317 = vmatprep.subr.bf16.mxu0 0
        %2318 = vmatpush1.bf16.msra.mxu0 %v2300
        %2319 = vmatprep.subr.bf16.mxu0 0
        %2320 = vmatpush1.bf16.msra.mxu0 %v2301
        %2321 = vmatprep.subr.bf16.mxu0 0
        %2322 = vmatpush1.bf16.msra.mxu0 %v2302
        %2323 = vmatprep.subr.bf16.mxu0 0
        %2324 = vmatpush1.bf16.msra.mxu0 %v2303
        %2325 = vmatprep.subr.bf16.mxu0 0
        %2326 = vmatpush1.bf16.msra.mxu0 %v2304
        %2327 = vmatprep.subr.bf16.mxu0 0
        %2328 = vmatpush1.bf16.msra.mxu0 %v2305
        %2329 = vmatprep.subr.bf16.mxu0 0
        %2330 = vmatpush1.bf16.msra.mxu0 %v2306
        %2331 = vmatprep.subr.bf16.mxu0 0
        %2332 = vmatpush1.bf16.msra.mxu0 0
        %2333 = vmatprep.subr.bf16.mxu0 0
        %2334 = vmatpush1.bf16.msra.mxu0 0
        %2335 = vmatprep.subr.bf16.mxu0 0
        %2336 = vmatpush1.bf16.msra.mxu0 0
        %2337 = vmatprep.subr.bf16.mxu0 0
        %2338 = vmatpush1.bf16.msra.mxu0 0
        %2339 = vmatprep.subr.bf16.mxu0 0
        %2340 = vmatpush1.bf16.msra.mxu0 0
        %2341 = vmatprep.subr.bf16.mxu0 0
        %2342 = vmatpush1.bf16.msra.mxu0 0
        %2343 = vmatprep.subr.bf16.mxu0 0
        %2344 = vmatpush1.bf16.msra.mxu0 0
        %2345 = vmatprep.subr.bf16.mxu0 0
        %2346 = vmatpush1.bf16.msra.mxu0 0
        %2347 = vmatprep.mubr.bf16.mxu0 0
        %2348 = vmatmul.mubr.bf16.gmra.mrb[0].mxu0 %v2095
        %v2349 = vpop.f32.mrb[0].mxu0
        %v2350 = vadd.f32 0.0, %v2349
        %v2351 = vpop.f32.mrb[0].mxu0
        %v2352 = vpop.f32.mrb[0].mxu0
        %v2353 = vadd.f32 0.0, %v2352
        %v2354 = vpop.f32.mrb[0].mxu0
        %2355 = vmatprep.mubr.bf16.mxu0 0
        %2356 = vmatmul.mubr.bf16.gmra.mrb[0].mxu0 %v2104
        %v2357 = vpop.f32.mrb[0].mxu0
        %v2358 = vadd.f32 0.0, %v2357
        %v2359 = vpop.f32.mrb[0].mxu0
        %v2360 = vpop.f32.mrb[0].mxu0
        %v2361 = vadd.f32 0.0, %v2360
        %v2362 = vpop.f32.mrb[0].mxu0
        %2363 = vmatprep.mubr.bf16.mxu0 0
        %2364 = vmatmul.mubr.bf16.gmra.mrb[0].mxu0 %v2113
        %v2365 = vpop.f32.mrb[0].mxu0
        %v2366 = vadd.f32 0.0, %v2365
        %v2367 = vpop.f32.mrb[0].mxu0
        %v2368 = vpop.f32.mrb[0].mxu0
        %v2369 = vadd.f32 0.0, %v2368
        %v2370 = vpop.f32.mrb[0].mxu0
        %2371 = vmatprep.mubr.bf16.mxu0 0
        %2372 = vmatmul.mubr.bf16.gmra.mrb[0].mxu0 %v2122
        %v2373 = vpop.f32.mrb[0].mxu0
        %v2374 = vadd.f32 0.0, %v2373
        %v2375 = vpop.f32.mrb[0].mxu0
        %v2376 = vpop.f32.mrb[0].mxu0
        %v2377 = vadd.f32 0.0, %v2376
        %v2378 = vpop.f32.mrb[0].mxu0
        %2379 = vmatprep.mubr.bf16.mxu0 0
        %2380 = vmatmul.mubr.bf16.gmra.mrb[0].mxu0 %v2131
        %v2381 = vpop.f32.mrb[0].mxu0
        %v2382 = vadd.f32 0.0, %v2381
        %v2383 = vpop.f32.mrb[0].mxu0
        %v2384 = vpop.f32.mrb[0].mxu0
        %v2385 = vadd.f32 0.0, %v2384
        %v2386 = vpop.f32.mrb[0].mxu0
        %2387 = vmatprep.mubr.bf16.mxu0 0
        %2388 = vmatmul.mubr.bf16.gmra.mrb[0].mxu0 %v2140
        %v2389 = vpop.f32.mrb[0].mxu0
        %v2390 = vadd.f32 0.0, %v2389
        %v2391 = vpop.f32.mrb[0].mxu0
        %v2392 = vpop.f32.mrb[0].mxu0
        %v2393 = vadd.f32 0.0, %v2392
        %v2394 = vpop.f32.mrb[0].mxu0
        %2395 = vmatprep.mubr.bf16.mxu0 0
        %2396 = vmatmul.mubr.bf16.gmra.mrb[0].mxu0 %v2149
        %v2397 = vpop.f32.mrb[0].mxu0
        %v2398 = vadd.f32 0.0, %v2397
        %v2399 = vpop.f32.mrb[0].mxu0
        %v2400 = vpop.f32.mrb[0].mxu0
        %v2401 = vadd.f32 0.0, %v2400
        %v2402 = vpop.f32.mrb[0].mxu0
        %2403 = vmatprep.mubr.bf16.mxu0 0
        %2404 = vmatmul.mubr.bf16.gmra.mrb[0].mxu0 %v2158
        %v2405 = vpop.f32.mrb[0].mxu0
        %v2406 = vadd.f32 0.0, %v2405
        %v2407 = vpop.f32.mrb[0].mxu0
        %v2408 = vpop.f32.mrb[0].mxu0
        %v2409 = vadd.f32 0.0, %v2408
        %v2410 = vpop.f32.mrb[0].mxu0
        %2411 = vmatprep.mubr.bf16.mxu0 0
        %2412 = vmatmul.mubr.bf16.gmra.mrb[0].mxu0 %v2167
        %v2413 = vpop.f32.mrb[0].mxu0
        %v2414 = vadd.f32 0.0, %v2413
        %v2415 = vpop.f32.mrb[0].mxu0
        %v2416 = vpop.f32.mrb[0].mxu0
        %v2417 = vadd.f32 0.0, %v2416
        %v2418 = vpop.f32.mrb[0].mxu0
        %2419 = vmatprep.mubr.bf16.mxu0 0
        %2420 = vmatmul.mubr.bf16.gmra.mrb[0].mxu0 %v2176
        %v2421 = vpop.f32.mrb[0].mxu0
        %v2422 = vadd.f32 0.0, %v2421
        %v2423 = vpop.f32.mrb[0].mxu0
        %v2424 = vpop.f32.mrb[0].mxu0
        %v2425 = vadd.f32 0.0, %v2424
        %v2426 = vpop.f32.mrb[0].mxu0
        %2427 = vmatprep.mubr.bf16.mxu0 0
        %2428 = vmatmul.mubr.bf16.gmra.mrb[0].mxu0 %v2185
        %v2429 = vpop.f32.mrb[0].mxu0
        %v2430 = vadd.f32 0.0, %v2429
        %v2431 = vpop.f32.mrb[0].mxu0
        %v2432 = vpop.f32.mrb[0].mxu0
        %v2433 = vadd.f32 0.0, %v2432
        %v2434 = vpop.f32.mrb[0].mxu0
        %2435 = vmatprep.mubr.bf16.mxu0 0
        %2436 = vmatmul.mubr.bf16.gmra.mrb[0].mxu0 %v2194
        %v2437 = vpop.f32.mrb[0].mxu0
        %v2438 = vadd.f32 0.0, %v2437
        %v2439 = vpop.f32.mrb[0].mxu0
        %v2440 = vpop.f32.mrb[0].mxu0
        %v2441 = vadd.f32 0.0, %v2440
        %v2442 = vpop.f32.mrb[0].mxu0
        %2443 = vmatprep.mubr.bf16.mxu0 0
        %2444 = vmatmul.mubr.bf16.gmra.mrb[0].mxu0 %v2203
        %v2445 = vpop.f32.mrb[0].mxu0
        %v2446 = vadd.f32 0.0, %v2445
        %v2447 = vpop.f32.mrb[0].mxu0
        %v2448 = vpop.f32.mrb[0].mxu0
        %v2449 = vadd.f32 0.0, %v2448
        %v2450 = vpop.f32.mrb[0].mxu0
        %2451 = vmatprep.mubr.bf16.mxu0 0
        %2452 = vmatmul.mubr.bf16.gmra.mrb[0].mxu0 %v2212
        %v2453 = vpop.f32.mrb[0].mxu0
        %v2454 = vadd.f32 0.0, %v2453
        %v2455 = vpop.f32.mrb[0].mxu0
        %v2456 = vpop.f32.mrb[0].mxu0
        %v2457 = vadd.f32 0.0, %v2456
        %v2458 = vpop.f32.mrb[0].mxu0
        %2459 = vmatprep.mubr.bf16.mxu0 0
        %2460 = vmatmul.mubr.bf16.gmra.mrb[0].mxu0 %v2221
        %v2461 = vpop.f32.mrb[0].mxu0
        %v2462 = vadd.f32 0.0, %v2461
        %v2463 = vpop.f32.mrb[0].mxu0
        %v2464 = vpop.f32.mrb[0].mxu0
        %v2465 = vadd.f32 0.0, %v2464
        %v2466 = vpop.f32.mrb[0].mxu0
        %2467 = vmatprep.mubr.bf16.mxu0 0
        %2468 = vmatmul.mubr.bf16.gmra.mrb[0].mxu0 %v2230
        %v2469 = vpop.f32.mrb[0].mxu0
        %v2470 = vadd.f32 0.0, %v2469
        %v2471 = vpop.f32.mrb[0].mxu0
        %v2472 = vpop.f32.mrb[0].mxu0
        %v2473 = vadd.f32 0.0, %v2472
        %v2474 = vpop.f32.mrb[0].mxu0
        %2475 = vmatprep.mubr.bf16.mxu0 0
        %2476 = vmatmul.mubr.bf16.gmra.mrb[0].mxu0 %v2239
        %v2477 = vpop.f32.mrb[0].mxu0
        %v2478 = vadd.f32 0.0, %v2477
        %v2479 = vpop.f32.mrb[0].mxu0
        %v2480 = vpop.f32.mrb[0].mxu0
        %v2481 = vadd.f32 0.0, %v2480
        %v2482 = vpop.f32.mrb[0].mxu0
        %2483 = vmatprep.mubr.bf16.mxu0 0
        %2484 = vmatmul.mubr.bf16.gmra.mrb[0].mxu0 %v2248
        %v2485 = vpop.f32.mrb[0].mxu0
        %v2486 = vadd.f32 0.0, %v2485
        %v2487 = vpop.f32.mrb[0].mxu0
        %v2488 = vpop.f32.mrb[0].mxu0
        %v2489 = vadd.f32 0.0, %v2488
        %v2490 = vpop.f32.mrb[0].mxu0
        %2491 = vdwg.mxu0
        %v2492 = vadd.f32 %v2021, %v2350
        %v2493 = vadd.f32 %v2022, %v2353
        %v2494 = vadd.f32 %v2023, %v2358
        %v2495 = vadd.f32 %v2024, %v2361
        %v2496 = vadd.f32 %v2025, %v2366
        %v2497 = vadd.f32 %v2026, %v2369
        %v2498 = vadd.f32 %v2027, %v2374
        %v2499 = vadd.f32 %v2028, %v2377
        %v2500 = vadd.f32 %v2029, %v2382
        %v2501 = vadd.f32 %v2030, %v2385
        %v2502 = vadd.f32 %v2031, %v2390
        %v2503 = vadd.f32 %v2032, %v2393
        %v2504 = vadd.f32 %v2033, %v2398
        %v2505 = vadd.f32 %v2034, %v2401
        %v2506 = vadd.f32 %v2035, %v2406
        %v2507 = vadd.f32 %v2036, %v2409
        %v2508 = vadd.f32 %v2037, %v2414
        %v2509 = vadd.f32 %v2038, %v2417
        %v2510 = vadd.f32 %v2039, %v2422
        %v2511 = vadd.f32 %v2040, %v2425
        %v2512 = vadd.f32 %v2041, %v2430
        %v2513 = vadd.f32 %v2042, %v2433
        %v2514 = vadd.f32 %v2043, %v2438
        %v2515 = vadd.f32 %v2044, %v2441
        %v2516 = vadd.f32 %v2045, %v2446
        %v2517 = vadd.f32 %v2046, %v2449
        %v2518 = vadd.f32 %v2047, %v2454
        %v2519 = vadd.f32 %v2048, %v2457
        %v2520 = vadd.f32 %v2049, %v2462
        %v2521 = vadd.f32 %v2050, %v2465
        %v2522 = vadd.f32 %v2051, %v2470
        %v2523 = vadd.f32 %v2052, %v2473
        %v2524 = vadd.f32 %v2053, %v2478
        %v2525 = vadd.f32 %v2054, %v2481
        %v2526 = vadd.f32 %v2055, %v2486
        %v2527 = vadd.f32 %v2056, %v2489
        %v2528 = vld [vmem:[%s219 + $0x8] sm:$0xc]
        %s2529 = scalar_lea.vmem [#allocation5], 320
        %v2530 = vld [vmem:[%s2529] sm:$0xf]
        %v2531 = vld [vmem:[%s2529 + $0x4] sm:$0xf]
        %v2532 = vld [vmem:[%s2529 + $0x8] sm:$0xf]
        %v2533 = vld [vmem:[%s2529 + $0xc] sm:$0xf]
        %v2534 = vld [vmem:[%s2529 + $0x10] sm:$0xf]
        %v2535 = vld [vmem:[%s2529 + $0x14] sm:$0xf]
        %v2536 = vld [vmem:[%s2529 + $0x18] sm:$0xf]
        %v2537 = vld [vmem:[%s2529 + $0x1c] sm:$0xf]
        %v2538 = vld [vmem:[%s2529 + $0x20] sm:$0xf]
        %v2539 = vld [vmem:[%s2529 + $0x24] sm:$0xf]
        %v2540 = vld [vmem:[%s2529 + $0x28] sm:$0xf]
        %v2541 = vld [vmem:[%s2529 + $0x2c] sm:$0xf]
        %v2542 = vld [vmem:[%s2529 + $0x30] sm:$0xf]
        %v2543 = vld [vmem:[%s2529 + $0x34] sm:$0xf]
        %v2544 = vld [vmem:[%s2529 + $0x38] sm:$0xf]
        %v2545 = vld [vmem:[%s2529 + $0x3c] sm:$0xf]
        %v2547 = vunpack.c.l.b16 %v2528
        %v2548 = vpack.c.b16 %v1686, %v2547
        %vm2549 = vcmask 1045504
        %v2550 = vrot.slane %v2548, 2
        %v2551 = vrot.slane %v1723, 2
        %v2552 = vsel %vm2549, %v2550, %v2551
        %v2553 = vrot.slane %v1724, 2
        %v2554 = vsel %vm2549, %v2551, %v2553
        %v2555 = vrot.slane %v1725, 2
        %v2556 = vsel %vm2549, %v2553, %v2555
        %v2557 = vrot.slane %v1726, 2
        %v2558 = vsel %vm2549, %v2555, %v2557
        %v2559 = vrot.slane %v1727, 2
        %v2560 = vsel %vm2549, %v2557, %v2559
        %v2561 = vrot.slane %v1728, 2
        %v2562 = vsel %vm2549, %v2559, %v2561
        %v2563 = vrot.slane %v1729, 2
        %v2564 = vsel %vm2549, %v2561, %v2563
        %v2565 = vrot.slane %v1730, 2
        %v2566 = vsel %vm2549, %v2563, %v2565
        %v2567 = vrot.slane %v1731, 2
        %v2568 = vsel %vm2549, %v2565, %v2567
        %v2569 = vrot.slane %v1732, 2
        %v2570 = vsel %vm2549, %v2567, %v2569
        %v2571 = vrot.slane %v1733, 2
        %v2572 = vsel %vm2549, %v2569, %v2571
        %v2573 = vrot.slane %v1734, 2
        %v2574 = vsel %vm2549, %v2571, %v2573
        %v2575 = vrot.slane %v1735, 2
        %v2576 = vsel %vm2549, %v2573, %v2575
        %v2577 = vrot.slane %v1736, 2
        %v2578 = vsel %vm2549, %v2575, %v2577
        %v2579 = vrot.slane %v1737, 2
        %v2580 = vsel %vm2549, %v2577, %v2579
        %v2581 = vrot.slane %v1738, 2
        %v2582 = vsel %vm2549, %v2579, %v2581
        %v2583 = vrot.slane %v1739, 2
        %v2584 = vsel %vm2549, %v2581, %v2583
        %v2585 = vrot.slane %v2077, 2
        %v2586 = vsel %vm2549, %v2583, %v2585
        %v2621 = vunpack.c.l.b16 %v2530
        %v2622 = vunpack.c.l.b16 %v2531
        %v2623 = vunpack.c.l.b16 %v2532
        %v2624 = vunpack.c.l.b16 %v2533
        %v2625 = vunpack.c.l.b16 %v2534
        %v2626 = vunpack.c.l.b16 %v2535
        %v2627 = vunpack.c.l.b16 %v2536
        %v2628 = vunpack.c.l.b16 %v2537
        %v2629 = vunpack.c.l.b16 %v2538
        %v2630 = vunpack.c.l.b16 %v2539
        %v2631 = vunpack.c.l.b16 %v2540
        %v2632 = vunpack.c.l.b16 %v2541
        %v2633 = vunpack.c.l.b16 %v2542
        %v2634 = vunpack.c.l.b16 %v2543
        %v2635 = vunpack.c.l.b16 %v2544
        %v2636 = vunpack.c.l.b16 %v2545
        %v2637 = vpack.c.b16 %v2622, %v2621
        %v2638 = vpack.c.b16 %v2624, %v2623
        %v2639 = vpack.c.b16 %v2626, %v2625
        %v2640 = vpack.c.b16 %v2628, %v2627
        %v2641 = vpack.c.b16 %v2630, %v2629
        %v2642 = vpack.c.b16 %v2632, %v2631
        %v2643 = vpack.c.b16 %v2634, %v2633
        %v2644 = vpack.c.b16 %v2636, %v2635
        %2653 = vmatprep.subr.bf16.mxu0 0
        %2654 = vmatpush1.bf16.msra.mxu0 %v2637
        %2655 = vmatprep.subr.bf16.mxu0 0
        %2656 = vmatpush1.bf16.msra.mxu0 %v2638
        %2657 = vmatprep.subr.bf16.mxu0 0
        %2658 = vmatpush1.bf16.msra.mxu0 %v2639
        %2659 = vmatprep.subr.bf16.mxu0 0
        %2660 = vmatpush1.bf16.msra.mxu0 %v2640
        %2661 = vmatprep.subr.bf16.mxu0 0
        %2662 = vmatpush1.bf16.msra.mxu0 %v2641
        %2663 = vmatprep.subr.bf16.mxu0 0
        %2664 = vmatpush1.bf16.msra.mxu0 %v2642
        %2665 = vmatprep.subr.bf16.mxu0 0
        %2666 = vmatpush1.bf16.msra.mxu0 %v2643
        %2667 = vmatprep.subr.bf16.mxu0 0
        %2668 = vmatpush1.bf16.msra.mxu0 %v2644
        %2669 = vmatprep.subr.bf16.mxu0 0
        %2670 = vmatpush1.bf16.msra.mxu0 0
        %2671 = vmatprep.subr.bf16.mxu0 0
        %2672 = vmatpush1.bf16.msra.mxu0 0
        %2673 = vmatprep.subr.bf16.mxu0 0
        %2674 = vmatpush1.bf16.msra.mxu0 0
        %2675 = vmatprep.subr.bf16.mxu0 0
        %2676 = vmatpush1.bf16.msra.mxu0 0
        %2677 = vmatprep.subr.bf16.mxu0 0
        %2678 = vmatpush1.bf16.msra.mxu0 0
        %2679 = vmatprep.subr.bf16.mxu0 0
        %2680 = vmatpush1.bf16.msra.mxu0 0
        %2681 = vmatprep.subr.bf16.mxu0 0
        %2682 = vmatpush1.bf16.msra.mxu0 0
        %2683 = vmatprep.subr.bf16.mxu0 0
        %2684 = vmatpush1.bf16.msra.mxu0 0
        %2685 = vmatprep.mubr.bf16.mxu0 0
        %2686 = vmatmul.mubr.bf16.gmra.mrb[0].mxu0 %v2552
        %v2687 = vpop.f32.mrb[0].mxu0
        %v2688 = vadd.f32 0.0, %v2687
        %v2689 = vpop.f32.mrb[0].mxu0
        %v2690 = vpop.f32.mrb[0].mxu0
        %v2691 = vadd.f32 0.0, %v2690
        %v2692 = vpop.f32.mrb[0].mxu0
        %2693 = vmatprep.mubr.bf16.mxu0 0
        %2694 = vmatmul.mubr.bf16.gmra.mrb[0].mxu0 %v2554
        %v2695 = vpop.f32.mrb[0].mxu0
        %v2696 = vadd.f32 0.0, %v2695
        %v2697 = vpop.f32.mrb[0].mxu0
        %v2698 = vpop.f32.mrb[0].mxu0
        %v2699 = vadd.f32 0.0, %v2698
        %v2700 = vpop.f32.mrb[0].mxu0
        %2701 = vmatprep.mubr.bf16.mxu0 0
        %2702 = vmatmul.mubr.bf16.gmra.mrb[0].mxu0 %v2556
        %v2703 = vpop.f32.mrb[0].mxu0
        %v2704 = vadd.f32 0.0, %v2703
        %v2705 = vpop.f32.mrb[0].mxu0
        %v2706 = vpop.f32.mrb[0].mxu0
        %v2707 = vadd.f32 0.0, %v2706
        %v2708 = vpop.f32.mrb[0].mxu0
        %2709 = vmatprep.mubr.bf16.mxu0 0
        %2710 = vmatmul.mubr.bf16.gmra.mrb[0].mxu0 %v2558
        %v2711 = vpop.f32.mrb[0].mxu0
        %v2712 = vadd.f32 0.0, %v2711
        %v2713 = vpop.f32.mrb[0].mxu0
        %v2714 = vpop.f32.mrb[0].mxu0
        %v2715 = vadd.f32 0.0, %v2714
        %v2716 = vpop.f32.mrb[0].mxu0
        %2717 = vmatprep.mubr.bf16.mxu0 0
        %2718 = vmatmul.mubr.bf16.gmra.mrb[0].mxu0 %v2560
        %v2719 = vpop.f32.mrb[0].mxu0
        %v2720 = vadd.f32 0.0, %v2719
        %v2721 = vpop.f32.mrb[0].mxu0
        %v2722 = vpop.f32.mrb[0].mxu0
        %v2723 = vadd.f32 0.0, %v2722
        %v2724 = vpop.f32.mrb[0].mxu0
        %2725 = vmatprep.mubr.bf16.mxu0 0
        %2726 = vmatmul.mubr.bf16.gmra.mrb[0].mxu0 %v2562
        %v2727 = vpop.f32.mrb[0].mxu0
        %v2728 = vadd.f32 0.0, %v2727
        %v2729 = vpop.f32.mrb[0].mxu0
        %v2730 = vpop.f32.mrb[0].mxu0
        %v2731 = vadd.f32 0.0, %v2730
        %v2732 = vpop.f32.mrb[0].mxu0
        %2733 = vmatprep.mubr.bf16.mxu0 0
        %2734 = vmatmul.mubr.bf16.gmra.mrb[0].mxu0 %v2564
        %v2735 = vpop.f32.mrb[0].mxu0
        %v2736 = vadd.f32 0.0, %v2735
        %v2737 = vpop.f32.mrb[0].mxu0
        %v2738 = vpop.f32.mrb[0].mxu0
        %v2739 = vadd.f32 0.0, %v2738
        %v2740 = vpop.f32.mrb[0].mxu0
        %2741 = vmatprep.mubr.bf16.mxu0 0
        %2742 = vmatmul.mubr.bf16.gmra.mrb[0].mxu0 %v2566
        %v2743 = vpop.f32.mrb[0].mxu0
        %v2744 = vadd.f32 0.0, %v2743
        %v2745 = vpop.f32.mrb[0].mxu0
        %v2746 = vpop.f32.mrb[0].mxu0
        %v2747 = vadd.f32 0.0, %v2746
        %v2748 = vpop.f32.mrb[0].mxu0
        %2749 = vmatprep.mubr.bf16.mxu0 0
        %2750 = vmatmul.mubr.bf16.gmra.mrb[0].mxu0 %v2568
        %v2751 = vpop.f32.mrb[0].mxu0
        %v2752 = vadd.f32 0.0, %v2751
        %v2753 = vpop.f32.mrb[0].mxu0
        %v2754 = vpop.f32.mrb[0].mxu0
        %v2755 = vadd.f32 0.0, %v2754
        %v2756 = vpop.f32.mrb[0].mxu0
        %2757 = vmatprep.mubr.bf16.mxu0 0
        %2758 = vmatmul.mubr.bf16.gmra.mrb[0].mxu0 %v2570
        %v2759 = vpop.f32.mrb[0].mxu0
        %v2760 = vadd.f32 0.0, %v2759
        %v2761 = vpop.f32.mrb[0].mxu0
        %v2762 = vpop.f32.mrb[0].mxu0
        %v2763 = vadd.f32 0.0, %v2762
        %v2764 = vpop.f32.mrb[0].mxu0
        %2765 = vmatprep.mubr.bf16.mxu0 0
        %2766 = vmatmul.mubr.bf16.gmra.mrb[0].mxu0 %v2572
        %v2767 = vpop.f32.mrb[0].mxu0
        %v2768 = vadd.f32 0.0, %v2767
        %v2769 = vpop.f32.mrb[0].mxu0
        %v2770 = vpop.f32.mrb[0].mxu0
        %v2771 = vadd.f32 0.0, %v2770
        %v2772 = vpop.f32.mrb[0].mxu0
        %2773 = vmatprep.mubr.bf16.mxu0 0
        %2774 = vmatmul.mubr.bf16.gmra.mrb[0].mxu0 %v2574
        %v2775 = vpop.f32.mrb[0].mxu0
        %v2776 = vadd.f32 0.0, %v2775
        %v2777 = vpop.f32.mrb[0].mxu0
        %v2778 = vpop.f32.mrb[0].mxu0
        %v2779 = vadd.f32 0.0, %v2778
        %v2780 = vpop.f32.mrb[0].mxu0
        %2781 = vmatprep.mubr.bf16.mxu0 0
        %2782 = vmatmul.mubr.bf16.gmra.mrb[0].mxu0 %v2576
        %v2783 = vpop.f32.mrb[0].mxu0
        %v2784 = vadd.f32 0.0, %v2783
        %v2785 = vpop.f32.mrb[0].mxu0
        %v2786 = vpop.f32.mrb[0].mxu0
        %v2787 = vadd.f32 0.0, %v2786
        %v2788 = vpop.f32.mrb[0].mxu0
        %2789 = vmatprep.mubr.bf16.mxu0 0
        %2790 = vmatmul.mubr.bf16.gmra.mrb[0].mxu0 %v2578
        %v2791 = vpop.f32.mrb[0].mxu0
        %v2792 = vadd.f32 0.0, %v2791
        %v2793 = vpop.f32.mrb[0].mxu0
        %v2794 = vpop.f32.mrb[0].mxu0
        %v2795 = vadd.f32 0.0, %v2794
        %v2796 = vpop.f32.mrb[0].mxu0
        %2797 = vmatprep.mubr.bf16.mxu0 0
        %2798 = vmatmul.mubr.bf16.gmra.mrb[0].mxu0 %v2580
        %v2799 = vpop.f32.mrb[0].mxu0
        %v2800 = vadd.f32 0.0, %v2799
        %v2801 = vpop.f32.mrb[0].mxu0
        %v2802 = vpop.f32.mrb[0].mxu0
        %v2803 = vadd.f32 0.0, %v2802
        %v2804 = vpop.f32.mrb[0].mxu0
        %2805 = vmatprep.mubr.bf16.mxu0 0
        %2806 = vmatmul.mubr.bf16.gmra.mrb[0].mxu0 %v2582
        %v2807 = vpop.f32.mrb[0].mxu0
        %v2808 = vadd.f32 0.0, %v2807
        %v2809 = vpop.f32.mrb[0].mxu0
        %v2810 = vpop.f32.mrb[0].mxu0
        %v2811 = vadd.f32 0.0, %v2810
        %v2812 = vpop.f32.mrb[0].mxu0
        %2813 = vmatprep.mubr.bf16.mxu0 0
        %2814 = vmatmul.mubr.bf16.gmra.mrb[0].mxu0 %v2584
        %v2815 = vpop.f32.mrb[0].mxu0
        %v2816 = vadd.f32 0.0, %v2815
        %v2817 = vpop.f32.mrb[0].mxu0
        %v2818 = vpop.f32.mrb[0].mxu0
        %v2819 = vadd.f32 0.0, %v2818
        %v2820 = vpop.f32.mrb[0].mxu0
        %2821 = vmatprep.mubr.bf16.mxu0 0
        %2822 = vmatmul.mubr.bf16.gmra.mrb[0].mxu0 %v2586
        %v2823 = vpop.f32.mrb[0].mxu0
        %v2824 = vadd.f32 0.0, %v2823
        %v2825 = vpop.f32.mrb[0].mxu0
        %v2826 = vpop.f32.mrb[0].mxu0
        %v2827 = vadd.f32 0.0, %v2826
        %v2828 = vpop.f32.mrb[0].mxu0
        %2829 = vdwg.mxu0
        %v2830 = vadd.f32 %v2492, %v2688
        %v2831 = vadd.f32 %v2493, %v2691
        %v2832 = vadd.f32 %v2494, %v2696
        %v2833 = vadd.f32 %v2495, %v2699
        %v2834 = vadd.f32 %v2496, %v2704
        %v2835 = vadd.f32 %v2497, %v2707
        %v2836 = vadd.f32 %v2498, %v2712
        %v2837 = vadd.f32 %v2499, %v2715
        %v2838 = vadd.f32 %v2500, %v2720
        %v2839 = vadd.f32 %v2501, %v2723
        %v2840 = vadd.f32 %v2502, %v2728
        %v2841 = vadd.f32 %v2503, %v2731
        %v2842 = vadd.f32 %v2504, %v2736
        %v2843 = vadd.f32 %v2505, %v2739
        %v2844 = vadd.f32 %v2506, %v2744
        %v2845 = vadd.f32 %v2507, %v2747
        %v2846 = vadd.f32 %v2508, %v2752
        %v2847 = vadd.f32 %v2509, %v2755
        %v2848 = vadd.f32 %v2510, %v2760
        %v2849 = vadd.f32 %v2511, %v2763
        %v2850 = vadd.f32 %v2512, %v2768
        %v2851 = vadd.f32 %v2513, %v2771
        %v2852 = vadd.f32 %v2514, %v2776
        %v2853 = vadd.f32 %v2515, %v2779
        %v2854 = vadd.f32 %v2516, %v2784
        %v2855 = vadd.f32 %v2517, %v2787
        %v2856 = vadd.f32 %v2518, %v2792
        %v2857 = vadd.f32 %v2519, %v2795
        %v2858 = vadd.f32 %v2520, %v2800
        %v2859 = vadd.f32 %v2521, %v2803
        %v2860 = vadd.f32 %v2522, %v2808
        %v2861 = vadd.f32 %v2523, %v2811
        %v2862 = vadd.f32 %v2524, %v2816
        %v2863 = vadd.f32 %v2525, %v2819
        %v2864 = vadd.f32 %v2526, %v2824
        %v2865 = vadd.f32 %v2527, %v2827
        %v2866 = vld [vmem:[%s219 + $0x10] sm:$0xc]
        %v2867 = vld [vmem:[%s219 + $0x14] sm:$0xf]
        %v2868 = vld [vmem:[%s219 + $0x18] sm:$0xf]
        %v2869 = vld [vmem:[%s219 + $0x1c] sm:$0xf]
        %v2870 = vld [vmem:[%s219 + $0x20] sm:$0xf]
        %v2871 = vld [vmem:[%s219 + $0x24] sm:$0xf]
        %v2872 = vld [vmem:[%s219 + $0x28] sm:$0xf]
        %v2873 = vld [vmem:[%s219 + $0x2c] sm:$0xf]
        %v2874 = vld [vmem:[%s219 + $0x30] sm:$0xf]
        %v2875 = vld [vmem:[%s219 + $0x34] sm:$0xf]
        %v2876 = vld [vmem:[%s219 + $0x38] sm:$0xf]
        %v2877 = vld [vmem:[%s219 + $0x3c] sm:$0xf]
        %v2878 = vld [vmem:[%s219 + $0x40] sm:$0xf]
        %v2879 = vld [vmem:[%s219 + $0x44] sm:$0xf]
        %v2880 = vld [vmem:[%s219 + $0x48] sm:$0xf]
        %v2881 = vld [vmem:[%s219 + $0x4c] sm:$0xf]
        %v2882 = vld [vmem:[%s219 + $0x50] sm:$0xf]
        %v2883 = vld [vmem:[%s219 + $0x54] sm:$0xf]
        %v2884 = vld [vmem:[%s219 + $0x58] sm:$0xf]
        %v2885 = vld [vmem:[%s219 + $0x5c] sm:$0xf]
        %v2886 = vld [vmem:[%s219 + $0x60] sm:$0xf]
        %v2887 = vld [vmem:[%s219 + $0x64] sm:$0xf]
        %v2888 = vld [vmem:[%s219 + $0x68] sm:$0xf]
        %v2889 = vld [vmem:[%s219 + $0x6c] sm:$0xf]
        %v2890 = vld [vmem:[%s219 + $0x70] sm:$0xf]
        %v2891 = vld [vmem:[%s219 + $0x74] sm:$0xf]
        %v2892 = vld [vmem:[%s219 + $0x78] sm:$0xf]
        %v2893 = vld [vmem:[%s219 + $0x7c] sm:$0xf]
        %v2894 = vld [vmem:[%s219 + $0x80] sm:$0xf]
        %v2895 = vld [vmem:[%s219 + $0x84] sm:$0xf]
        %v2896 = vld [vmem:[%s219 + $0x88] sm:$0xf]
        %v2897 = vld [vmem:[%s219 + $0x8c] sm:$0xf]
        %v2898 = vld [vmem:[%s219 + $0x90] sm:$0xf]
        %v2899 = vld [vmem:[%s219 + $0x94] sm:$0xf]
        %v2900 = vld [vmem:[%s219 + $0x98] sm:$0xf]
        %v2901 = vld [vmem:[%s219 + $0x9c] sm:$0xf]
        %v2902 = vld [vmem:[%s219 + $0xa0] sm:$0x3]
        %s2903 = scalar_lea.vmem [#allocation5], 384
        %v2904 = vld [vmem:[%s2903] sm:$0xf]
        %v2905 = vld [vmem:[%s2903 + $0x4] sm:$0xf]
        %v2906 = vld [vmem:[%s2903 + $0x8] sm:$0xf]
        %v2907 = vld [vmem:[%s2903 + $0xc] sm:$0xf]
        %v2908 = vld [vmem:[%s2903 + $0x10] sm:$0xf]
        %v2909 = vld [vmem:[%s2903 + $0x14] sm:$0xf]
        %v2910 = vld [vmem:[%s2903 + $0x18] sm:$0xf]
        %v2911 = vld [vmem:[%s2903 + $0x1c] sm:$0xf]
        %v2912 = vld [vmem:[%s2903 + $0x20] sm:$0xf]
        %v2913 = vld [vmem:[%s2903 + $0x24] sm:$0xf]
        %v2914 = vld [vmem:[%s2903 + $0x28] sm:$0xf]
        %v2915 = vld [vmem:[%s2903 + $0x2c] sm:$0xf]
        %v2916 = vld [vmem:[%s2903 + $0x30] sm:$0xf]
        %v2917 = vld [vmem:[%s2903 + $0x34] sm:$0xf]
        %v2918 = vld [vmem:[%s2903 + $0x38] sm:$0xf]
        %v2919 = vld [vmem:[%s2903 + $0x3c] sm:$0xf]
        %v2957 = vunpack.c.l.b16 %v2866
        %v2958 = vunpack.c.l.b16 %v2867
        %v2959 = vunpack.c.l.b16 %v2868
        %v2960 = vunpack.c.l.b16 %v2869
        %v2961 = vunpack.c.l.b16 %v2870
        %v2962 = vunpack.c.l.b16 %v2871
        %v2963 = vunpack.c.l.b16 %v2872
        %v2964 = vunpack.c.l.b16 %v2873
        %v2965 = vunpack.c.l.b16 %v2874
        %v2966 = vunpack.c.l.b16 %v2875
        %v2967 = vunpack.c.l.b16 %v2876
        %v2968 = vunpack.c.l.b16 %v2877
        %v2969 = vunpack.c.l.b16 %v2878
        %v2970 = vunpack.c.l.b16 %v2879
        %v2971 = vunpack.c.l.b16 %v2880
        %v2972 = vunpack.c.l.b16 %v2881
        %v2973 = vunpack.c.l.b16 %v2882
        %v2974 = vunpack.c.l.b16 %v2883
        %v2975 = vunpack.c.l.b16 %v2884
        %v2976 = vunpack.c.l.b16 %v2885
        %v2977 = vunpack.c.l.b16 %v2886
        %v2978 = vunpack.c.l.b16 %v2887
        %v2979 = vunpack.c.l.b16 %v2888
        %v2980 = vunpack.c.l.b16 %v2889
        %v2981 = vunpack.c.l.b16 %v2890
        %v2982 = vunpack.c.l.b16 %v2891
        %v2983 = vunpack.c.l.b16 %v2892
        %v2984 = vunpack.c.l.b16 %v2893
        %v2985 = vunpack.c.l.b16 %v2894
        %v2986 = vunpack.c.l.b16 %v2895
        %v2987 = vunpack.c.l.b16 %v2896
        %v2988 = vunpack.c.l.b16 %v2897
        %v2989 = vunpack.c.l.b16 %v2898
        %v2990 = vunpack.c.l.b16 %v2899
        %v2991 = vunpack.c.l.b16 %v2900
        %v2992 = vunpack.c.l.b16 %v2901
        %v2993 = vunpack.c.l.b16 %v2902
        %v2994 = vpack.c.b16 %v2958, %v2957
        %v2995 = vpack.c.b16 %v2960, %v2959
        %v2996 = vpack.c.b16 %v2962, %v2961
        %v2997 = vpack.c.b16 %v2964, %v2963
        %v2998 = vpack.c.b16 %v2966, %v2965
        %v2999 = vpack.c.b16 %v2968, %v2967
        %v3000 = vpack.c.b16 %v2970, %v2969
        %v3001 = vpack.c.b16 %v2972, %v2971
        %v3002 = vpack.c.b16 %v2974, %v2973
        %v3003 = vpack.c.b16 %v2976, %v2975
        %v3004 = vpack.c.b16 %v2978, %v2977
        %v3005 = vpack.c.b16 %v2980, %v2979
        %v3006 = vpack.c.b16 %v2982, %v2981
        %v3007 = vpack.c.b16 %v2984, %v2983
        %v3008 = vpack.c.b16 %v2986, %v2985
        %v3009 = vpack.c.b16 %v2988, %v2987
        %v3010 = vpack.c.b16 %v2990, %v2989
        %v3011 = vpack.c.b16 %v2992, %v2991
        %v3012 = vpack.c.b16 %v2993, %v2993
        %v3013 = vrot.slane %v2994, 2
        %v3014 = vrot.slane %v2995, 2
        %v3015 = vsel %vm2549, %v3013, %v3014
        %v3016 = vrot.slane %v2996, 2
        %v3017 = vsel %vm2549, %v3014, %v3016
        %v3018 = vrot.slane %v2997, 2
        %v3019 = vsel %vm2549, %v3016, %v3018
        %v3020 = vrot.slane %v2998, 2
        %v3021 = vsel %vm2549, %v3018, %v3020
        %v3022 = vrot.slane %v2999, 2
        %v3023 = vsel %vm2549, %v3020, %v3022
        %v3024 = vrot.slane %v3000, 2
        %v3025 = vsel %vm2549, %v3022, %v3024
        %v3026 = vrot.slane %v3001, 2
        %v3027 = vsel %vm2549, %v3024, %v3026
        %v3028 = vrot.slane %v3002, 2
        %v3029 = vsel %vm2549, %v3026, %v3028
        %v3030 = vrot.slane %v3003, 2
        %v3031 = vsel %vm2549, %v3028, %v3030
        %v3032 = vrot.slane %v3004, 2
        %v3033 = vsel %vm2549, %v3030, %v3032
        %v3034 = vrot.slane %v3005, 2
        %v3035 = vsel %vm2549, %v3032, %v3034
        %v3036 = vrot.slane %v3006, 2
        %v3037 = vsel %vm2549, %v3034, %v3036
        %v3038 = vrot.slane %v3007, 2
        %v3039 = vsel %vm2549, %v3036, %v3038
        %v3040 = vrot.slane %v3008, 2
        %v3041 = vsel %vm2549, %v3038, %v3040
        %v3042 = vrot.slane %v3009, 2
        %v3043 = vsel %vm2549, %v3040, %v3042
        %v3044 = vrot.slane %v3010, 2
        %v3045 = vsel %vm2549, %v3042, %v3044
        %v3046 = vrot.slane %v3011, 2
        %v3047 = vsel %vm2549, %v3044, %v3046
        %v3048 = vrot.slane %v3012, 2
        %v3049 = vsel %vm2549, %v3046, %v3048
        %v3084 = vunpack.c.l.b16 %v2904
        %v3085 = vunpack.c.l.b16 %v2905
        %v3086 = vunpack.c.l.b16 %v2906
        %v3087 = vunpack.c.l.b16 %v2907
        %v3088 = vunpack.c.l.b16 %v2908
        %v3089 = vunpack.c.l.b16 %v2909
        %v3090 = vunpack.c.l.b16 %v2910
        %v3091 = vunpack.c.l.b16 %v2911
        %v3092 = vunpack.c.l.b16 %v2912
        %v3093 = vunpack.c.l.b16 %v2913
        %v3094 = vunpack.c.l.b16 %v2914
        %v3095 = vunpack.c.l.b16 %v2915
        %v3096 = vunpack.c.l.b16 %v2916
        %v3097 = vunpack.c.l.b16 %v2917
        %v3098 = vunpack.c.l.b16 %v2918
        %v3099 = vunpack.c.l.b16 %v2919
        %v3100 = vpack.c.b16 %v3085, %v3084
        %v3101 = vpack.c.b16 %v3087, %v3086
        %v3102 = vpack.c.b16 %v3089, %v3088
        %v3103 = vpack.c.b16 %v3091, %v3090
        %v3104 = vpack.c.b16 %v3093, %v3092
        %v3105 = vpack.c.b16 %v3095, %v3094
        %v3106 = vpack.c.b16 %v3097, %v3096
        %v3107 = vpack.c.b16 %v3099, %v3098
        %3116 = vmatprep.subr.bf16.mxu0 0
        %3117 = vmatpush1.bf16.msra.mxu0 %v3100
        %3118 = vmatprep.subr.bf16.mxu0 0
        %3119 = vmatpush1.bf16.msra.mxu0 %v3101
        %3120 = vmatprep.subr.bf16.mxu0 0
        %3121 = vmatpush1.bf16.msra.mxu0 %v3102
        %3122 = vmatprep.subr.bf16.mxu0 0
        %3123 = vmatpush1.bf16.msra.mxu0 %v3103
        %3124 = vmatprep.subr.bf16.mxu0 0
        %3125 = vmatpush1.bf16.msra.mxu0 %v3104
        %3126 = vmatprep.subr.bf16.mxu0 0
        %3127 = vmatpush1.bf16.msra.mxu0 %v3105
        %3128 = vmatprep.subr.bf16.mxu0 0
        %3129 = vmatpush1.bf16.msra.mxu0 %v3106
        %3130 = vmatprep.subr.bf16.mxu0 0
        %3131 = vmatpush1.bf16.msra.mxu0 %v3107
        %3132 = vmatprep.subr.bf16.mxu0 0
        %3133 = vmatpush1.bf16.msra.mxu0 0
        %3134 = vmatprep.subr.bf16.mxu0 0
        %3135 = vmatpush1.bf16.msra.mxu0 0
        %3136 = vmatprep.subr.bf16.mxu0 0
        %3137 = vmatpush1.bf16.msra.mxu0 0
        %3138 = vmatprep.subr.bf16.mxu0 0
        %3139 = vmatpush1.bf16.msra.mxu0 0
        %3140 = vmatprep.subr.bf16.mxu0 0
        %3141 = vmatpush1.bf16.msra.mxu0 0
        %3142 = vmatprep.subr.bf16.mxu0 0
        %3143 = vmatpush1.bf16.msra.mxu0 0
        %3144 = vmatprep.subr.bf16.mxu0 0
        %3145 = vmatpush1.bf16.msra.mxu0 0
        %3146 = vmatprep.subr.bf16.mxu0 0
        %3147 = vmatpush1.bf16.msra.mxu0 0
        %3148 = vmatprep.mubr.bf16.mxu0 0
        %3149 = vmatmul.mubr.bf16.gmra.mrb[0].mxu0 %v3015
        %v3150 = vpop.f32.mrb[0].mxu0
        %v3151 = vadd.f32 0.0, %v3150
        %v3152 = vpop.f32.mrb[0].mxu0
        %v3153 = vpop.f32.mrb[0].mxu0
        %v3154 = vadd.f32 0.0, %v3153
        %v3155 = vpop.f32.mrb[0].mxu0
        %3156 = vmatprep.mubr.bf16.mxu0 0
        %3157 = vmatmul.mubr.bf16.gmra.mrb[0].mxu0 %v3017
        %v3158 = vpop.f32.mrb[0].mxu0
        %v3159 = vadd.f32 0.0, %v3158
        %v3160 = vpop.f32.mrb[0].mxu0
        %v3161 = vpop.f32.mrb[0].mxu0
        %v3162 = vadd.f32 0.0, %v3161
        %v3163 = vpop.f32.mrb[0].mxu0
        %3164 = vmatprep.mubr.bf16.mxu0 0
        %3165 = vmatmul.mubr.bf16.gmra.mrb[0].mxu0 %v3019
        %v3166 = vpop.f32.mrb[0].mxu0
        %v3167 = vadd.f32 0.0, %v3166
        %v3168 = vpop.f32.mrb[0].mxu0
        %v3169 = vpop.f32.mrb[0].mxu0
        %v3170 = vadd.f32 0.0, %v3169
        %v3171 = vpop.f32.mrb[0].mxu0
        %3172 = vmatprep.mubr.bf16.mxu0 0
        %3173 = vmatmul.mubr.bf16.gmra.mrb[0].mxu0 %v3021
        %v3174 = vpop.f32.mrb[0].mxu0
        %v3175 = vadd.f32 0.0, %v3174
        %v3176 = vpop.f32.mrb[0].mxu0
        %v3177 = vpop.f32.mrb[0].mxu0
        %v3178 = vadd.f32 0.0, %v3177
        %v3179 = vpop.f32.mrb[0].mxu0
        %3180 = vmatprep.mubr.bf16.mxu0 0
        %3181 = vmatmul.mubr.bf16.gmra.mrb[0].mxu0 %v3023
        %v3182 = vpop.f32.mrb[0].mxu0
        %v3183 = vadd.f32 0.0, %v3182
        %v3184 = vpop.f32.mrb[0].mxu0
        %v3185 = vpop.f32.mrb[0].mxu0
        %v3186 = vadd.f32 0.0, %v3185
        %v3187 = vpop.f32.mrb[0].mxu0
        %3188 = vmatprep.mubr.bf16.mxu0 0
        %3189 = vmatmul.mubr.bf16.gmra.mrb[0].mxu0 %v3025
        %v3190 = vpop.f32.mrb[0].mxu0
        %v3191 = vadd.f32 0.0, %v3190
        %v3192 = vpop.f32.mrb[0].mxu0
        %v3193 = vpop.f32.mrb[0].mxu0
        %v3194 = vadd.f32 0.0, %v3193
        %v3195 = vpop.f32.mrb[0].mxu0
        %3196 = vmatprep.mubr.bf16.mxu0 0
        %3197 = vmatmul.mubr.bf16.gmra.mrb[0].mxu0 %v3027
        %v3198 = vpop.f32.mrb[0].mxu0
        %v3199 = vadd.f32 0.0, %v3198
        %v3200 = vpop.f32.mrb[0].mxu0
        %v3201 = vpop.f32.mrb[0].mxu0
        %v3202 = vadd.f32 0.0, %v3201
        %v3203 = vpop.f32.mrb[0].mxu0
        %3204 = vmatprep.mubr.bf16.mxu0 0
        %3205 = vmatmul.mubr.bf16.gmra.mrb[0].mxu0 %v3029
        %v3206 = vpop.f32.mrb[0].mxu0
        %v3207 = vadd.f32 0.0, %v3206
        %v3208 = vpop.f32.mrb[0].mxu0
        %v3209 = vpop.f32.mrb[0].mxu0
        %v3210 = vadd.f32 0.0, %v3209
        %v3211 = vpop.f32.mrb[0].mxu0
        %3212 = vmatprep.mubr.bf16.mxu0 0
        %3213 = vmatmul.mubr.bf16.gmra.mrb[0].mxu0 %v3031
        %v3214 = vpop.f32.mrb[0].mxu0
        %v3215 = vadd.f32 0.0, %v3214
        %v3216 = vpop.f32.mrb[0].mxu0
        %v3217 = vpop.f32.mrb[0].mxu0
        %v3218 = vadd.f32 0.0, %v3217
        %v3219 = vpop.f32.mrb[0].mxu0
        %3220 = vmatprep.mubr.bf16.mxu0 0
        %3221 = vmatmul.mubr.bf16.gmra.mrb[0].mxu0 %v3033
        %v3222 = vpop.f32.mrb[0].mxu0
        %v3223 = vadd.f32 0.0, %v3222
        %v3224 = vpop.f32.mrb[0].mxu0
        %v3225 = vpop.f32.mrb[0].mxu0
        %v3226 = vadd.f32 0.0, %v3225
        %v3227 = vpop.f32.mrb[0].mxu0
        %3228 = vmatprep.mubr.bf16.mxu0 0
        %3229 = vmatmul.mubr.bf16.gmra.mrb[0].mxu0 %v3035
        %v3230 = vpop.f32.mrb[0].mxu0
        %v3231 = vadd.f32 0.0, %v3230
        %v3232 = vpop.f32.mrb[0].mxu0
        %v3233 = vpop.f32.mrb[0].mxu0
        %v3234 = vadd.f32 0.0, %v3233
        %v3235 = vpop.f32.mrb[0].mxu0
        %3236 = vmatprep.mubr.bf16.mxu0 0
        %3237 = vmatmul.mubr.bf16.gmra.mrb[0].mxu0 %v3037
        %v3238 = vpop.f32.mrb[0].mxu0
        %v3239 = vadd.f32 0.0, %v3238
        %v3240 = vpop.f32.mrb[0].mxu0
        %v3241 = vpop.f32.mrb[0].mxu0
        %v3242 = vadd.f32 0.0, %v3241
        %v3243 = vpop.f32.mrb[0].mxu0
        %3244 = vmatprep.mubr.bf16.mxu0 0
        %3245 = vmatmul.mubr.bf16.gmra.mrb[0].mxu0 %v3039
        %v3246 = vpop.f32.mrb[0].mxu0
        %v3247 = vadd.f32 0.0, %v3246
        %v3248 = vpop.f32.mrb[0].mxu0
        %v3249 = vpop.f32.mrb[0].mxu0
        %v3250 = vadd.f32 0.0, %v3249
        %v3251 = vpop.f32.mrb[0].mxu0
        %3252 = vmatprep.mubr.bf16.mxu0 0
        %3253 = vmatmul.mubr.bf16.gmra.mrb[0].mxu0 %v3041
        %v3254 = vpop.f32.mrb[0].mxu0
        %v3255 = vadd.f32 0.0, %v3254
        %v3256 = vpop.f32.mrb[0].mxu0
        %v3257 = vpop.f32.mrb[0].mxu0
        %v3258 = vadd.f32 0.0, %v3257
        %v3259 = vpop.f32.mrb[0].mxu0
        %3260 = vmatprep.mubr.bf16.mxu0 0
        %3261 = vmatmul.mubr.bf16.gmra.mrb[0].mxu0 %v3043
        %v3262 = vpop.f32.mrb[0].mxu0
        %v3263 = vadd.f32 0.0, %v3262
        %v3264 = vpop.f32.mrb[0].mxu0
        %v3265 = vpop.f32.mrb[0].mxu0
        %v3266 = vadd.f32 0.0, %v3265
        %v3267 = vpop.f32.mrb[0].mxu0
        %3268 = vmatprep.mubr.bf16.mxu0 0
        %3269 = vmatmul.mubr.bf16.gmra.mrb[0].mxu0 %v3045
        %v3270 = vpop.f32.mrb[0].mxu0
        %v3271 = vadd.f32 0.0, %v3270
        %v3272 = vpop.f32.mrb[0].mxu0
        %v3273 = vpop.f32.mrb[0].mxu0
        %v3274 = vadd.f32 0.0, %v3273
        %v3275 = vpop.f32.mrb[0].mxu0
        %3276 = vmatprep.mubr.bf16.mxu0 0
        %3277 = vmatmul.mubr.bf16.gmra.mrb[0].mxu0 %v3047
        %v3278 = vpop.f32.mrb[0].mxu0
        %v3279 = vadd.f32 0.0, %v3278
        %v3280 = vpop.f32.mrb[0].mxu0
        %v3281 = vpop.f32.mrb[0].mxu0
        %v3282 = vadd.f32 0.0, %v3281
        %v3283 = vpop.f32.mrb[0].mxu0
        %3284 = vmatprep.mubr.bf16.mxu0 0
        %3285 = vmatmul.mubr.bf16.gmra.mrb[0].mxu0 %v3049
        %v3286 = vpop.f32.mrb[0].mxu0
        %v3287 = vadd.f32 0.0, %v3286
        %v3288 = vpop.f32.mrb[0].mxu0
        %v3289 = vpop.f32.mrb[0].mxu0
        %v3290 = vadd.f32 0.0, %v3289
        %v3291 = vpop.f32.mrb[0].mxu0
        %3292 = vdwg.mxu0
        %v3293 = vadd.f32 %v2830, %v3151
        %v3294 = vadd.f32 %v2831, %v3154
        %v3295 = vadd.f32 %v2832, %v3159
        %v3296 = vadd.f32 %v2833, %v3162
        %v3297 = vadd.f32 %v2834, %v3167
        %v3298 = vadd.f32 %v2835, %v3170
        %v3299 = vadd.f32 %v2836, %v3175
        %v3300 = vadd.f32 %v2837, %v3178
        %v3301 = vadd.f32 %v2838, %v3183
        %v3302 = vadd.f32 %v2839, %v3186
        %v3303 = vadd.f32 %v2840, %v3191
        %v3304 = vadd.f32 %v2841, %v3194
        %v3305 = vadd.f32 %v2842, %v3199
        %v3306 = vadd.f32 %v2843, %v3202
        %v3307 = vadd.f32 %v2844, %v3207
        %v3308 = vadd.f32 %v2845, %v3210
        %v3309 = vadd.f32 %v2846, %v3215
        %v3310 = vadd.f32 %v2847, %v3218
        %v3311 = vadd.f32 %v2848, %v3223
        %v3312 = vadd.f32 %v2849, %v3226
        %v3313 = vadd.f32 %v2850, %v3231
        %v3314 = vadd.f32 %v2851, %v3234
        %v3315 = vadd.f32 %v2852, %v3239
        %v3316 = vadd.f32 %v2853, %v3242
        %v3317 = vadd.f32 %v2854, %v3247
        %v3318 = vadd.f32 %v2855, %v3250
        %v3319 = vadd.f32 %v2856, %v3255
        %v3320 = vadd.f32 %v2857, %v3258
        %v3321 = vadd.f32 %v2858, %v3263
        %v3322 = vadd.f32 %v2859, %v3266
        %v3323 = vadd.f32 %v2860, %v3271
        %v3324 = vadd.f32 %v2861, %v3274
        %v3325 = vadd.f32 %v2862, %v3279
        %v3326 = vadd.f32 %v2863, %v3282
        %v3327 = vadd.f32 %v2864, %v3287
        %v3328 = vadd.f32 %v2865, %v3290
        %v3329 = vld [vmem:[%s219 + $0xa0] sm:$0x7]
        %s3330 = scalar_lea.vmem [#allocation5], 448
        %v3331 = vld [vmem:[%s3330] sm:$0xf]
        %v3332 = vld [vmem:[%s3330 + $0x4] sm:$0xf]
        %v3333 = vld [vmem:[%s3330 + $0x8] sm:$0xf]
        %v3334 = vld [vmem:[%s3330 + $0xc] sm:$0xf]
        %v3335 = vld [vmem:[%s3330 + $0x10] sm:$0xf]
        %v3336 = vld [vmem:[%s3330 + $0x14] sm:$0xf]
        %v3337 = vld [vmem:[%s3330 + $0x18] sm:$0xf]
        %v3338 = vld [vmem:[%s3330 + $0x1c] sm:$0xf]
        %v3339 = vld [vmem:[%s3330 + $0x20] sm:$0xf]
        %v3340 = vld [vmem:[%s3330 + $0x24] sm:$0xf]
        %v3341 = vld [vmem:[%s3330 + $0x28] sm:$0xf]
        %v3342 = vld [vmem:[%s3330 + $0x2c] sm:$0xf]
        %v3343 = vld [vmem:[%s3330 + $0x30] sm:$0xf]
        %v3344 = vld [vmem:[%s3330 + $0x34] sm:$0xf]
        %v3345 = vld [vmem:[%s3330 + $0x38] sm:$0xf]
        %v3346 = vld [vmem:[%s3330 + $0x3c] sm:$0xf]
        %v3348 = vunpack.c.l.b16 %v3329
        %v3349 = vpack.c.b16 %v3348, %v3348
        %vm3350 = vsmask.f32 5376
        %v3352 = vshrl.u32 %v2994, 16
        %v3354 = vrot.slane %v3352, 2
        %v3355 = vshll.u32 %v2994, 16
        %v3357 = vrot.slane %v3355, 3
        %v3358 = vor.u32 %v3354, %v3357
        %v3360 = vshrl.u32 %v2995, 16
        %v3362 = vrot.slane %v3360, 2
        %v3363 = vshll.u32 %v2995, 16
        %v3365 = vrot.slane %v3363, 3
        %v3366 = vor.u32 %v3362, %v3365
        %v3367 = vsel %vm3350, %v3358, %v3366
        %v3369 = vshrl.u32 %v2996, 16
        %v3371 = vrot.slane %v3369, 2
        %v3372 = vshll.u32 %v2996, 16
        %v3374 = vrot.slane %v3372, 3
        %v3375 = vor.u32 %v3371, %v3374
        %v3376 = vsel %vm3350, %v3366, %v3375
        %v3378 = vshrl.u32 %v2997, 16
        %v3380 = vrot.slane %v3378, 2
        %v3381 = vshll.u32 %v2997, 16
        %v3383 = vrot.slane %v3381, 3
        %v3384 = vor.u32 %v3380, %v3383
        %v3385 = vsel %vm3350, %v3375, %v3384
        %v3387 = vshrl.u32 %v2998, 16
        %v3389 = vrot.slane %v3387, 2
        %v3390 = vshll.u32 %v2998, 16
        %v3392 = vrot.slane %v3390, 3
        %v3393 = vor.u32 %v3389, %v3392
        %v3394 = vsel %vm3350, %v3384, %v3393
        %v3396 = vshrl.u32 %v2999, 16
        %v3398 = vrot.slane %v3396, 2
        %v3399 = vshll.u32 %v2999, 16
        %v3401 = vrot.slane %v3399, 3
        %v3402 = vor.u32 %v3398, %v3401
        %v3403 = vsel %vm3350, %v3393, %v3402
        %v3405 = vshrl.u32 %v3000, 16
        %v3407 = vrot.slane %v3405, 2
        %v3408 = vshll.u32 %v3000, 16
        %v3410 = vrot.slane %v3408, 3
        %v3411 = vor.u32 %v3407, %v3410
        %v3412 = vsel %vm3350, %v3402, %v3411
        %v3414 = vshrl.u32 %v3001, 16
        %v3416 = vrot.slane %v3414, 2
        %v3417 = vshll.u32 %v3001, 16
        %v3419 = vrot.slane %v3417, 3
        %v3420 = vor.u32 %v3416, %v3419
        %v3421 = vsel %vm3350, %v3411, %v3420
        %v3423 = vshrl.u32 %v3002, 16
        %v3425 = vrot.slane %v3423, 2
        %v3426 = vshll.u32 %v3002, 16
        %v3428 = vrot.slane %v3426, 3
        %v3429 = vor.u32 %v3425, %v3428
        %v3430 = vsel %vm3350, %v3420, %v3429
        %v3432 = vshrl.u32 %v3003, 16
        %v3434 = vrot.slane %v3432, 2
        %v3435 = vshll.u32 %v3003, 16
        %v3437 = vrot.slane %v3435, 3
        %v3438 = vor.u32 %v3434, %v3437
        %v3439 = vsel %vm3350, %v3429, %v3438
        %v3441 = vshrl.u32 %v3004, 16
        %v3443 = vrot.slane %v3441, 2
        %v3444 = vshll.u32 %v3004, 16
        %v3446 = vrot.slane %v3444, 3
        %v3447 = vor.u32 %v3443, %v3446
        %v3448 = vsel %vm3350, %v3438, %v3447
        %v3450 = vshrl.u32 %v3005, 16
        %v3452 = vrot.slane %v3450, 2
        %v3453 = vshll.u32 %v3005, 16
        %v3455 = vrot.slane %v3453, 3
        %v3456 = vor.u32 %v3452, %v3455
        %v3457 = vsel %vm3350, %v3447, %v3456
        %v3459 = vshrl.u32 %v3006, 16
        %v3461 = vrot.slane %v3459, 2
        %v3462 = vshll.u32 %v3006, 16
        %v3464 = vrot.slane %v3462, 3
        %v3465 = vor.u32 %v3461, %v3464
        %v3466 = vsel %vm3350, %v3456, %v3465
        %v3468 = vshrl.u32 %v3007, 16
        %v3470 = vrot.slane %v3468, 2
        %v3471 = vshll.u32 %v3007, 16
        %v3473 = vrot.slane %v3471, 3
        %v3474 = vor.u32 %v3470, %v3473
        %v3475 = vsel %vm3350, %v3465, %v3474
        %v3477 = vshrl.u32 %v3008, 16
        %v3479 = vrot.slane %v3477, 2
        %v3480 = vshll.u32 %v3008, 16
        %v3482 = vrot.slane %v3480, 3
        %v3483 = vor.u32 %v3479, %v3482
        %v3484 = vsel %vm3350, %v3474, %v3483
        %v3486 = vshrl.u32 %v3009, 16
        %v3488 = vrot.slane %v3486, 2
        %v3489 = vshll.u32 %v3009, 16
        %v3491 = vrot.slane %v3489, 3
        %v3492 = vor.u32 %v3488, %v3491
        %v3493 = vsel %vm3350, %v3483, %v3492
        %v3495 = vshrl.u32 %v3010, 16
        %v3497 = vrot.slane %v3495, 2
        %v3498 = vshll.u32 %v3010, 16
        %v3500 = vrot.slane %v3498, 3
        %v3501 = vor.u32 %v3497, %v3500
        %v3502 = vsel %vm3350, %v3492, %v3501
        %v3504 = vshrl.u32 %v3011, 16
        %v3506 = vrot.slane %v3504, 2
        %v3507 = vshll.u32 %v3011, 16
        %v3509 = vrot.slane %v3507, 3
        %v3510 = vor.u32 %v3506, %v3509
        %v3511 = vsel %vm3350, %v3501, %v3510
        %v3513 = vshrl.u32 %v3349, 16
        %v3515 = vrot.slane %v3513, 2
        %v3516 = vshll.u32 %v3349, 16
        %v3518 = vrot.slane %v3516, 3
        %v3519 = vor.u32 %v3515, %v3518
        %v3520 = vsel %vm3350, %v3510, %v3519
        %v3555 = vunpack.c.l.b16 %v3331
        %v3556 = vunpack.c.l.b16 %v3332
        %v3557 = vunpack.c.l.b16 %v3333
        %v3558 = vunpack.c.l.b16 %v3334
        %v3559 = vunpack.c.l.b16 %v3335
        %v3560 = vunpack.c.l.b16 %v3336
        %v3561 = vunpack.c.l.b16 %v3337
        %v3562 = vunpack.c.l.b16 %v3338
        %v3563 = vunpack.c.l.b16 %v3339
        %v3564 = vunpack.c.l.b16 %v3340
        %v3565 = vunpack.c.l.b16 %v3341
        %v3566 = vunpack.c.l.b16 %v3342
        %v3567 = vunpack.c.l.b16 %v3343
        %v3568 = vunpack.c.l.b16 %v3344
        %v3569 = vunpack.c.l.b16 %v3345
        %v3570 = vunpack.c.l.b16 %v3346
        %v3571 = vpack.c.b16 %v3556, %v3555
        %v3572 = vpack.c.b16 %v3558, %v3557
        %v3573 = vpack.c.b16 %v3560, %v3559
        %v3574 = vpack.c.b16 %v3562, %v3561
        %v3575 = vpack.c.b16 %v3564, %v3563
        %v3576 = vpack.c.b16 %v3566, %v3565
        %v3577 = vpack.c.b16 %v3568, %v3567
        %v3578 = vpack.c.b16 %v3570, %v3569
        %3587 = vmatprep.subr.bf16.mxu0 0
        %3588 = vmatpush1.bf16.msra.mxu0 %v3571
        %3589 = vmatprep.subr.bf16.mxu0 0
        %3590 = vmatpush1.bf16.msra.mxu0 %v3572
        %3591 = vmatprep.subr.bf16.mxu0 0
        %3592 = vmatpush1.bf16.msra.mxu0 %v3573
        %3593 = vmatprep.subr.bf16.mxu0 0
        %3594 = vmatpush1.bf16.msra.mxu0 %v3574
        %3595 = vmatprep.subr.bf16.mxu0 0
        %3596 = vmatpush1.bf16.msra.mxu0 %v3575
        %3597 = vmatprep.subr.bf16.mxu0 0
        %3598 = vmatpush1.bf16.msra.mxu0 %v3576
        %3599 = vmatprep.subr.bf16.mxu0 0
        %3600 = vmatpush1.bf16.msra.mxu0 %v3577
        %3601 = vmatprep.subr.bf16.mxu0 0
        %3602 = vmatpush1.bf16.msra.mxu0 %v3578
        %3603 = vmatprep.subr.bf16.mxu0 0
        %3604 = vmatpush1.bf16.msra.mxu0 0
        %3605 = vmatprep.subr.bf16.mxu0 0
        %3606 = vmatpush1.bf16.msra.mxu0 0
        %3607 = vmatprep.subr.bf16.mxu0 0
        %3608 = vmatpush1.bf16.msra.mxu0 0
        %3609 = vmatprep.subr.bf16.mxu0 0
        %3610 = vmatpush1.bf16.msra.mxu0 0
        %3611 = vmatprep.subr.bf16.mxu0 0
        %3612 = vmatpush1.bf16.msra.mxu0 0
        %3613 = vmatprep.subr.bf16.mxu0 0
        %3614 = vmatpush1.bf16.msra.mxu0 0
        %3615 = vmatprep.subr.bf16.mxu0 0
        %3616 = vmatpush1.bf16.msra.mxu0 0
        %3617 = vmatprep.subr.bf16.mxu0 0
        %3618 = vmatpush1.bf16.msra.mxu0 0
        %3619 = vmatprep.mubr.bf16.mxu0 0
        %3620 = vmatmul.mubr.bf16.gmra.mrb[0].mxu0 %v3367
        %v3621 = vpop.f32.mrb[0].mxu0
        %v3622 = vadd.f32 0.0, %v3621
        %v3623 = vpop.f32.mrb[0].mxu0
        %v3624 = vpop.f32.mrb[0].mxu0
        %v3625 = vadd.f32 0.0, %v3624
        %v3626 = vpop.f32.mrb[0].mxu0
        %3627 = vmatprep.mubr.bf16.mxu0 0
        %3628 = vmatmul.mubr.bf16.gmra.mrb[0].mxu0 %v3376
        %v3629 = vpop.f32.mrb[0].mxu0
        %v3630 = vadd.f32 0.0, %v3629
        %v3631 = vpop.f32.mrb[0].mxu0
        %v3632 = vpop.f32.mrb[0].mxu0
        %v3633 = vadd.f32 0.0, %v3632
        %v3634 = vpop.f32.mrb[0].mxu0
        %3635 = vmatprep.mubr.bf16.mxu0 0
        %3636 = vmatmul.mubr.bf16.gmra.mrb[0].mxu0 %v3385
        %v3637 = vpop.f32.mrb[0].mxu0
        %v3638 = vadd.f32 0.0, %v3637
        %v3639 = vpop.f32.mrb[0].mxu0
        %v3640 = vpop.f32.mrb[0].mxu0
        %v3641 = vadd.f32 0.0, %v3640
        %v3642 = vpop.f32.mrb[0].mxu0
        %3643 = vmatprep.mubr.bf16.mxu0 0
        %3644 = vmatmul.mubr.bf16.gmra.mrb[0].mxu0 %v3394
        %v3645 = vpop.f32.mrb[0].mxu0
        %v3646 = vadd.f32 0.0, %v3645
        %v3647 = vpop.f32.mrb[0].mxu0
        %v3648 = vpop.f32.mrb[0].mxu0
        %v3649 = vadd.f32 0.0, %v3648
        %v3650 = vpop.f32.mrb[0].mxu0
        %3651 = vmatprep.mubr.bf16.mxu0 0
        %3652 = vmatmul.mubr.bf16.gmra.mrb[0].mxu0 %v3403
        %v3653 = vpop.f32.mrb[0].mxu0
        %v3654 = vadd.f32 0.0, %v3653
        %v3655 = vpop.f32.mrb[0].mxu0
        %v3656 = vpop.f32.mrb[0].mxu0
        %v3657 = vadd.f32 0.0, %v3656
        %v3658 = vpop.f32.mrb[0].mxu0
        %3659 = vmatprep.mubr.bf16.mxu0 0
        %3660 = vmatmul.mubr.bf16.gmra.mrb[0].mxu0 %v3412
        %v3661 = vpop.f32.mrb[0].mxu0
        %v3662 = vadd.f32 0.0, %v3661
        %v3663 = vpop.f32.mrb[0].mxu0
        %v3664 = vpop.f32.mrb[0].mxu0
        %v3665 = vadd.f32 0.0, %v3664
        %v3666 = vpop.f32.mrb[0].mxu0
        %3667 = vmatprep.mubr.bf16.mxu0 0
        %3668 = vmatmul.mubr.bf16.gmra.mrb[0].mxu0 %v3421
        %v3669 = vpop.f32.mrb[0].mxu0
        %v3670 = vadd.f32 0.0, %v3669
        %v3671 = vpop.f32.mrb[0].mxu0
        %v3672 = vpop.f32.mrb[0].mxu0
        %v3673 = vadd.f32 0.0, %v3672
        %v3674 = vpop.f32.mrb[0].mxu0
        %3675 = vmatprep.mubr.bf16.mxu0 0
        %3676 = vmatmul.mubr.bf16.gmra.mrb[0].mxu0 %v3430
        %v3677 = vpop.f32.mrb[0].mxu0
        %v3678 = vadd.f32 0.0, %v3677
        %v3679 = vpop.f32.mrb[0].mxu0
        %v3680 = vpop.f32.mrb[0].mxu0
        %v3681 = vadd.f32 0.0, %v3680
        %v3682 = vpop.f32.mrb[0].mxu0
        %3683 = vmatprep.mubr.bf16.mxu0 0
        %3684 = vmatmul.mubr.bf16.gmra.mrb[0].mxu0 %v3439
        %v3685 = vpop.f32.mrb[0].mxu0
        %v3686 = vadd.f32 0.0, %v3685
        %v3687 = vpop.f32.mrb[0].mxu0
        %v3688 = vpop.f32.mrb[0].mxu0
        %v3689 = vadd.f32 0.0, %v3688
        %v3690 = vpop.f32.mrb[0].mxu0
        %3691 = vmatprep.mubr.bf16.mxu0 0
        %3692 = vmatmul.mubr.bf16.gmra.mrb[0].mxu0 %v3448
        %v3693 = vpop.f32.mrb[0].mxu0
        %v3694 = vadd.f32 0.0, %v3693
        %v3695 = vpop.f32.mrb[0].mxu0
        %v3696 = vpop.f32.mrb[0].mxu0
        %v3697 = vadd.f32 0.0, %v3696
        %v3698 = vpop.f32.mrb[0].mxu0
        %3699 = vmatprep.mubr.bf16.mxu0 0
        %3700 = vmatmul.mubr.bf16.gmra.mrb[0].mxu0 %v3457
        %v3701 = vpop.f32.mrb[0].mxu0
        %v3702 = vadd.f32 0.0, %v3701
        %v3703 = vpop.f32.mrb[0].mxu0
        %v3704 = vpop.f32.mrb[0].mxu0
        %v3705 = vadd.f32 0.0, %v3704
        %v3706 = vpop.f32.mrb[0].mxu0
        %3707 = vmatprep.mubr.bf16.mxu0 0
        %3708 = vmatmul.mubr.bf16.gmra.mrb[0].mxu0 %v3466
        %v3709 = vpop.f32.mrb[0].mxu0
        %v3710 = vadd.f32 0.0, %v3709
        %v3711 = vpop.f32.mrb[0].mxu0
        %v3712 = vpop.f32.mrb[0].mxu0
        %v3713 = vadd.f32 0.0, %v3712
        %v3714 = vpop.f32.mrb[0].mxu0
        %3715 = vmatprep.mubr.bf16.mxu0 0
        %3716 = vmatmul.mubr.bf16.gmra.mrb[0].mxu0 %v3475
        %v3717 = vpop.f32.mrb[0].mxu0
        %v3718 = vadd.f32 0.0, %v3717
        %v3719 = vpop.f32.mrb[0].mxu0
        %v3720 = vpop.f32.mrb[0].mxu0
        %v3721 = vadd.f32 0.0, %v3720
        %v3722 = vpop.f32.mrb[0].mxu0
        %3723 = vmatprep.mubr.bf16.mxu0 0
        %3724 = vmatmul.mubr.bf16.gmra.mrb[0].mxu0 %v3484
        %v3725 = vpop.f32.mrb[0].mxu0
        %v3726 = vadd.f32 0.0, %v3725
        %v3727 = vpop.f32.mrb[0].mxu0
        %v3728 = vpop.f32.mrb[0].mxu0
        %v3729 = vadd.f32 0.0, %v3728
        %v3730 = vpop.f32.mrb[0].mxu0
        %3731 = vmatprep.mubr.bf16.mxu0 0
        %3732 = vmatmul.mubr.bf16.gmra.mrb[0].mxu0 %v3493
        %v3733 = vpop.f32.mrb[0].mxu0
        %v3734 = vadd.f32 0.0, %v3733
        %v3735 = vpop.f32.mrb[0].mxu0
        %v3736 = vpop.f32.mrb[0].mxu0
        %v3737 = vadd.f32 0.0, %v3736
        %v3738 = vpop.f32.mrb[0].mxu0
        %3739 = vmatprep.mubr.bf16.mxu0 0
        %3740 = vmatmul.mubr.bf16.gmra.mrb[0].mxu0 %v3502
        %v3741 = vpop.f32.mrb[0].mxu0
        %v3742 = vadd.f32 0.0, %v3741
        %v3743 = vpop.f32.mrb[0].mxu0
        %v3744 = vpop.f32.mrb[0].mxu0
        %v3745 = vadd.f32 0.0, %v3744
        %v3746 = vpop.f32.mrb[0].mxu0
        %3747 = vmatprep.mubr.bf16.mxu0 0
        %3748 = vmatmul.mubr.bf16.gmra.mrb[0].mxu0 %v3511
        %v3749 = vpop.f32.mrb[0].mxu0
        %v3750 = vadd.f32 0.0, %v3749
        %v3751 = vpop.f32.mrb[0].mxu0
        %v3752 = vpop.f32.mrb[0].mxu0
        %v3753 = vadd.f32 0.0, %v3752
        %v3754 = vpop.f32.mrb[0].mxu0
        %3755 = vmatprep.mubr.bf16.mxu0 0
        %3756 = vmatmul.mubr.bf16.gmra.mrb[0].mxu0 %v3520
        %v3757 = vpop.f32.mrb[0].mxu0
        %v3758 = vadd.f32 0.0, %v3757
        %v3759 = vpop.f32.mrb[0].mxu0
        %v3760 = vpop.f32.mrb[0].mxu0
        %v3761 = vadd.f32 0.0, %v3760
        %v3762 = vpop.f32.mrb[0].mxu0
        %3763 = vdwg.mxu0
        %v3764 = vadd.f32 %v3293, %v3622
        %v3765 = vadd.f32 %v3294, %v3625
        %v3766 = vadd.f32 %v3295, %v3630
        %v3767 = vadd.f32 %v3296, %v3633
        %v3768 = vadd.f32 %v3297, %v3638
        %v3769 = vadd.f32 %v3298, %v3641
        %v3770 = vadd.f32 %v3299, %v3646
        %v3771 = vadd.f32 %v3300, %v3649
        %v3772 = vadd.f32 %v3301, %v3654
        %v3773 = vadd.f32 %v3302, %v3657
        %v3774 = vadd.f32 %v3303, %v3662
        %v3775 = vadd.f32 %v3304, %v3665
        %v3776 = vadd.f32 %v3305, %v3670
        %v3777 = vadd.f32 %v3306, %v3673
        %v3778 = vadd.f32 %v3307, %v3678
        %v3779 = vadd.f32 %v3308, %v3681
        %v3780 = vadd.f32 %v3309, %v3686
        %v3781 = vadd.f32 %v3310, %v3689
        %v3782 = vadd.f32 %v3311, %v3694
        %v3783 = vadd.f32 %v3312, %v3697
        %v3784 = vadd.f32 %v3313, %v3702
        %v3785 = vadd.f32 %v3314, %v3705
        %v3786 = vadd.f32 %v3315, %v3710
        %v3787 = vadd.f32 %v3316, %v3713
        %v3788 = vadd.f32 %v3317, %v3718
        %v3789 = vadd.f32 %v3318, %v3721
        %v3790 = vadd.f32 %v3319, %v3726
        %v3791 = vadd.f32 %v3320, %v3729
        %v3792 = vadd.f32 %v3321, %v3734
        %v3793 = vadd.f32 %v3322, %v3737
        %v3794 = vadd.f32 %v3323, %v3742
        %v3795 = vadd.f32 %v3324, %v3745
        %v3796 = vadd.f32 %v3325, %v3750
        %v3797 = vadd.f32 %v3326, %v3753
        %v3798 = vadd.f32 %v3327, %v3758
        %v3799 = vadd.f32 %v3328, %v3761
        %v3800 = vld [vmem:[%s219 + $0x10] sm:$0x8]
        %s3801 = scalar_lea.vmem [#allocation5], 512
        %v3802 = vld [vmem:[%s3801] sm:$0xf]
        %v3803 = vld [vmem:[%s3801 + $0x4] sm:$0xf]
        %v3804 = vld [vmem:[%s3801 + $0x8] sm:$0xf]
        %v3805 = vld [vmem:[%s3801 + $0xc] sm:$0xf]
        %v3806 = vld [vmem:[%s3801 + $0x10] sm:$0xf]
        %v3807 = vld [vmem:[%s3801 + $0x14] sm:$0xf]
        %v3808 = vld [vmem:[%s3801 + $0x18] sm:$0xf]
        %v3809 = vld [vmem:[%s3801 + $0x1c] sm:$0xf]
        %v3810 = vld [vmem:[%s3801 + $0x20] sm:$0xf]
        %v3811 = vld [vmem:[%s3801 + $0x24] sm:$0xf]
        %v3812 = vld [vmem:[%s3801 + $0x28] sm:$0xf]
        %v3813 = vld [vmem:[%s3801 + $0x2c] sm:$0xf]
        %v3814 = vld [vmem:[%s3801 + $0x30] sm:$0xf]
        %v3815 = vld [vmem:[%s3801 + $0x34] sm:$0xf]
        %v3816 = vld [vmem:[%s3801 + $0x38] sm:$0xf]
        %v3817 = vld [vmem:[%s3801 + $0x3c] sm:$0xf]
        %v3819 = vunpack.c.l.b16 %v3800
        %v3820 = vpack.c.b16 %v2958, %v3819
        %vm3821 = vcmask 1044480
        %v3822 = vrot.slane %v3820, 3
        %v3823 = vrot.slane %v2995, 3
        %v3824 = vsel %vm3821, %v3822, %v3823
        %v3825 = vrot.slane %v2996, 3
        %v3826 = vsel %vm3821, %v3823, %v3825
        %v3827 = vrot.slane %v2997, 3
        %v3828 = vsel %vm3821, %v3825, %v3827
        %v3829 = vrot.slane %v2998, 3
        %v3830 = vsel %vm3821, %v3827, %v3829
        %v3831 = vrot.slane %v2999, 3
        %v3832 = vsel %vm3821, %v3829, %v3831
        %v3833 = vrot.slane %v3000, 3
        %v3834 = vsel %vm3821, %v3831, %v3833
        %v3835 = vrot.slane %v3001, 3
        %v3836 = vsel %vm3821, %v3833, %v3835
        %v3837 = vrot.slane %v3002, 3
        %v3838 = vsel %vm3821, %v3835, %v3837
        %v3839 = vrot.slane %v3003, 3
        %v3840 = vsel %vm3821, %v3837, %v3839
        %v3841 = vrot.slane %v3004, 3
        %v3842 = vsel %vm3821, %v3839, %v3841
        %v3843 = vrot.slane %v3005, 3
        %v3844 = vsel %vm3821, %v3841, %v3843
        %v3845 = vrot.slane %v3006, 3
        %v3846 = vsel %vm3821, %v3843, %v3845
        %v3847 = vrot.slane %v3007, 3
        %v3848 = vsel %vm3821, %v3845, %v3847
        %v3849 = vrot.slane %v3008, 3
        %v3850 = vsel %vm3821, %v3847, %v3849
        %v3851 = vrot.slane %v3009, 3
        %v3852 = vsel %vm3821, %v3849, %v3851
        %v3853 = vrot.slane %v3010, 3
        %v3854 = vsel %vm3821, %v3851, %v3853
        %v3855 = vrot.slane %v3011, 3
        %v3856 = vsel %vm3821, %v3853, %v3855
        %v3857 = vrot.slane %v3349, 3
        %v3858 = vsel %vm3821, %v3855, %v3857
        %v3893 = vunpack.c.l.b16 %v3802
        %v3894 = vunpack.c.l.b16 %v3803
        %v3895 = vunpack.c.l.b16 %v3804
        %v3896 = vunpack.c.l.b16 %v3805
        %v3897 = vunpack.c.l.b16 %v3806
        %v3898 = vunpack.c.l.b16 %v3807
        %v3899 = vunpack.c.l.b16 %v3808
        %v3900 = vunpack.c.l.b16 %v3809
        %v3901 = vunpack.c.l.b16 %v3810
        %v3902 = vunpack.c.l.b16 %v3811
        %v3903 = vunpack.c.l.b16 %v3812
        %v3904 = vunpack.c.l.b16 %v3813
        %v3905 = vunpack.c.l.b16 %v3814
        %v3906 = vunpack.c.l.b16 %v3815
        %v3907 = vunpack.c.l.b16 %v3816
        %v3908 = vunpack.c.l.b16 %v3817
        %v3909 = vpack.c.b16 %v3894, %v3893
        %v3910 = vpack.c.b16 %v3896, %v3895
        %v3911 = vpack.c.b16 %v3898, %v3897
        %v3912 = vpack.c.b16 %v3900, %v3899
        %v3913 = vpack.c.b16 %v3902, %v3901
        %v3914 = vpack.c.b16 %v3904, %v3903
        %v3915 = vpack.c.b16 %v3906, %v3905
        %v3916 = vpack.c.b16 %v3908, %v3907
        %3925 = vmatprep.subr.bf16.mxu0 0
        %3926 = vmatpush1.bf16.msra.mxu0 %v3909
        %3927 = vmatprep.subr.bf16.mxu0 0
        %3928 = vmatpush1.bf16.msra.mxu0 %v3910
        %3929 = vmatprep.subr.bf16.mxu0 0
        %3930 = vmatpush1.bf16.msra.mxu0 %v3911
        %3931 = vmatprep.subr.bf16.mxu0 0
        %3932 = vmatpush1.bf16.msra.mxu0 %v3912
        %3933 = vmatprep.subr.bf16.mxu0 0
        %3934 = vmatpush1.bf16.msra.mxu0 %v3913
        %3935 = vmatprep.subr.bf16.mxu0 0
        %3936 = vmatpush1.bf16.msra.mxu0 %v3914
        %3937 = vmatprep.subr.bf16.mxu0 0
        %3938 = vmatpush1.bf16.msra.mxu0 %v3915
        %3939 = vmatprep.subr.bf16.mxu0 0
        %3940 = vmatpush1.bf16.msra.mxu0 %v3916
        %3941 = vmatprep.subr.bf16.mxu0 0
        %3942 = vmatpush1.bf16.msra.mxu0 0
        %3943 = vmatprep.subr.bf16.mxu0 0
        %3944 = vmatpush1.bf16.msra.mxu0 0
        %3945 = vmatprep.subr.bf16.mxu0 0
        %3946 = vmatpush1.bf16.msra.mxu0 0
        %3947 = vmatprep.subr.bf16.mxu0 0
        %3948 = vmatpush1.bf16.msra.mxu0 0
        %3949 = vmatprep.subr.bf16.mxu0 0
        %3950 = vmatpush1.bf16.msra.mxu0 0
        %3951 = vmatprep.subr.bf16.mxu0 0
        %3952 = vmatpush1.bf16.msra.mxu0 0
        %3953 = vmatprep.subr.bf16.mxu0 0
        %3954 = vmatpush1.bf16.msra.mxu0 0
        %3955 = vmatprep.subr.bf16.mxu0 0
        %3956 = vmatpush1.bf16.msra.mxu0 0
        %3957 = vmatprep.mubr.bf16.mxu0 0
        %3958 = vmatmul.mubr.bf16.gmra.mrb[0].mxu0 %v3824
        %v3959 = vpop.f32.mrb[0].mxu0
        %v3960 = vadd.f32 0.0, %v3959
        %v3961 = vpop.f32.mrb[0].mxu0
        %v3962 = vpop.f32.mrb[0].mxu0
        %v3963 = vadd.f32 0.0, %v3962
        %v3964 = vpop.f32.mrb[0].mxu0
        %3965 = vmatprep.mubr.bf16.mxu0 0
        %3966 = vmatmul.mubr.bf16.gmra.mrb[0].mxu0 %v3826
        %v3967 = vpop.f32.mrb[0].mxu0
        %v3968 = vadd.f32 0.0, %v3967
        %v3969 = vpop.f32.mrb[0].mxu0
        %v3970 = vpop.f32.mrb[0].mxu0
        %v3971 = vadd.f32 0.0, %v3970
        %v3972 = vpop.f32.mrb[0].mxu0
        %3973 = vmatprep.mubr.bf16.mxu0 0
        %3974 = vmatmul.mubr.bf16.gmra.mrb[0].mxu0 %v3828
        %v3975 = vpop.f32.mrb[0].mxu0
        %v3976 = vadd.f32 0.0, %v3975
        %v3977 = vpop.f32.mrb[0].mxu0
        %v3978 = vpop.f32.mrb[0].mxu0
        %v3979 = vadd.f32 0.0, %v3978
        %v3980 = vpop.f32.mrb[0].mxu0
        %3981 = vmatprep.mubr.bf16.mxu0 0
        %3982 = vmatmul.mubr.bf16.gmra.mrb[0].mxu0 %v3830
        %v3983 = vpop.f32.mrb[0].mxu0
        %v3984 = vadd.f32 0.0, %v3983
        %v3985 = vpop.f32.mrb[0].mxu0
        %v3986 = vpop.f32.mrb[0].mxu0
        %v3987 = vadd.f32 0.0, %v3986
        %v3988 = vpop.f32.mrb[0].mxu0
        %3989 = vmatprep.mubr.bf16.mxu0 0
        %3990 = vmatmul.mubr.bf16.gmra.mrb[0].mxu0 %v3832
        %v3991 = vpop.f32.mrb[0].mxu0
        %v3992 = vadd.f32 0.0, %v3991
        %v3993 = vpop.f32.mrb[0].mxu0
        %v3994 = vpop.f32.mrb[0].mxu0
        %v3995 = vadd.f32 0.0, %v3994
        %v3996 = vpop.f32.mrb[0].mxu0
        %3997 = vmatprep.mubr.bf16.mxu0 0
        %3998 = vmatmul.mubr.bf16.gmra.mrb[0].mxu0 %v3834
        %v3999 = vpop.f32.mrb[0].mxu0
        %v4000 = vadd.f32 0.0, %v3999
        %v4001 = vpop.f32.mrb[0].mxu0
        %v4002 = vpop.f32.mrb[0].mxu0
        %v4003 = vadd.f32 0.0, %v4002
        %v4004 = vpop.f32.mrb[0].mxu0
        %4005 = vmatprep.mubr.bf16.mxu0 0
        %4006 = vmatmul.mubr.bf16.gmra.mrb[0].mxu0 %v3836
        %v4007 = vpop.f32.mrb[0].mxu0
        %v4008 = vadd.f32 0.0, %v4007
        %v4009 = vpop.f32.mrb[0].mxu0
        %v4010 = vpop.f32.mrb[0].mxu0
        %v4011 = vadd.f32 0.0, %v4010
        %v4012 = vpop.f32.mrb[0].mxu0
        %4013 = vmatprep.mubr.bf16.mxu0 0
        %4014 = vmatmul.mubr.bf16.gmra.mrb[0].mxu0 %v3838
        %v4015 = vpop.f32.mrb[0].mxu0
        %v4016 = vadd.f32 0.0, %v4015
        %v4017 = vpop.f32.mrb[0].mxu0
        %v4018 = vpop.f32.mrb[0].mxu0
        %v4019 = vadd.f32 0.0, %v4018
        %v4020 = vpop.f32.mrb[0].mxu0
        %4021 = vmatprep.mubr.bf16.mxu0 0
        %4022 = vmatmul.mubr.bf16.gmra.mrb[0].mxu0 %v3840
        %v4023 = vpop.f32.mrb[0].mxu0
        %v4024 = vadd.f32 0.0, %v4023
        %v4025 = vpop.f32.mrb[0].mxu0
        %v4026 = vpop.f32.mrb[0].mxu0
        %v4027 = vadd.f32 0.0, %v4026
        %v4028 = vpop.f32.mrb[0].mxu0
        %4029 = vmatprep.mubr.bf16.mxu0 0
        %4030 = vmatmul.mubr.bf16.gmra.mrb[0].mxu0 %v3842
        %v4031 = vpop.f32.mrb[0].mxu0
        %v4032 = vadd.f32 0.0, %v4031
        %v4033 = vpop.f32.mrb[0].mxu0
        %v4034 = vpop.f32.mrb[0].mxu0
        %v4035 = vadd.f32 0.0, %v4034
        %v4036 = vpop.f32.mrb[0].mxu0
        %4037 = vmatprep.mubr.bf16.mxu0 0
        %4038 = vmatmul.mubr.bf16.gmra.mrb[0].mxu0 %v3844
        %v4039 = vpop.f32.mrb[0].mxu0
        %v4040 = vadd.f32 0.0, %v4039
        %v4041 = vpop.f32.mrb[0].mxu0
        %v4042 = vpop.f32.mrb[0].mxu0
        %v4043 = vadd.f32 0.0, %v4042
        %v4044 = vpop.f32.mrb[0].mxu0
        %4045 = vmatprep.mubr.bf16.mxu0 0
        %4046 = vmatmul.mubr.bf16.gmra.mrb[0].mxu0 %v3846
        %v4047 = vpop.f32.mrb[0].mxu0
        %v4048 = vadd.f32 0.0, %v4047
        %v4049 = vpop.f32.mrb[0].mxu0
        %v4050 = vpop.f32.mrb[0].mxu0
        %v4051 = vadd.f32 0.0, %v4050
        %v4052 = vpop.f32.mrb[0].mxu0
        %4053 = vmatprep.mubr.bf16.mxu0 0
        %4054 = vmatmul.mubr.bf16.gmra.mrb[0].mxu0 %v3848
        %v4055 = vpop.f32.mrb[0].mxu0
        %v4056 = vadd.f32 0.0, %v4055
        %v4057 = vpop.f32.mrb[0].mxu0
        %v4058 = vpop.f32.mrb[0].mxu0
        %v4059 = vadd.f32 0.0, %v4058
        %v4060 = vpop.f32.mrb[0].mxu0
        %4061 = vmatprep.mubr.bf16.mxu0 0
        %4062 = vmatmul.mubr.bf16.gmra.mrb[0].mxu0 %v3850
        %v4063 = vpop.f32.mrb[0].mxu0
        %v4064 = vadd.f32 0.0, %v4063
        %v4065 = vpop.f32.mrb[0].mxu0
        %v4066 = vpop.f32.mrb[0].mxu0
        %v4067 = vadd.f32 0.0, %v4066
        %v4068 = vpop.f32.mrb[0].mxu0
        %4069 = vmatprep.mubr.bf16.mxu0 0
        %4070 = vmatmul.mubr.bf16.gmra.mrb[0].mxu0 %v3852
        %v4071 = vpop.f32.mrb[0].mxu0
        %v4072 = vadd.f32 0.0, %v4071
        %v4073 = vpop.f32.mrb[0].mxu0
        %v4074 = vpop.f32.mrb[0].mxu0
        %v4075 = vadd.f32 0.0, %v4074
        %v4076 = vpop.f32.mrb[0].mxu0
        %4077 = vmatprep.mubr.bf16.mxu0 0
        %4078 = vmatmul.mubr.bf16.gmra.mrb[0].mxu0 %v3854
        %v4079 = vpop.f32.mrb[0].mxu0
        %v4080 = vadd.f32 0.0, %v4079
        %v4081 = vpop.f32.mrb[0].mxu0
        %v4082 = vpop.f32.mrb[0].mxu0
        %v4083 = vadd.f32 0.0, %v4082
        %v4084 = vpop.f32.mrb[0].mxu0
        %4085 = vmatprep.mubr.bf16.mxu0 0
        %4086 = vmatmul.mubr.bf16.gmra.mrb[0].mxu0 %v3856
        %v4087 = vpop.f32.mrb[0].mxu0
        %v4088 = vadd.f32 0.0, %v4087
        %v4089 = vpop.f32.mrb[0].mxu0
        %v4090 = vpop.f32.mrb[0].mxu0
        %v4091 = vadd.f32 0.0, %v4090
        %v4092 = vpop.f32.mrb[0].mxu0
        %4093 = vmatprep.mubr.bf16.mxu0 0
        %4094 = vmatmul.mubr.bf16.gmra.mrb[0].mxu0 %v3858
        %v4095 = vpop.f32.mrb[0].mxu0
        %v4096 = vadd.f32 0.0, %v4095
        %v4097 = vpop.f32.mrb[0].mxu0
        %v4098 = vpop.f32.mrb[0].mxu0
        %v4099 = vadd.f32 0.0, %v4098
        %v4100 = vpop.f32.mrb[0].mxu0
        %4101 = vdwg.mxu0
        %v4102 = vadd.f32 %v3764, %v3960
        %v4103 = vadd.f32 %v3765, %v3963
        %v4104 = vadd.f32 %v3766, %v3968
        %v4105 = vadd.f32 %v3767, %v3971
        %v4106 = vadd.f32 %v3768, %v3976
        %v4107 = vadd.f32 %v3769, %v3979
        %v4108 = vadd.f32 %v3770, %v3984
        %v4109 = vadd.f32 %v3771, %v3987
        %v4110 = vadd.f32 %v3772, %v3992
        %v4111 = vadd.f32 %v3773, %v3995
        %v4112 = vadd.f32 %v3774, %v4000
        %v4113 = vadd.f32 %v3775, %v4003
        %v4114 = vadd.f32 %v3776, %v4008
        %v4115 = vadd.f32 %v3777, %v4011
        %v4116 = vadd.f32 %v3778, %v4016
        %v4117 = vadd.f32 %v3779, %v4019
        %v4118 = vadd.f32 %v3780, %v4024
        %v4119 = vadd.f32 %v3781, %v4027
        %v4120 = vadd.f32 %v3782, %v4032
        %v4121 = vadd.f32 %v3783, %v4035
        %v4122 = vadd.f32 %v3784, %v4040
        %v4123 = vadd.f32 %v3785, %v4043
        %v4124 = vadd.f32 %v3786, %v4048
        %v4125 = vadd.f32 %v3787, %v4051
        %v4126 = vadd.f32 %v3788, %v4056
        %v4127 = vadd.f32 %v3789, %v4059
        %v4128 = vadd.f32 %v3790, %v4064
        %v4129 = vadd.f32 %v3791, %v4067
        %v4130 = vadd.f32 %v3792, %v4072
        %v4131 = vadd.f32 %v3793, %v4075
        %v4132 = vadd.f32 %v3794, %v4080
        %v4133 = vadd.f32 %v3795, %v4083
        %v4134 = vadd.f32 %v3796, %v4088
        %v4135 = vadd.f32 %v3797, %v4091
        %v4136 = vadd.f32 %v3798, %v4096
        %v4137 = vadd.f32 %v3799, %v4099
        %v4138 = vmax.f32 %v4102, 0.0
        %v4139 = vmax.f32 %v4103, 0.0
        %v4140 = vmax.f32 %v4104, 0.0
        %v4141 = vmax.f32 %v4105, 0.0
        %v4142 = vmax.f32 %v4106, 0.0
        %v4143 = vmax.f32 %v4107, 0.0
        %v4144 = vmax.f32 %v4108, 0.0
        %v4145 = vmax.f32 %v4109, 0.0
        %v4146 = vmax.f32 %v4110, 0.0
        %v4147 = vmax.f32 %v4111, 0.0
        %v4148 = vmax.f32 %v4112, 0.0
        %v4149 = vmax.f32 %v4113, 0.0
        %v4150 = vmax.f32 %v4114, 0.0
        %v4151 = vmax.f32 %v4115, 0.0
        %v4152 = vmax.f32 %v4116, 0.0
        %v4153 = vmax.f32 %v4117, 0.0
        %v4154 = vmax.f32 %v4118, 0.0
        %v4155 = vmax.f32 %v4119, 0.0
        %v4156 = vmax.f32 %v4120, 0.0
        %v4157 = vmax.f32 %v4121, 0.0
        %v4158 = vmax.f32 %v4122, 0.0
        %v4159 = vmax.f32 %v4123, 0.0
        %v4160 = vmax.f32 %v4124, 0.0
        %v4161 = vmax.f32 %v4125, 0.0
        %v4162 = vmax.f32 %v4126, 0.0
        %v4163 = vmax.f32 %v4127, 0.0
        %v4164 = vmax.f32 %v4128, 0.0
        %v4165 = vmax.f32 %v4129, 0.0
        %v4166 = vmax.f32 %v4130, 0.0
        %v4167 = vmax.f32 %v4131, 0.0
        %v4168 = vmax.f32 %v4132, 0.0
        %v4169 = vmax.f32 %v4133, 0.0
        %v4170 = vmax.f32 %v4134, 0.0
        %v4171 = vmax.f32 %v4135, 0.0
        %v4172 = vmax.f32 %v4136, 0.0
        %v4173 = vmax.f32 %v4137, 0.0
        %v4174 = vpack.c.bf16 %v4139, %v4138
        %v4175 = vpack.c.bf16 %v4141, %v4140
        %v4176 = vpack.c.bf16 %v4143, %v4142
        %v4177 = vpack.c.bf16 %v4145, %v4144
        %v4178 = vpack.c.bf16 %v4147, %v4146
        %v4179 = vpack.c.bf16 %v4149, %v4148
        %v4180 = vpack.c.bf16 %v4151, %v4150
        %v4181 = vpack.c.bf16 %v4153, %v4152
        %v4182 = vpack.c.bf16 %v4155, %v4154
        %v4183 = vpack.c.bf16 %v4157, %v4156
        %v4184 = vpack.c.bf16 %v4159, %v4158
        %v4185 = vpack.c.bf16 %v4161, %v4160
        %v4186 = vpack.c.bf16 %v4163, %v4162
        %v4187 = vpack.c.bf16 %v4165, %v4164
        %v4188 = vpack.c.bf16 %v4167, %v4166
        %v4189 = vpack.c.bf16 %v4169, %v4168
        %v4190 = vpack.c.bf16 %v4171, %v4170
        %v4191 = vpack.c.bf16 %v4173, %v4172
        %v4210 = vunpack.c.l.b16 %v4174
        %v4211 = vunpack.c.h.b16 %v4174
        %v4212 = vunpack.c.l.b16 %v4175
        %v4213 = vunpack.c.h.b16 %v4175
        %v4214 = vunpack.c.l.b16 %v4176
        %v4215 = vunpack.c.h.b16 %v4176
        %v4216 = vunpack.c.l.b16 %v4177
        %v4217 = vunpack.c.h.b16 %v4177
        %v4218 = vunpack.c.l.b16 %v4178
        %v4219 = vunpack.c.h.b16 %v4178
        %v4220 = vunpack.c.l.b16 %v4179
        %v4221 = vunpack.c.h.b16 %v4179
        %v4222 = vunpack.c.l.b16 %v4180
        %v4223 = vunpack.c.h.b16 %v4180
        %v4224 = vunpack.c.l.b16 %v4181
        %v4225 = vunpack.c.h.b16 %v4181
        %v4226 = vunpack.c.l.b16 %v4182
        %v4227 = vunpack.c.h.b16 %v4182
        %v4228 = vunpack.c.l.b16 %v4183
        %v4229 = vunpack.c.h.b16 %v4183
        %v4230 = vunpack.c.l.b16 %v4184
        %v4231 = vunpack.c.h.b16 %v4184
        %v4232 = vunpack.c.l.b16 %v4185
        %v4233 = vunpack.c.h.b16 %v4185
        %v4234 = vunpack.c.l.b16 %v4186
        %v4235 = vunpack.c.h.b16 %v4186
        %v4236 = vunpack.c.l.b16 %v4187
        %v4237 = vunpack.c.h.b16 %v4187
        %v4238 = vunpack.c.l.b16 %v4188
        %v4239 = vunpack.c.h.b16 %v4188
        %v4240 = vunpack.c.l.b16 %v4189
        %v4241 = vunpack.c.h.b16 %v4189
        %v4242 = vunpack.c.l.b16 %v4190
        %v4243 = vunpack.c.h.b16 %v4190
        %v4244 = vunpack.c.l.b16 %v4191
        %v4245 = vunpack.c.h.b16 %v4191
        %v4246 = vpack.c.b16 %v4210, %v4210
        %v4247 = vpack.c.b16 %v4211, %v4211
        %v4248 = vpack.c.b16 %v4212, %v4212
        %v4249 = vpack.c.b16 %v4213, %v4213
        %v4250 = vpack.c.b16 %v4214, %v4214
        %v4251 = vpack.c.b16 %v4215, %v4215
        %v4252 = vpack.c.b16 %v4216, %v4216
        %v4253 = vpack.c.b16 %v4217, %v4217
        %v4254 = vpack.c.b16 %v4218, %v4218
        %v4255 = vpack.c.b16 %v4219, %v4219
        %v4256 = vpack.c.b16 %v4220, %v4220
        %v4257 = vpack.c.b16 %v4221, %v4221
        %v4258 = vpack.c.b16 %v4222, %v4222
        %v4259 = vpack.c.b16 %v4223, %v4223
        %v4260 = vpack.c.b16 %v4224, %v4224
        %v4261 = vpack.c.b16 %v4225, %v4225
        %v4262 = vpack.c.b16 %v4226, %v4226
        %v4263 = vpack.c.b16 %v4227, %v4227
        %v4264 = vpack.c.b16 %v4228, %v4228
        %v4265 = vpack.c.b16 %v4229, %v4229
        %v4266 = vpack.c.b16 %v4230, %v4230
        %v4267 = vpack.c.b16 %v4231, %v4231
        %v4268 = vpack.c.b16 %v4232, %v4232
        %v4269 = vpack.c.b16 %v4233, %v4233
        %v4270 = vpack.c.b16 %v4234, %v4234
        %v4271 = vpack.c.b16 %v4235, %v4235
        %v4272 = vpack.c.b16 %v4236, %v4236
        %v4273 = vpack.c.b16 %v4237, %v4237
        %v4274 = vpack.c.b16 %v4238, %v4238
        %v4275 = vpack.c.b16 %v4239, %v4239
        %v4276 = vpack.c.b16 %v4240, %v4240
        %v4277 = vpack.c.b16 %v4241, %v4241
        %v4278 = vpack.c.b16 %v4242, %v4242
        %v4279 = vpack.c.b16 %v4243, %v4243
        %v4280 = vpack.c.b16 %v4244, %v4244
        %v4281 = vpack.c.b16 %v4245, %v4245
        %4318 = vst [vmem:[%s248] sm:$0xf] %v4246
        %4319 = vst [vmem:[%s248 + $0x4] sm:$0xf] %v4247
        %4320 = vst [vmem:[%s248 + $0x8] sm:$0xf] %v4248
        %4321 = vst [vmem:[%s248 + $0xc] sm:$0xf] %v4249
        %4322 = vst [vmem:[%s248 + $0x10] sm:$0xf] %v4250
        %4323 = vst [vmem:[%s248 + $0x14] sm:$0xf] %v4251
        %4324 = vst [vmem:[%s248 + $0x18] sm:$0xf] %v4252
        %4325 = vst [vmem:[%s248 + $0x1c] sm:$0xf] %v4253
        %4326 = vst [vmem:[%s248 + $0x20] sm:$0xf] %v4254
        %4327 = vst [vmem:[%s248 + $0x24] sm:$0xf] %v4255
        %4328 = vst [vmem:[%s248 + $0x28] sm:$0xf] %v4256
        %4329 = vst [vmem:[%s248 + $0x2c] sm:$0xf] %v4257
        %4330 = vst [vmem:[%s248 + $0x30] sm:$0xf] %v4258
        %4331 = vst [vmem:[%s248 + $0x34] sm:$0xf] %v4259
        %4332 = vst [vmem:[%s248 + $0x38] sm:$0xf] %v4260
        %4333 = vst [vmem:[%s248 + $0x3c] sm:$0xf] %v4261
        %4334 = vst [vmem:[%s248 + $0x40] sm:$0xf] %v4262
        %4335 = vst [vmem:[%s248 + $0x44] sm:$0xf] %v4263
        %4336 = vst [vmem:[%s248 + $0x48] sm:$0xf] %v4264
        %4337 = vst [vmem:[%s248 + $0x4c] sm:$0xf] %v4265
        %4338 = vst [vmem:[%s248 + $0x50] sm:$0xf] %v4266
        %4339 = vst [vmem:[%s248 + $0x54] sm:$0xf] %v4267
        %4340 = vst [vmem:[%s248 + $0x58] sm:$0xf] %v4268
        %4341 = vst [vmem:[%s248 + $0x5c] sm:$0xf] %v4269
        %4342 = vst [vmem:[%s248 + $0x60] sm:$0xf] %v4270
        %4343 = vst [vmem:[%s248 + $0x64] sm:$0xf] %v4271
        %4344 = vst [vmem:[%s248 + $0x68] sm:$0xf] %v4272
        %4345 = vst [vmem:[%s248 + $0x6c] sm:$0xf] %v4273
        %4346 = vst [vmem:[%s248 + $0x70] sm:$0xf] %v4274
        %4347 = vst [vmem:[%s248 + $0x74] sm:$0xf] %v4275
        %4348 = vst [vmem:[%s248 + $0x78] sm:$0xf] %v4276
        %4349 = vst [vmem:[%s248 + $0x7c] sm:$0xf] %v4277
        %4350 = vst [vmem:[%s248 + $0x80] sm:$0xf] %v4278
        %4351 = vst [vmem:[%s248 + $0x84] sm:$0xf] %v4279
        %4352 = vst [vmem:[%s248 + $0x88] sm:$0xf] %v4280
        %4353 = vst [vmem:[%s248 + $0x8c] sm:$0xf] %v4281
        %s4354 = sand.u32 %s132, 1
        %s4355 = scalar_lea.sflag [#allocation4], %s4354
        %s4356 = sand.u32 %s132, 1
        %s4357 = smul.addr %s4356, 144
        %s4358 = scalar_lea.vmem [#allocation7], %s4357
        // Predicated region
        $region41: #{tpu_custom_call.1} parent=31 // pred_check
          %p4359 = pneg %p142
        $region42: #{tpu_custom_call.1} parent=31 // pred_check_branch
          %4361 = sbr.rel (%p4359) target = $region44
        $region43: #{tpu_custom_call.1} parent=31 // pred_region
          %s4363 = ssub.s32 2304, 2304
          %4364 = vsyncadd %s4355, %s4363
          %s4365 = smul.addr %s28, 36
          %s4366 = sadd.s32 %s26, %s4365
          %s4367 = smul.addr %s27, 36
          %s4368 = sadd.s32 %s4366, %s4367
          %s4369 = smul.addr %s4368, 64
          %s4370 = scalar_lea.hbm %s3, %s4369
          %s4371 = sshll.u32 %s4358, 4
          %s4372 = int_to_ptr.vmem [resolvable:$true] %s4371
          %4377 = dma.vmem_to_hbm [thread:$0]  %s4372, 2304, %s4370, %s4355, 64, 64, 4
        $region44: #{tpu_custom_call.1} parent=31 // pred_fallthru
          _
      $region32: #{tpu_custom_call.1} parent=5 // pred_fallthru
        _
      %p4378 = scmp.le.s32.totalorder 2, %s16
      // Predicated region
      $region45: #{tpu_custom_call.1} parent=5 // pred_check
        %p4379 = pneg %p4378
      $region46: #{tpu_custom_call.1} parent=5 // pred_check_branch
        %4381 = sbr.rel (%p4379) target = $region48
      $region47: #{tpu_custom_call.1} parent=5 // pred_region
        %s4382 = ssub.s32 %s16, 2
        // Predicated region
        $region49: #{tpu_custom_call.1} parent=47 // pred_check
          %p4383 = pneg %p148
        $region50: #{tpu_custom_call.1} parent=47 // pred_check_branch
          %4385 = sbr.rel (%p4383) target = $region52
        $region51: #{tpu_custom_call.1} parent=47 // pred_region
          %s4386 = sand.u32 %s133, 1
          %s4387 = scalar_lea.sflag [#allocation4], %s4386
          %s4388 = sand.u32 %s133, 1
          %s4389 = smul.addr %s4388, 144
          %s4390 = scalar_lea.vmem [#allocation7], %s4389
          %4391 = dma.done %s4387, 2304
        $region52: #{tpu_custom_call.1} parent=47 // pred_fallthru
          _
      $region48: #{tpu_custom_call.1} parent=5 // pred_fallthru
        _
    $region6: #{tpu_custom_call.1} parent=1 // loop_footer
      %s20 = sadd.s32 1, %s16
    $region7: #{tpu_custom_call.1} parent=1 // loop_footer_branch
      %15 = sbr.rel target = $region3
    $region8: #{tpu_custom_call.1} parent=1 // loop_exit
      _
    %4392 = vsyncpa [#allocation3], 1
    %s4393 = scalar_lea.sflag [#allocation3], 1
    %4394 = vsyncpa %s4393, 1
    %4395 = vsyncpa [#allocation6], 1
    %4396 = vsyncpa [#allocation4], 1
    %s4397 = scalar_lea.sflag [#allocation4], 1
    %4398 = vsyncpa %s4397, 1

</llo_original>
